<compile_context>
chip_gen: v7x
topology: tpu7x:2x2x1
jax: 0.10.0
libtpu: 0.0.40
codegen_flags: <defaults>
</compile_context>

<pallas_src>
import jax
import jax.numpy as jnp
from jax import lax
from jax.experimental import pallas as pl
from jax.experimental.pallas import tpu as pltpu

# ---- hyperparameters implied by FBTSANet defaults + nn.Linear(192, class_num) ----
F1 = 8
D = 2
F2 = F1 * D              # 16 (layer3 uses F1*D output channels)
KERN1 = 256              # layer1 temporal kernel
KERN4 = 128              # layer4 temporal kernel
CHANS = 64
T = 1536                 # F2 * (T // 8 // 16) == 192  =>  T = 1536
CLASS_NUM = 2
T8 = T // 8              # 192 after AvgPool(1, 8)
T128 = T8 // 16          # 12  after AvgPool(1, 16)


# ----------------------------- parameter initialization ----------------------------
def init_params(key):
    ks = jax.random.split(key, 24)

    def n(i, shape, scale):
        return (scale * jax.random.normal(ks[i], shape)).astype(jnp.float32)

    return {
        'w1': n(0, (F1, KERN1), 1.0 / float(KERN1) ** 0.5),
        'bn1_g': 1.0 + n(1, (F1,), 0.1), 'bn1_b': n(2, (F1,), 0.1),
        'bn1_m': n(3, (F1,), 0.1),
        'bn1_v': 1.0 + 0.5 * jax.random.uniform(ks[4], (F1,), dtype=jnp.float32),
        'w2': n(5, (F1,), 1.0 / float(F1) ** 0.5), 'b2': n(6, (1,), 0.1),
        'w4': n(7, (F1, KERN4), 1.0 / float(KERN4) ** 0.5),
        'bn4_g': 1.0 + n(8, (F1,), 0.1), 'bn4_b': n(9, (F1,), 0.1),
        'bn4_m': n(10, (F1,), 0.1),
        'bn4_v': 1.0 + 0.5 * jax.random.uniform(ks[11], (F1,), dtype=jnp.float32),
        'w5': n(12, (F1,), 1.0 / float(F1) ** 0.5), 'b5': n(13, (1,), 0.1),
        'w3': n(14, (F2, CHANS), 1.0 / float(CHANS) ** 0.5), 'b3': n(15, (F2,), 0.1),
        'w33': n(16, (F2, F2), 1.0 / float(F2) ** 0.5), 'b33': n(17, (F2,), 0.1),
        'bn3_g': 1.0 + n(18, (F2,), 0.1), 'bn3_b': n(19, (F2,), 0.1),
        'bn3_m': n(20, (F2,), 0.1),
        'bn3_v': 1.0 + 0.5 * jax.random.uniform(ks[21], (F2,), dtype=jnp.float32),
        'wl': n(22, (CLASS_NUM, F2 * T128), 1.0 / float(F2 * T128) ** 0.5),
        'bl': n(23, (CLASS_NUM,), 0.1),
    }


# ------------------------------- glue: weight folding -------------------------------
def _folded_temporal_matrix(w_eff, kern, shift):
    """(T, T8) matrix A with A[u, s] = mean_{r<8} w_eff[u - 8*s - r + shift]
    (zero outside [0, kern)), so that  pooled_conv = x @ A  for x of shape (*, T).
    `shift` is the left zero-padding of the original conv (128 / 64)."""
    u = jnp.arange(T)[:, None]
    s = jnp.arange(T8)[None, :]
    acc = jnp.zeros((T, T8), jnp.float32)
    for r in range(8):                       # AvgPool(1, 8) folded in
        k = u - 8 * s - r + shift
        valid = (k >= 0) & (k < kern)
        acc = acc + jnp.where(valid, w_eff[jnp.clip(k, 0, kern - 1)], 0.0)
    return acc / 8.0


# ------------------------------------- kernel ---------------------------------------
def _elu(x):
    return jnp.where(x > 0, x, jnp.exp(jnp.minimum(x, 0.0)) - 1.0)


def _fbtsa_kernel(x_ref, a_ref, brow_ref, wca_ref, wcb_ref, bv_ref,
                  p16_ref, wl0_ref, wl1_ref, ssum_ref, bl_ref, out_ref):
    # Temporal conv + BN + 1x1 conv + AvgPool(1,8), all folded into one bf16 matmul:
    #   (BB*64, T) @ (T, 2*T8)  ->  (BB*64, 384), f32 accumulation.
    y = jnp.dot(x_ref[...], a_ref[...], preferred_element_type=jnp.float32)
    y = _elu(y + brow_ref[...])                              # dropout == identity

    # Branch split (lane slices), cast to bf16 so the channel-mix matmuls are
    # single-pass MXU ops instead of multi-pass f32.
    y1 = y[:, :T8].astype(jnp.bfloat16)                      # branch 1 (BB*64, 192)
    y2 = y[:, T8:].astype(jnp.bfloat16)                      # branch 2 (BB*64, 192)

    # layer3: grouped (Chans,1) conv + 1x1 conv + BN, folded into block-diagonal
    # (BB*16, BB*64) bf16 matrices applied to each branch, plus an f32 bias column.
    v = (jnp.dot(wca_ref[...], y1, preferred_element_type=jnp.float32)
         + jnp.dot(wcb_ref[...], y2, preferred_element_type=jnp.float32)
         + bv_ref[...])                                      # (BB*16, 192) f32

    # AvgPool(1,16) as a bf16 matmul, then ELU (dropout == identity).
    feat = _elu(jnp.dot(v.astype(jnp.bfloat16), p16_ref[...],
                        preferred_element_type=jnp.float32))  # (BB*16, 12) f32

    # Fused Linear(192, 2): per-class weighted row-sums, then a group-sum matmul.
    rs0 = jnp.sum(feat * wl0_ref[...], axis=1, keepdims=True)        # (BB*16, 1)
    rs1 = jnp.sum(feat * wl1_ref[...], axis=1, keepdims=True)
    l0 = jnp.dot(ssum_ref[...], rs0, preferred_element_type=jnp.float32)  # (BB, 1)
    l1 = jnp.dot(ssum_ref[...], rs1, preferred_element_type=jnp.float32)
    col = lax.broadcasted_iota(jnp.int32, out_ref.shape, 1)
    out_ref[...] = jnp.where(col == 0, l0, l1) + bl_ref[...]


# ------------------------------------ wrapper ----------------------------------------
def fbtsa_forward(x, params):
    B = x.shape[0]
    xs = x[:, 0, :, :].astype(jnp.float32)                   # (B, CHANS, T)

    # batch blocking: BB samples per grid step (M = BB*64 matmul rows)
    BB = B if B <= 8 else 8
    bpad = pl.cdiv(B, BB) * BB
    if bpad != B:
        xs = jnp.pad(xs, ((0, bpad - B), (0, 0), (0, 0)))
    x_rows = xs.reshape(bpad * CHANS, T).astype(jnp.bfloat16)  # (bpad*64, 1536), bf16

    # ---- fold temporal conv + BN(eval, eps=0) + 1x1 conv (+bias) + AvgPool(1,8) ----
    a1 = params['bn1_g'] / jnp.sqrt(params['bn1_v'])
    a4 = params['bn4_g'] / jnp.sqrt(params['bn4_v'])
    w1eff = jnp.dot(params['w2'] * a1, params['w1'])          # (256,)
    w4eff = jnp.dot(params['w5'] * a4, params['w4'])          # (128,)
    A = jnp.concatenate(
        [_folded_temporal_matrix(w1eff, KERN1, 128),          # ZeroPad2d (128,127)
         _folded_temporal_matrix(w4eff, KERN4, 64)],          # ZeroPad2d (64,63)
        axis=1).astype(jnp.bfloat16)                          # (1536, 384)
    bias1 = jnp.dot(params['w2'], params['bn1_b'] - a1 * params['bn1_m']) + params['b2'][0]
    bias2 = jnp.dot(params['w5'], params['bn4_b'] - a4 * params['bn4_m']) + params['b5'][0]
    brow = jnp.concatenate([jnp.full((T8,), bias1, jnp.float32),
                            jnp.full((T8,), bias2, jnp.float32)])[None, :]  # (1, 384)

    # ---- fold layer3 grouped conv + 1x1 conv + BN into block-diagonal matrices ----
    a3 = params['bn3_g'] / jnp.sqrt(params['bn3_v'])
    w33s = a3[:, None] * params['w33']                        # diag(a3) @ w33
    wcomb_a = w33s[:, :F1] @ params['w3'][:F1]                # (16, 64)  branch-1 group
    wcomb_b = w33s[:, F1:] @ params['w3'][F1:]                # (16, 64)  branch-2 group
    bias_v = (w33s @ params['b3'] + a3 * params['b33']
              + params['bn3_b'] - a3 * params['bn3_m'])       # (16,)
    eye_bb = jnp.eye(BB, dtype=jnp.float32)
    wca = jnp.kron(eye_bb, wcomb_a).astype(jnp.bfloat16)      # (BB*16, BB*64) bf16
    wcb = jnp.kron(eye_bb, wcomb_b).astype(jnp.bfloat16)
    bv = jnp.tile(bias_v, BB)[:, None]                        # (BB*16, 1) f32

    # AvgPool(1,16) matrix (entries 1/16 are exact in bf16).
    p16 = (jnp.kron(jnp.eye(T128), jnp.ones((16, 1))) / 16.0).astype(jnp.bfloat16)  # (192, 12)

    # ---- fused final linear (flatten order is channel-major: f*12 + t) ----
    wl0 = jnp.tile(params['wl'][0].reshape(F2, T128), (BB, 1))  # (BB*16, 12) f32
    wl1 = jnp.tile(params['wl'][1].reshape(F2, T128), (BB, 1))
    ssum = jnp.kron(eye_bb, jnp.ones((1, F2), jnp.float32))     # (BB, BB*16)
    bl = params['bl'][None, :]                                  # (1, 2)

    const = lambda i: (0, 0)
    out = pl.pallas_call(
        _fbtsa_kernel,
        out_shape=jax.ShapeDtypeStruct((bpad, CLASS_NUM), jnp.float32),
        grid=(bpad // BB,),
        in_specs=[
            pl.BlockSpec((BB * CHANS, T), lambda i: (i, 0)),       # x block
            pl.BlockSpec((T, 2 * T8), const),                      # folded temporal A
            pl.BlockSpec((1, 2 * T8), const),                      # bias row
            pl.BlockSpec((BB * F2, BB * CHANS), const),            # WcombA (block-diag)
            pl.BlockSpec((BB * F2, BB * CHANS), const),            # WcombB (block-diag)
            pl.BlockSpec((BB * F2, 1), const),                     # layer3 bias column
            pl.BlockSpec((T8, T128), const),                       # AvgPool(1,16) matrix
            pl.BlockSpec((BB * F2, T128), const),                  # linear class-0 weights
            pl.BlockSpec((BB * F2, T128), const),                  # linear class-1 weights
            pl.BlockSpec((BB, BB * F2), const),                    # per-sample group sum
            pl.BlockSpec((1, CLASS_NUM), const),                   # linear bias
        ],
        out_specs=pl.BlockSpec((BB, CLASS_NUM), lambda i: (i, 0)),
        compiler_params=pltpu.CompilerParams(
            dimension_semantics=("parallel",)),
    )(x_rows, A, brow, wca, wcb, bv, p16, wl0, wl1, ssum, bl)
    return out[:B]


# --------------------------- pure-JAX reference (for check) ------------------------
def _reference_forward(x, p):
    dn = ('NCHW', 'OIHW', 'NCHW')
    prec = lax.Precision.HIGHEST

    def conv(inp, w, pad, groups=1, b=None):
        out = lax.conv_general_dilated(inp, w, (1, 1), pad, dimension_numbers=dn,
                                       feature_group_count=groups, precision=prec)
        if b is not None:
            out = out + b[None, :, None, None]
        return out

    def bn(v, g, b, m, var):
        return ((v - m[None, :, None, None]) / jnp.sqrt(var[None, :, None, None])
                * g[None, :, None, None] + b[None, :, None, None])

    def avgpool_w(v, k):
        B_, C_, H_, W_ = v.shape
        return v.reshape(B_, C_, H_, W_ // k, k).mean(-1)

    y1 = conv(x, p['w1'].reshape(F1, 1, 1, KERN1), ((0, 0), (128, 127)))
    y1 = bn(y1, p['bn1_g'], p['bn1_b'], p['bn1_m'], p['bn1_v'])
    y1 = conv(y1, p['w2'].reshape(1, F1, 1, 1), ((0, 0), (0, 0)), b=p['b2'])
    y1 = jax.nn.elu(avgpool_w(y1, 8))

    y2 = conv(x, p['w4'].reshape(F1, 1, 1, KERN4), ((0, 0), (64, 63)))
    y2 = bn(y2, p['bn4_g'], p['bn4_b'], p['bn4_m'], p['bn4_v'])
    y2 = conv(y2, p['w5'].reshape(1, F1, 1, 1), ((0, 0), (0, 0)), b=p['b5'])
    y2 = jax.nn.elu(avgpool_w(y2, 8))

    y = jnp.concatenate([y1, y2], axis=1)                         # (B, 2, 64, 192)
    y = conv(y, p['w3'].reshape(F2, 1, CHANS, 1), ((0, 0), (0, 0)), groups=2, b=p['b3'])
    y = conv(y, p['w33'].reshape(F2, F2, 1, 1), ((0, 0), (0, 0)), b=p['b33'])
    y = bn(y, p['bn3_g'], p['bn3_b'], p['bn3_m'], p['bn3_v'])
    y = jax.nn.elu(avgpool_w(y, 16))
    flat = y.reshape(y.shape[0], -1)
    return flat @ p['wl'].T + p['bl']


# -------------------------------------- main ----------------------------------------
if __name__ == "__main__":
    key = jax.random.PRNGKey(0)
    pkey, xkey = jax.random.split(key)
    params = init_params(pkey)
    x = jax.random.normal(xkey, (2, 1, CHANS, T), dtype=jnp.float32)

    fwd = jax.jit(fbtsa_forward)
    out = jax.block_until_ready(fwd(x, params))
    ref = jax.block_until_ready(_reference_forward(x, params))

    assert out.shape == (2, CLASS_NUM), out.shape
    err = float(jnp.max(jnp.abs(out - ref)))
    scale = float(jnp.max(jnp.abs(ref))) + 1e-6
    assert err <= 2e-2 * scale + 2e-2, f"mismatch: max abs err {err}, ref scale {scale}"
    print("KERNEL_OK")
</pallas_src>

<mosaic_0001>
module attributes {stable_mosaic.version = 11 : i64} {
  func.func @_fbtsa_kernel(%arg0: i32, %arg1: memref<128x1536xbf16, #tpu.memory_space<vmem>>, %arg2: memref<1536x384xbf16, #tpu.memory_space<vmem>>, %arg3: memref<1x384xf32, #tpu.memory_space<vmem>>, %arg4: memref<32x128xbf16, #tpu.memory_space<vmem>>, %arg5: memref<32x128xbf16, #tpu.memory_space<vmem>>, %arg6: memref<32x1xf32, #tpu.memory_space<vmem>>, %arg7: memref<192x12xbf16, #tpu.memory_space<vmem>>, %arg8: memref<32x12xf32, #tpu.memory_space<vmem>>, %arg9: memref<32x12xf32, #tpu.memory_space<vmem>>, %arg10: memref<2x32xf32, #tpu.memory_space<vmem>>, %arg11: memref<1x2xf32, #tpu.memory_space<vmem>>, %arg12: memref<2x2xf32, #tpu.memory_space<vmem>>) attributes {dimension_semantics = [#tpu.dimension_semantics<parallel>], iteration_bounds = array<i64: 1>, scalar_prefetch = 0 : i64, scratch_operands = 0 : i64, tpu.core_type = #tpu.core_type<tc>, window_params = [{transform_indices = @transform_0, window_bounds = array<i64: 128, 1536>}, {pipeline_mode = #tpu.pipeline_mode<synchronous>, transform_indices = @transform_1, window_bounds = array<i64: 1536, 384>}, {pipeline_mode = #tpu.pipeline_mode<synchronous>, transform_indices = @transform_2, window_bounds = array<i64: 1, 384>}, {pipeline_mode = #tpu.pipeline_mode<synchronous>, transform_indices = @transform_3, window_bounds = array<i64: 32, 128>}, {pipeline_mode = #tpu.pipeline_mode<synchronous>, transform_indices = @transform_4, window_bounds = array<i64: 32, 128>}, {pipeline_mode = #tpu.pipeline_mode<synchronous>, transform_indices = @transform_5, window_bounds = array<i64: 32, 1>}, {pipeline_mode = #tpu.pipeline_mode<synchronous>, transform_indices = @transform_6, window_bounds = array<i64: 192, 12>}, {pipeline_mode = #tpu.pipeline_mode<synchronous>, transform_indices = @transform_7, window_bounds = array<i64: 32, 12>}, {pipeline_mode = #tpu.pipeline_mode<synchronous>, transform_indices = @transform_8, window_bounds = array<i64: 32, 12>}, {pipeline_mode = #tpu.pipeline_mode<synchronous>, transform_indices = @transform_9, window_bounds = array<i64: 2, 32>}, {pipeline_mode = #tpu.pipeline_mode<synchronous>, transform_indices = @transform_10, window_bounds = array<i64: 1, 2>}, {transform_indices = @transform_11, window_bounds = array<i64: 2, 2>}]} {
    %c0 = arith.constant 0 : index
    %c0_0 = arith.constant 0 : index
    %0 = vector.load %arg1[%c0, %c0_0] : memref<128x1536xbf16, #tpu.memory_space<vmem>>, vector<128x1536xbf16>
    %c0_1 = arith.constant 0 : index
    %c0_2 = arith.constant 0 : index
    %1 = vector.load %arg2[%c0_1, %c0_2] : memref<1536x384xbf16, #tpu.memory_space<vmem>>, vector<1536x384xbf16>
    %cst = arith.constant dense<0.000000e+00> : vector<128x384xf32>
    %2 = tpu.matmul %0, %1, %cst {dimension_numbers = #tpu.dot_dimension_numbers<[1], [0], [0], [1], [0, 0, 1, 1], [], []>} : vector<128x1536xbf16>, vector<1536x384xbf16>, vector<128x384xf32> -> vector<128x384xf32>
    %c0_3 = arith.constant 0 : index
    %c0_4 = arith.constant 0 : index
    %3 = vector.load %arg3[%c0_3, %c0_4] : memref<1x384xf32, #tpu.memory_space<vmem>>, vector<1x384xf32>
    %4 = vector.broadcast %3 : vector<1x384xf32> to vector<128x384xf32>
    %5 = arith.addf %2, %4 : vector<128x384xf32>
    %cst_5 = arith.constant 0.000000e+00 : f32
    %6 = vector.broadcast %cst_5 : f32 to vector<128x384xf32>
    %7 = arith.cmpf ogt, %5, %6 : vector<128x384xf32>
    %cst_6 = arith.constant 0.000000e+00 : f32
    %8 = vector.broadcast %cst_6 : f32 to vector<128x384xf32>
    %9 = arith.minimumf %5, %8 : vector<128x384xf32>
    %10 = math.exp %9 : vector<128x384xf32>
    %cst_7 = arith.constant 1.000000e+00 : f32
    %11 = vector.broadcast %cst_7 : f32 to vector<128x384xf32>
    %12 = arith.subf %10, %11 : vector<128x384xf32>
    %13 = arith.select %7, %5, %12 : vector<128x384xi1>, vector<128x384xf32>
    %14 = vector.extract_strided_slice %13 {offsets = [0, 0], sizes = [128, 192], strides = [1, 1]} : vector<128x384xf32> to vector<128x192xf32>
    %15 = arith.truncf %14 : vector<128x192xf32> to vector<128x192xbf16>
    %16 = vector.extract_strided_slice %13 {offsets = [0, 192], sizes = [128, 192], strides = [1, 1]} : vector<128x384xf32> to vector<128x192xf32>
    %17 = arith.truncf %16 : vector<128x192xf32> to vector<128x192xbf16>
    %c0_8 = arith.constant 0 : index
    %c0_9 = arith.constant 0 : index
    %18 = vector.load %arg4[%c0_8, %c0_9] : memref<32x128xbf16, #tpu.memory_space<vmem>>, vector<32x128xbf16>
    %cst_10 = arith.constant dense<0.000000e+00> : vector<32x192xf32>
    %19 = tpu.matmul %18, %15, %cst_10 {dimension_numbers = #tpu.dot_dimension_numbers<[1], [0], [0], [1], [0, 0, 1, 1], [], []>} : vector<32x128xbf16>, vector<128x192xbf16>, vector<32x192xf32> -> vector<32x192xf32>
    %c0_11 = arith.constant 0 : index
    %c0_12 = arith.constant 0 : index
    %20 = vector.load %arg5[%c0_11, %c0_12] : memref<32x128xbf16, #tpu.memory_space<vmem>>, vector<32x128xbf16>
    %cst_13 = arith.constant dense<0.000000e+00> : vector<32x192xf32>
    %21 = tpu.matmul %20, %17, %cst_13 {dimension_numbers = #tpu.dot_dimension_numbers<[1], [0], [0], [1], [0, 0, 1, 1], [], []>} : vector<32x128xbf16>, vector<128x192xbf16>, vector<32x192xf32> -> vector<32x192xf32>
    %22 = arith.addf %19, %21 : vector<32x192xf32>
    %c0_14 = arith.constant 0 : index
    %c0_15 = arith.constant 0 : index
    %23 = vector.load %arg6[%c0_14, %c0_15] : memref<32x1xf32, #tpu.memory_space<vmem>>, vector<32x1xf32>
    %24 = vector.broadcast %23 : vector<32x1xf32> to vector<32x192xf32>
    %25 = arith.addf %22, %24 : vector<32x192xf32>
    %26 = arith.truncf %25 : vector<32x192xf32> to vector<32x192xbf16>
    %c0_16 = arith.constant 0 : index
    %c0_17 = arith.constant 0 : index
    %27 = vector.load %arg7[%c0_16, %c0_17] : memref<192x12xbf16, #tpu.memory_space<vmem>>, vector<192x12xbf16>
    %cst_18 = arith.constant dense<0.000000e+00> : vector<32x12xf32>
    %28 = tpu.matmul %26, %27, %cst_18 {dimension_numbers = #tpu.dot_dimension_numbers<[1], [0], [0], [1], [0, 0, 1, 1], [], []>} : vector<32x192xbf16>, vector<192x12xbf16>, vector<32x12xf32> -> vector<32x12xf32>
    %cst_19 = arith.constant 0.000000e+00 : f32
    %29 = vector.broadcast %cst_19 : f32 to vector<32x12xf32>
    %30 = arith.cmpf ogt, %28, %29 : vector<32x12xf32>
    %cst_20 = arith.constant 0.000000e+00 : f32
    %31 = vector.broadcast %cst_20 : f32 to vector<32x12xf32>
    %32 = arith.minimumf %28, %31 : vector<32x12xf32>
    %33 = math.exp %32 : vector<32x12xf32>
    %cst_21 = arith.constant 1.000000e+00 : f32
    %34 = vector.broadcast %cst_21 : f32 to vector<32x12xf32>
    %35 = arith.subf %33, %34 : vector<32x12xf32>
    %36 = arith.select %30, %28, %35 : vector<32x12xi1>, vector<32x12xf32>
    %c0_22 = arith.constant 0 : index
    %c0_23 = arith.constant 0 : index
    %37 = vector.load %arg8[%c0_22, %c0_23] : memref<32x12xf32, #tpu.memory_space<vmem>>, vector<32x12xf32>
    %38 = arith.mulf %36, %37 : vector<32x12xf32>
    %cst_24 = arith.constant dense<0.000000e+00> : vector<32xf32>
    %39 = vector.multi_reduction <add>, %38, %cst_24 [1] : vector<32x12xf32> to vector<32xf32>
    %40 = vector.shape_cast %39 : vector<32xf32> to vector<32x1xf32>
    %c0_25 = arith.constant 0 : index
    %c0_26 = arith.constant 0 : index
    %41 = vector.load %arg9[%c0_25, %c0_26] : memref<32x12xf32, #tpu.memory_space<vmem>>, vector<32x12xf32>
    %42 = arith.mulf %36, %41 : vector<32x12xf32>
    %cst_27 = arith.constant dense<0.000000e+00> : vector<32xf32>
    %43 = vector.multi_reduction <add>, %42, %cst_27 [1] : vector<32x12xf32> to vector<32xf32>
    %44 = vector.shape_cast %43 : vector<32xf32> to vector<32x1xf32>
    %c0_28 = arith.constant 0 : index
    %c0_29 = arith.constant 0 : index
    %45 = vector.load %arg10[%c0_28, %c0_29] : memref<2x32xf32, #tpu.memory_space<vmem>>, vector<2x32xf32>
    %cst_30 = arith.constant dense<0.000000e+00> : vector<2x1xf32>
    %46 = tpu.matmul %45, %40, %cst_30 {dimension_numbers = #tpu.dot_dimension_numbers<[1], [0], [0], [1], [0, 0, 1, 1], [], []>} : vector<2x32xf32>, vector<32x1xf32>, vector<2x1xf32> -> vector<2x1xf32>
    %c0_31 = arith.constant 0 : index
    %c0_32 = arith.constant 0 : index
    %47 = vector.load %arg10[%c0_31, %c0_32] : memref<2x32xf32, #tpu.memory_space<vmem>>, vector<2x32xf32>
    %cst_33 = arith.constant dense<0.000000e+00> : vector<2x1xf32>
    %48 = tpu.matmul %47, %44, %cst_33 {dimension_numbers = #tpu.dot_dimension_numbers<[1], [0], [0], [1], [0, 0, 1, 1], [], []>} : vector<2x32xf32>, vector<32x1xf32>, vector<2x1xf32> -> vector<2x1xf32>
    %49 = tpu.iota {dimensions = array<i32: 1>} : vector<2x2xi32>
    %c0_i32 = arith.constant 0 : i32
    %50 = vector.broadcast %c0_i32 : i32 to vector<2x2xi32>
    %51 = arith.cmpi eq, %49, %50 : vector<2x2xi32>
    %52 = vector.shape_cast %46 : vector<2x1xf32> to vector<2x1xf32>
    %53 = vector.broadcast %52 : vector<2x1xf32> to vector<2x2xf32>
    %54 = vector.shape_cast %48 : vector<2x1xf32> to vector<2x1xf32>
    %55 = vector.broadcast %54 : vector<2x1xf32> to vector<2x2xf32>
    %56 = arith.select %51, %53, %55 : vector<2x2xi1>, vector<2x2xf32>
    %c0_34 = arith.constant 0 : index
    %c0_35 = arith.constant 0 : index
    %57 = vector.load %arg11[%c0_34, %c0_35] : memref<1x2xf32, #tpu.memory_space<vmem>>, vector<1x2xf32>
    %58 = vector.broadcast %57 : vector<1x2xf32> to vector<2x2xf32>
    %59 = arith.addf %56, %58 : vector<2x2xf32>
    %c0_36 = arith.constant 0 : index
    %c0_37 = arith.constant 0 : index
    %60 = vector.load %arg12[%c0_36, %c0_37] : memref<2x2xf32, #tpu.memory_space<vmem>>, vector<2x2xf32>
    tpu.vector_store %arg12[%c0_36, %c0_37], %59 {strides = array<i32>} : memref<2x2xf32, #tpu.memory_space<vmem>>, vector<2x2xf32>,
    return
  }
  func.func @transform_0(%arg0: i32) -> (i32, i32) {
    %c0_i32 = arith.constant 0 : i32
    %c0_i32_0 = arith.constant 0 : i32
    return %arg0, %c0_i32 : i32, i32
  }
  func.func @transform_1(%arg0: i32) -> (i32, i32) {
    %c0_i32 = arith.constant 0 : i32
    %c0_i32_0 = arith.constant 0 : i32
    %c0_i32_1 = arith.constant 0 : i32
    return %c0_i32, %c0_i32_0 : i32, i32
  }
  func.func @transform_2(%arg0: i32) -> (i32, i32) {
    %c0_i32 = arith.constant 0 : i32
    %c0_i32_0 = arith.constant 0 : i32
    %c0_i32_1 = arith.constant 0 : i32
    return %c0_i32, %c0_i32_0 : i32, i32
  }
  func.func @transform_3(%arg0: i32) -> (i32, i32) {
    %c0_i32 = arith.constant 0 : i32
    %c0_i32_0 = arith.constant 0 : i32
    %c0_i32_1 = arith.constant 0 : i32
    return %c0_i32, %c0_i32_0 : i32, i32
  }
  func.func @transform_4(%arg0: i32) -> (i32, i32) {
    %c0_i32 = arith.constant 0 : i32
    %c0_i32_0 = arith.constant 0 : i32
    %c0_i32_1 = arith.constant 0 : i32
    return %c0_i32, %c0_i32_0 : i32, i32
  }
  func.func @transform_5(%arg0: i32) -> (i32, i32) {
    %c0_i32 = arith.constant 0 : i32
    %c0_i32_0 = arith.constant 0 : i32
    %c0_i32_1 = arith.constant 0 : i32
    return %c0_i32, %c0_i32_0 : i32, i32
  }
  func.func @transform_6(%arg0: i32) -> (i32, i32) {
    %c0_i32 = arith.constant 0 : i32
    %c0_i32_0 = arith.constant 0 : i32
    %c0_i32_1 = arith.constant 0 : i32
    return %c0_i32, %c0_i32_0 : i32, i32
  }
  func.func @transform_7(%arg0: i32) -> (i32, i32) {
    %c0_i32 = arith.constant 0 : i32
    %c0_i32_0 = arith.constant 0 : i32
    %c0_i32_1 = arith.constant 0 : i32
    return %c0_i32, %c0_i32_0 : i32, i32
  }
  func.func @transform_8(%arg0: i32) -> (i32, i32) {
    %c0_i32 = arith.constant 0 : i32
    %c0_i32_0 = arith.constant 0 : i32
    %c0_i32_1 = arith.constant 0 : i32
    return %c0_i32, %c0_i32_0 : i32, i32
  }
  func.func @transform_9(%arg0: i32) -> (i32, i32) {
    %c0_i32 = arith.constant 0 : i32
    %c0_i32_0 = arith.constant 0 : i32
    %c0_i32_1 = arith.constant 0 : i32
    return %c0_i32, %c0_i32_0 : i32, i32
  }
  func.func @transform_10(%arg0: i32) -> (i32, i32) {
    %c0_i32 = arith.constant 0 : i32
    %c0_i32_0 = arith.constant 0 : i32
    %c0_i32_1 = arith.constant 0 : i32
    return %c0_i32, %c0_i32_0 : i32, i32
  }
  func.func @transform_11(%arg0: i32) -> (i32, i32) {
    %c0_i32 = arith.constant 0 : i32
    %c0_i32_0 = arith.constant 0 : i32
    return %arg0, %c0_i32 : i32, i32
  }
}

</mosaic_0001>

<llo_original>
// kernel: tile.16
$region0: #{tile.16}
  #allocation0 [shape = 's32[1]{0}', space=sflag, size = 0x4, scoped, tag = 'scoped memory for tile.16']
  %s0 = inlined_call_operand.vmem [shape: f32[16], index: 0, kind: input, shape index: {}]
  %s1 = inlined_call_operand.vmem [shape: f32[2,16], index: 1, kind: output, shape index: {}]
  // Predicated region
  $region2: #{tile.16} parent=0 // pred_check
    _
  $region3: #{tile.16} parent=0 // pred_check_branch
    %3 = sbr.rel (0) target = $region5
  $region4: #{tile.16} parent=0 // pred_region
    _
  $region5: #{tile.16} parent=0 // pred_fallthru
    _
  %v4 = vld [vmem:[%s0] ss:$0 sm:$0xff]
  %5 = vst [vmem:[%s1] sm:$0x3] %v4

// kernel: tile.0
$region0: #{tile.0}
  %s0 = inlined_call_operand.vmem [shape: f32[2,16], index: 0, kind: input, shape index: {}]
  %s1 = inlined_call_operand.vmem [shape: f32[32,1], index: 1, kind: output, shape index: {}]
  $region1: #{tile.0} parent=0
    #allocation0 [shape = 'u8[4096]{0}', space=vmem, size = 0x1000, scoped, tag = 'scoped mem for input reshape']
    %s3 = sshllo.u32 0, 2
    %v4 = vld [vmem:[%s0] sm:%s3]
    %5 = vst [vmem:[#allocation0] sm:%s3] %v4
    %v6 = vld [vmem:[#allocation0] sm:$0x3]
    %vm7 = vcmask 7168
    %8 = vst.msk [vmem:[%s1] ss:$16 sm:$0x3] %vm7, %v6
    %v9 = vld [vmem:[#allocation0] sm:$0x3]
    %10 = vrot.lane.b32.xlu0 %v9, 127
    %v11 = vpop.permute.xlu0 %10
    %vm12 = vcmask 7168
    %s13 = scalar_lea.vmem %s1, 1
    %14 = vst.msk [vmem:[%s13] ss:$16 sm:$0x3] %vm12, %v11
    %v15 = vld [vmem:[#allocation0] sm:$0x3]
    %16 = vrot.lane.b32.xlu0 %v15, 126
    %v17 = vpop.permute.xlu0 %16
    %vm18 = vcmask 7168
    %s19 = scalar_lea.vmem %s1, 2
    %20 = vst.msk [vmem:[%s19] ss:$16 sm:$0x3] %vm18, %v17
    %v21 = vld [vmem:[#allocation0] sm:$0x3]
    %22 = vrot.lane.b32.xlu0 %v21, 125
    %v23 = vpop.permute.xlu0 %22
    %vm24 = vcmask 7168
    %s25 = scalar_lea.vmem %s1, 3
    %26 = vst.msk [vmem:[%s25] ss:$16 sm:$0x3] %vm24, %v23
    %v27 = vld [vmem:[#allocation0] sm:$0x3]
    %28 = vrot.lane.b32.xlu0 %v27, 124
    %v29 = vpop.permute.xlu0 %28
    %vm30 = vcmask 7168
    %s31 = scalar_lea.vmem %s1, 4
    %32 = vst.msk [vmem:[%s31] ss:$16 sm:$0x3] %vm30, %v29
    %v33 = vld [vmem:[#allocation0] sm:$0x3]
    %34 = vrot.lane.b32.xlu0 %v33, 123
    %v35 = vpop.permute.xlu0 %34
    %vm36 = vcmask 7168
    %s37 = scalar_lea.vmem %s1, 5
    %38 = vst.msk [vmem:[%s37] ss:$16 sm:$0x3] %vm36, %v35
    %v39 = vld [vmem:[#allocation0] sm:$0x3]
    %40 = vrot.lane.b32.xlu0 %v39, 122
    %v41 = vpop.permute.xlu0 %40
    %vm42 = vcmask 7168
    %s43 = scalar_lea.vmem %s1, 6
    %44 = vst.msk [vmem:[%s43] ss:$16 sm:$0x3] %vm42, %v41
    %v45 = vld [vmem:[#allocation0] sm:$0x3]
    %46 = vrot.lane.b32.xlu0 %v45, 121
    %v47 = vpop.permute.xlu0 %46
    %vm48 = vcmask 7168
    %s49 = scalar_lea.vmem %s1, 7
    %50 = vst.msk [vmem:[%s49] ss:$16 sm:$0x3] %vm48, %v47
    %v51 = vld [vmem:[#allocation0] sm:$0x3]
    %52 = vrot.lane.b32.xlu0 %v51, 120
    %v53 = vpop.permute.xlu0 %52
    %vm54 = vcmask 7168
    %s55 = scalar_lea.vmem %s1, 8
    %56 = vst.msk [vmem:[%s55] ss:$16 sm:$0x3] %vm54, %v53
    %v57 = vld [vmem:[#allocation0] sm:$0x3]
    %58 = vrot.lane.b32.xlu0 %v57, 119
    %v59 = vpop.permute.xlu0 %58
    %vm60 = vcmask 7168
    %s61 = scalar_lea.vmem %s1, 9
    %62 = vst.msk [vmem:[%s61] ss:$16 sm:$0x3] %vm60, %v59
    %v63 = vld [vmem:[#allocation0] sm:$0x3]
    %64 = vrot.lane.b32.xlu0 %v63, 118
    %v65 = vpop.permute.xlu0 %64
    %vm66 = vcmask 7168
    %s67 = scalar_lea.vmem %s1, 10
    %68 = vst.msk [vmem:[%s67] ss:$16 sm:$0x3] %vm66, %v65
    %v69 = vld [vmem:[#allocation0] sm:$0x3]
    %70 = vrot.lane.b32.xlu0 %v69, 117
    %v71 = vpop.permute.xlu0 %70
    %vm72 = vcmask 7168
    %s73 = scalar_lea.vmem %s1, 11
    %74 = vst.msk [vmem:[%s73] ss:$16 sm:$0x3] %vm72, %v71
    %v75 = vld [vmem:[#allocation0] sm:$0x3]
    %76 = vrot.lane.b32.xlu0 %v75, 116
    %v77 = vpop.permute.xlu0 %76
    %vm78 = vcmask 7168
    %s79 = scalar_lea.vmem %s1, 12
    %80 = vst.msk [vmem:[%s79] ss:$16 sm:$0x3] %vm78, %v77
    %v81 = vld [vmem:[#allocation0] sm:$0x3]
    %82 = vrot.lane.b32.xlu0 %v81, 115
    %v83 = vpop.permute.xlu0 %82
    %vm84 = vcmask 7168
    %s85 = scalar_lea.vmem %s1, 13
    %86 = vst.msk [vmem:[%s85] ss:$16 sm:$0x3] %vm84, %v83
    %v87 = vld [vmem:[#allocation0] sm:$0x3]
    %88 = vrot.lane.b32.xlu0 %v87, 114
    %v89 = vpop.permute.xlu0 %88
    %vm90 = vcmask 7168
    %s91 = scalar_lea.vmem %s1, 14
    %92 = vst.msk [vmem:[%s91] ss:$16 sm:$0x3] %vm90, %v89
    %v93 = vld [vmem:[#allocation0] sm:$0x3]
    %94 = vrot.lane.b32.xlu0 %v93, 113
    %v95 = vpop.permute.xlu0 %94
    %vm96 = vcmask 7168
    %s97 = scalar_lea.vmem %s1, 15
    %98 = vst.msk [vmem:[%s97] ss:$16 sm:$0x3] %vm96, %v95

// kernel: fbtsa_forward.1
$region0: #{fbtsa_forward.1}
  #allocation0 [shape = 'u32[]', space=smem, size = 0x4, offset = 0x4, fixed_abs, tag = 'smem constant byte address 0x4 - core index']
  #allocation1 [shape = 'u32[144,128]{1,0:T(1,128)}', space=vmem, size = 0x12000, scoped, tag = 'internal scratch']
  %s0 = inlined_call_operand.vmem [shape: bf16[128,1536], index: 0, kind: input, shape index: {}]
  %s1 = inlined_call_operand.vmem [shape: bf16[1536,384], index: 1, kind: input, shape index: {}]
  %s2 = inlined_call_operand.vmem [shape: f32[1,384], index: 2, kind: input, shape index: {}]
  %s3 = inlined_call_operand.vmem [shape: bf16[32,128], index: 3, kind: input, shape index: {}]
  %s4 = inlined_call_operand.vmem [shape: bf16[32,128], index: 4, kind: input, shape index: {}]
  %s5 = inlined_call_operand.vmem [shape: f32[32,1], index: 5, kind: input, shape index: {}]
  %s6 = inlined_call_operand.vmem [shape: bf16[192,12], index: 6, kind: input, shape index: {}]
  %s7 = inlined_call_operand.vmem [shape: f32[32,12], index: 7, kind: input, shape index: {}]
  %s8 = inlined_call_operand.vmem [shape: f32[32,12], index: 8, kind: input, shape index: {}]
  %s9 = inlined_call_operand.vmem [shape: f32[2,32], index: 9, kind: input, shape index: {}]
  %s10 = inlined_call_operand.vmem [shape: f32[1,2], index: 10, kind: input, shape index: {}]
  %s11 = inlined_call_operand.hbm [shape: f32[2,2], index: 11, kind: output, shape index: {}]
  %s12 = sld [smem:[#allocation0]]
  $region54: #{fbtsa_forward.1} parent=0
    _
  %s14 = ssub.s32 1, %s12
  %s15 = scalar_select 0, %s14, %s12
  $region1: #{fbtsa_forward.1} parent=0
    #allocation2 [shape = 'u8[1024]{0}', space=vmem, size = 0x400, scoped, tag = 'output window, operand 0, single buffered']
    #allocation3 [shape = 's32[1]{0}', space=sflag, size = 0x4, scoped, tag = 'scoped memory for fbtsa_forward.1']
    %16 = vsyncpa [#allocation3], 0
    // Predicated region
    $region2: #{fbtsa_forward.1} parent=1 // pred_check
      _
    $region3: #{fbtsa_forward.1} parent=1 // pred_check_branch
      %18 = sbr.rel (0) target = $region5
    $region4: #{fbtsa_forward.1} parent=1 // pred_region
      _
    $region5: #{fbtsa_forward.1} parent=1 // pred_fallthru
      _
    // Predicated region
    $region6: #{fbtsa_forward.1} parent=1 // pred_check
      _
    $region7: #{fbtsa_forward.1} parent=1 // pred_check_branch
      %20 = sbr.rel (0) target = $region9
    $region8: #{fbtsa_forward.1} parent=1 // pred_region
      _
    $region9: #{fbtsa_forward.1} parent=1 // pred_fallthru
      _
    // Predicated region
    $region10: #{fbtsa_forward.1} parent=1 // pred_check
      _
    $region11: #{fbtsa_forward.1} parent=1 // pred_check_branch
      %22 = sbr.rel (0) target = $region13
    $region12: #{fbtsa_forward.1} parent=1 // pred_region
      _
    $region13: #{fbtsa_forward.1} parent=1 // pred_fallthru
      _
    // Predicated region
    $region14: #{fbtsa_forward.1} parent=1 // pred_check
      _
    $region15: #{fbtsa_forward.1} parent=1 // pred_check_branch
      %24 = sbr.rel (0) target = $region17
    $region16: #{fbtsa_forward.1} parent=1 // pred_region
      _
    $region17: #{fbtsa_forward.1} parent=1 // pred_fallthru
      _
    // Predicated region
    $region18: #{fbtsa_forward.1} parent=1 // pred_check
      _
    $region19: #{fbtsa_forward.1} parent=1 // pred_check_branch
      %26 = sbr.rel (0) target = $region21
    $region20: #{fbtsa_forward.1} parent=1 // pred_region
      _
    $region21: #{fbtsa_forward.1} parent=1 // pred_fallthru
      _
    // Predicated region
    $region22: #{fbtsa_forward.1} parent=1 // pred_check
      _
    $region23: #{fbtsa_forward.1} parent=1 // pred_check_branch
      %28 = sbr.rel (0) target = $region25
    $region24: #{fbtsa_forward.1} parent=1 // pred_region
      _
    $region25: #{fbtsa_forward.1} parent=1 // pred_fallthru
      _
    // Predicated region
    $region26: #{fbtsa_forward.1} parent=1 // pred_check
      _
    $region27: #{fbtsa_forward.1} parent=1 // pred_check_branch
      %30 = sbr.rel (0) target = $region29
    $region28: #{fbtsa_forward.1} parent=1 // pred_region
      _
    $region29: #{fbtsa_forward.1} parent=1 // pred_fallthru
      _
    // Predicated region
    $region30: #{fbtsa_forward.1} parent=1 // pred_check
      _
    $region31: #{fbtsa_forward.1} parent=1 // pred_check_branch
      %32 = sbr.rel (0) target = $region33
    $region32: #{fbtsa_forward.1} parent=1 // pred_region
      _
    $region33: #{fbtsa_forward.1} parent=1 // pred_fallthru
      _
    // Predicated region
    $region34: #{fbtsa_forward.1} parent=1 // pred_check
      _
    $region35: #{fbtsa_forward.1} parent=1 // pred_check_branch
      %34 = sbr.rel (0) target = $region37
    $region36: #{fbtsa_forward.1} parent=1 // pred_region
      _
    $region37: #{fbtsa_forward.1} parent=1 // pred_fallthru
      _
    // Predicated region
    $region38: #{fbtsa_forward.1} parent=1 // pred_check
      _
    $region39: #{fbtsa_forward.1} parent=1 // pred_check_branch
      %36 = sbr.rel (0) target = $region41
    $region40: #{fbtsa_forward.1} parent=1 // pred_region
      _
    $region41: #{fbtsa_forward.1} parent=1 // pred_fallthru
      _
    // Predicated region
    $region42: #{fbtsa_forward.1} parent=1 // pred_check
      _
    $region43: #{fbtsa_forward.1} parent=1 // pred_check_branch
      %38 = sbr.rel (0) target = $region45
    $region44: #{fbtsa_forward.1} parent=1 // pred_region
      _
    $region45: #{fbtsa_forward.1} parent=1 // pred_fallthru
      _
    %v40 = vld [vmem:[%s0] sm:$0xff]
    %v41 = vld [vmem:[%s0 + $0x8] sm:$0xff]
    %v42 = vld [vmem:[%s0 + $0x10] sm:$0xff]
    %v43 = vld [vmem:[%s0 + $0x18] sm:$0xff]
    %v44 = vld [vmem:[%s0 + $0x20] sm:$0xff]
    %v45 = vld [vmem:[%s0 + $0x28] sm:$0xff]
    %v46 = vld [vmem:[%s0 + $0x30] sm:$0xff]
    %v47 = vld [vmem:[%s0 + $0x38] sm:$0xff]
    %v48 = vld [vmem:[%s0 + $0x40] sm:$0xff]
    %v49 = vld [vmem:[%s0 + $0x48] sm:$0xff]
    %v50 = vld [vmem:[%s0 + $0x50] sm:$0xff]
    %v51 = vld [vmem:[%s0 + $0x58] sm:$0xff]
    %v52 = vld [vmem:[%s0 + $0x60] sm:$0xff]
    %v53 = vld [vmem:[%s0 + $0x68] sm:$0xff]
    %v54 = vld [vmem:[%s0 + $0x70] sm:$0xff]
    %v55 = vld [vmem:[%s0 + $0x78] sm:$0xff]
    %v56 = vld [vmem:[%s0 + $0x80] sm:$0xff]
    %v57 = vld [vmem:[%s0 + $0x88] sm:$0xff]
    %v58 = vld [vmem:[%s0 + $0x90] sm:$0xff]
    %v59 = vld [vmem:[%s0 + $0x98] sm:$0xff]
    %v60 = vld [vmem:[%s0 + $0xa0] sm:$0xff]
    %v61 = vld [vmem:[%s0 + $0xa8] sm:$0xff]
    %v62 = vld [vmem:[%s0 + $0xb0] sm:$0xff]
    %v63 = vld [vmem:[%s0 + $0xb8] sm:$0xff]
    %v64 = vld [vmem:[%s0 + $0xc0] sm:$0xff]
    %v65 = vld [vmem:[%s0 + $0xc8] sm:$0xff]
    %v66 = vld [vmem:[%s0 + $0xd0] sm:$0xff]
    %v67 = vld [vmem:[%s0 + $0xd8] sm:$0xff]
    %v68 = vld [vmem:[%s0 + $0xe0] sm:$0xff]
    %v69 = vld [vmem:[%s0 + $0xe8] sm:$0xff]
    %v70 = vld [vmem:[%s0 + $0xf0] sm:$0xff]
    %v71 = vld [vmem:[%s0 + $0xf8] sm:$0xff]
    %v72 = vld [vmem:[%s0 + $0x100] sm:$0xff]
    %v73 = vld [vmem:[%s0 + $0x108] sm:$0xff]
    %v74 = vld [vmem:[%s0 + $0x110] sm:$0xff]
    %v75 = vld [vmem:[%s0 + $0x118] sm:$0xff]
    %v76 = vld [vmem:[%s0 + $0x120] sm:$0xff]
    %v77 = vld [vmem:[%s0 + $0x128] sm:$0xff]
    %v78 = vld [vmem:[%s0 + $0x130] sm:$0xff]
    %v79 = vld [vmem:[%s0 + $0x138] sm:$0xff]
    %v80 = vld [vmem:[%s0 + $0x140] sm:$0xff]
    %v81 = vld [vmem:[%s0 + $0x148] sm:$0xff]
    %v82 = vld [vmem:[%s0 + $0x150] sm:$0xff]
    %v83 = vld [vmem:[%s0 + $0x158] sm:$0xff]
    %v84 = vld [vmem:[%s0 + $0x160] sm:$0xff]
    %v85 = vld [vmem:[%s0 + $0x168] sm:$0xff]
    %v86 = vld [vmem:[%s0 + $0x170] sm:$0xff]
    %v87 = vld [vmem:[%s0 + $0x178] sm:$0xff]
    %v88 = vld [vmem:[%s0 + $0x180] sm:$0xff]
    %v89 = vld [vmem:[%s0 + $0x188] sm:$0xff]
    %v90 = vld [vmem:[%s0 + $0x190] sm:$0xff]
    %v91 = vld [vmem:[%s0 + $0x198] sm:$0xff]
    %v92 = vld [vmem:[%s0 + $0x1a0] sm:$0xff]
    %v93 = vld [vmem:[%s0 + $0x1a8] sm:$0xff]
    %v94 = vld [vmem:[%s0 + $0x1b0] sm:$0xff]
    %v95 = vld [vmem:[%s0 + $0x1b8] sm:$0xff]
    %v96 = vld [vmem:[%s0 + $0x1c0] sm:$0xff]
    %v97 = vld [vmem:[%s0 + $0x1c8] sm:$0xff]
    %v98 = vld [vmem:[%s0 + $0x1d0] sm:$0xff]
    %v99 = vld [vmem:[%s0 + $0x1d8] sm:$0xff]
    %v100 = vld [vmem:[%s0 + $0x1e0] sm:$0xff]
    %v101 = vld [vmem:[%s0 + $0x1e8] sm:$0xff]
    %v102 = vld [vmem:[%s0 + $0x1f0] sm:$0xff]
    %v103 = vld [vmem:[%s0 + $0x1f8] sm:$0xff]
    %v104 = vld [vmem:[%s0 + $0x200] sm:$0xff]
    %v105 = vld [vmem:[%s0 + $0x208] sm:$0xff]
    %v106 = vld [vmem:[%s0 + $0x210] sm:$0xff]
    %v107 = vld [vmem:[%s0 + $0x218] sm:$0xff]
    %v108 = vld [vmem:[%s0 + $0x220] sm:$0xff]
    %v109 = vld [vmem:[%s0 + $0x228] sm:$0xff]
    %v110 = vld [vmem:[%s0 + $0x230] sm:$0xff]
    %v111 = vld [vmem:[%s0 + $0x238] sm:$0xff]
    %v112 = vld [vmem:[%s0 + $0x240] sm:$0xff]
    %v113 = vld [vmem:[%s0 + $0x248] sm:$0xff]
    %v114 = vld [vmem:[%s0 + $0x250] sm:$0xff]
    %v115 = vld [vmem:[%s0 + $0x258] sm:$0xff]
    %v116 = vld [vmem:[%s0 + $0x260] sm:$0xff]
    %v117 = vld [vmem:[%s0 + $0x268] sm:$0xff]
    %v118 = vld [vmem:[%s0 + $0x270] sm:$0xff]
    %v119 = vld [vmem:[%s0 + $0x278] sm:$0xff]
    %v120 = vld [vmem:[%s0 + $0x280] sm:$0xff]
    %v121 = vld [vmem:[%s0 + $0x288] sm:$0xff]
    %v122 = vld [vmem:[%s0 + $0x290] sm:$0xff]
    %v123 = vld [vmem:[%s0 + $0x298] sm:$0xff]
    %v124 = vld [vmem:[%s0 + $0x2a0] sm:$0xff]
    %v125 = vld [vmem:[%s0 + $0x2a8] sm:$0xff]
    %v126 = vld [vmem:[%s0 + $0x2b0] sm:$0xff]
    %v127 = vld [vmem:[%s0 + $0x2b8] sm:$0xff]
    %v128 = vld [vmem:[%s0 + $0x2c0] sm:$0xff]
    %v129 = vld [vmem:[%s0 + $0x2c8] sm:$0xff]
    %v130 = vld [vmem:[%s0 + $0x2d0] sm:$0xff]
    %v131 = vld [vmem:[%s0 + $0x2d8] sm:$0xff]
    %v132 = vld [vmem:[%s0 + $0x2e0] sm:$0xff]
    %v133 = vld [vmem:[%s0 + $0x2e8] sm:$0xff]
    %v134 = vld [vmem:[%s0 + $0x2f0] sm:$0xff]
    %v135 = vld [vmem:[%s0 + $0x2f8] sm:$0xff]
    %v136 = vld [vmem:[%s1] sm:$0xff]
    %v137 = vld [vmem:[%s1 + $0x8] sm:$0xf]
    %v138 = vld [vmem:[%s1 + $0xc] sm:$0xff]
    %v139 = vld [vmem:[%s1 + $0x14] sm:$0xf]
    %v140 = vld [vmem:[%s1 + $0x18] sm:$0xff]
    %v141 = vld [vmem:[%s1 + $0x20] sm:$0xf]
    %v142 = vld [vmem:[%s1 + $0x24] sm:$0xff]
    %v143 = vld [vmem:[%s1 + $0x2c] sm:$0xf]
    %v144 = vld [vmem:[%s1 + $0x30] sm:$0xff]
    %v145 = vld [vmem:[%s1 + $0x38] sm:$0xf]
    %v146 = vld [vmem:[%s1 + $0x3c] sm:$0xff]
    %v147 = vld [vmem:[%s1 + $0x44] sm:$0xf]
    %v148 = vld [vmem:[%s1 + $0x48] sm:$0xff]
    %v149 = vld [vmem:[%s1 + $0x50] sm:$0xf]
    %v150 = vld [vmem:[%s1 + $0x54] sm:$0xff]
    %v151 = vld [vmem:[%s1 + $0x5c] sm:$0xf]
    %v152 = vld [vmem:[%s1 + $0x60] sm:$0xff]
    %v153 = vld [vmem:[%s1 + $0x68] sm:$0xf]
    %v154 = vld [vmem:[%s1 + $0x6c] sm:$0xff]
    %v155 = vld [vmem:[%s1 + $0x74] sm:$0xf]
    %v156 = vld [vmem:[%s1 + $0x78] sm:$0xff]
    %v157 = vld [vmem:[%s1 + $0x80] sm:$0xf]
    %v158 = vld [vmem:[%s1 + $0x84] sm:$0xff]
    %v159 = vld [vmem:[%s1 + $0x8c] sm:$0xf]
    %v160 = vld [vmem:[%s1 + $0x90] sm:$0xff]
    %v161 = vld [vmem:[%s1 + $0x98] sm:$0xf]
    %v162 = vld [vmem:[%s1 + $0x9c] sm:$0xff]
    %v163 = vld [vmem:[%s1 + $0xa4] sm:$0xf]
    %v164 = vld [vmem:[%s1 + $0xa8] sm:$0xff]
    %v165 = vld [vmem:[%s1 + $0xb0] sm:$0xf]
    %v166 = vld [vmem:[%s1 + $0xb4] sm:$0xff]
    %v167 = vld [vmem:[%s1 + $0xbc] sm:$0xf]
    %v168 = vld [vmem:[%s1 + $0xc0] sm:$0xff]
    %v169 = vld [vmem:[%s1 + $0xc8] sm:$0xf]
    %v170 = vld [vmem:[%s1 + $0xcc] sm:$0xff]
    %v171 = vld [vmem:[%s1 + $0xd4] sm:$0xf]
    %v172 = vld [vmem:[%s1 + $0xd8] sm:$0xff]
    %v173 = vld [vmem:[%s1 + $0xe0] sm:$0xf]
    %v174 = vld [vmem:[%s1 + $0xe4] sm:$0xff]
    %v175 = vld [vmem:[%s1 + $0xec] sm:$0xf]
    %v176 = vld [vmem:[%s1 + $0xf0] sm:$0xff]
    %v177 = vld [vmem:[%s1 + $0xf8] sm:$0xf]
    %v178 = vld [vmem:[%s1 + $0xfc] sm:$0xff]
    %v179 = vld [vmem:[%s1 + $0x104] sm:$0xf]
    %v180 = vld [vmem:[%s1 + $0x108] sm:$0xff]
    %v181 = vld [vmem:[%s1 + $0x110] sm:$0xf]
    %v182 = vld [vmem:[%s1 + $0x114] sm:$0xff]
    %v183 = vld [vmem:[%s1 + $0x11c] sm:$0xf]
    %v184 = vld [vmem:[%s1 + $0x120] sm:$0xff]
    %v185 = vld [vmem:[%s1 + $0x128] sm:$0xf]
    %v186 = vld [vmem:[%s1 + $0x12c] sm:$0xff]
    %v187 = vld [vmem:[%s1 + $0x134] sm:$0xf]
    %v188 = vld [vmem:[%s1 + $0x138] sm:$0xff]
    %v189 = vld [vmem:[%s1 + $0x140] sm:$0xf]
    %v190 = vld [vmem:[%s1 + $0x144] sm:$0xff]
    %v191 = vld [vmem:[%s1 + $0x14c] sm:$0xf]
    %v192 = vld [vmem:[%s1 + $0x150] sm:$0xff]
    %v193 = vld [vmem:[%s1 + $0x158] sm:$0xf]
    %v194 = vld [vmem:[%s1 + $0x15c] sm:$0xff]
    %v195 = vld [vmem:[%s1 + $0x164] sm:$0xf]
    %v196 = vld [vmem:[%s1 + $0x168] sm:$0xff]
    %v197 = vld [vmem:[%s1 + $0x170] sm:$0xf]
    %v198 = vld [vmem:[%s1 + $0x174] sm:$0xff]
    %v199 = vld [vmem:[%s1 + $0x17c] sm:$0xf]
    %v200 = vld [vmem:[%s1 + $0x180] sm:$0xff]
    %v201 = vld [vmem:[%s1 + $0x188] sm:$0xf]
    %v202 = vld [vmem:[%s1 + $0x18c] sm:$0xff]
    %v203 = vld [vmem:[%s1 + $0x194] sm:$0xf]
    %v204 = vld [vmem:[%s1 + $0x198] sm:$0xff]
    %v205 = vld [vmem:[%s1 + $0x1a0] sm:$0xf]
    %v206 = vld [vmem:[%s1 + $0x1a4] sm:$0xff]
    %v207 = vld [vmem:[%s1 + $0x1ac] sm:$0xf]
    %v208 = vld [vmem:[%s1 + $0x1b0] sm:$0xff]
    %v209 = vld [vmem:[%s1 + $0x1b8] sm:$0xf]
    %v210 = vld [vmem:[%s1 + $0x1bc] sm:$0xff]
    %v211 = vld [vmem:[%s1 + $0x1c4] sm:$0xf]
    %v212 = vld [vmem:[%s1 + $0x1c8] sm:$0xff]
    %v213 = vld [vmem:[%s1 + $0x1d0] sm:$0xf]
    %v214 = vld [vmem:[%s1 + $0x1d4] sm:$0xff]
    %v215 = vld [vmem:[%s1 + $0x1dc] sm:$0xf]
    %v216 = vld [vmem:[%s1 + $0x1e0] sm:$0xff]
    %v217 = vld [vmem:[%s1 + $0x1e8] sm:$0xf]
    %v218 = vld [vmem:[%s1 + $0x1ec] sm:$0xff]
    %v219 = vld [vmem:[%s1 + $0x1f4] sm:$0xf]
    %v220 = vld [vmem:[%s1 + $0x1f8] sm:$0xff]
    %v221 = vld [vmem:[%s1 + $0x200] sm:$0xf]
    %v222 = vld [vmem:[%s1 + $0x204] sm:$0xff]
    %v223 = vld [vmem:[%s1 + $0x20c] sm:$0xf]
    %v224 = vld [vmem:[%s1 + $0x210] sm:$0xff]
    %v225 = vld [vmem:[%s1 + $0x218] sm:$0xf]
    %v226 = vld [vmem:[%s1 + $0x21c] sm:$0xff]
    %v227 = vld [vmem:[%s1 + $0x224] sm:$0xf]
    %v228 = vld [vmem:[%s1 + $0x228] sm:$0xff]
    %v229 = vld [vmem:[%s1 + $0x230] sm:$0xf]
    %v230 = vld [vmem:[%s1 + $0x234] sm:$0xff]
    %v231 = vld [vmem:[%s1 + $0x23c] sm:$0xf]
    %v232 = vld [vmem:[%s1 + $0x240] sm:$0xff]
    %v233 = vld [vmem:[%s1 + $0x248] sm:$0xf]
    %v234 = vld [vmem:[%s1 + $0x24c] sm:$0xff]
    %v235 = vld [vmem:[%s1 + $0x254] sm:$0xf]
    %v236 = vld [vmem:[%s1 + $0x258] sm:$0xff]
    %v237 = vld [vmem:[%s1 + $0x260] sm:$0xf]
    %v238 = vld [vmem:[%s1 + $0x264] sm:$0xff]
    %v239 = vld [vmem:[%s1 + $0x26c] sm:$0xf]
    %v240 = vld [vmem:[%s1 + $0x270] sm:$0xff]
    %v241 = vld [vmem:[%s1 + $0x278] sm:$0xf]
    %v242 = vld [vmem:[%s1 + $0x27c] sm:$0xff]
    %v243 = vld [vmem:[%s1 + $0x284] sm:$0xf]
    %v244 = vld [vmem:[%s1 + $0x288] sm:$0xff]
    %v245 = vld [vmem:[%s1 + $0x290] sm:$0xf]
    %v246 = vld [vmem:[%s1 + $0x294] sm:$0xff]
    %v247 = vld [vmem:[%s1 + $0x29c] sm:$0xf]
    %v248 = vld [vmem:[%s1 + $0x2a0] sm:$0xff]
    %v249 = vld [vmem:[%s1 + $0x2a8] sm:$0xf]
    %v250 = vld [vmem:[%s1 + $0x2ac] sm:$0xff]
    %v251 = vld [vmem:[%s1 + $0x2b4] sm:$0xf]
    %v252 = vld [vmem:[%s1 + $0x2b8] sm:$0xff]
    %v253 = vld [vmem:[%s1 + $0x2c0] sm:$0xf]
    %v254 = vld [vmem:[%s1 + $0x2c4] sm:$0xff]
    %v255 = vld [vmem:[%s1 + $0x2cc] sm:$0xf]
    %v256 = vld [vmem:[%s1 + $0x2d0] sm:$0xff]
    %v257 = vld [vmem:[%s1 + $0x2d8] sm:$0xf]
    %v258 = vld [vmem:[%s1 + $0x2dc] sm:$0xff]
    %v259 = vld [vmem:[%s1 + $0x2e4] sm:$0xf]
    %v260 = vld [vmem:[%s1 + $0x2e8] sm:$0xff]
    %v261 = vld [vmem:[%s1 + $0x2f0] sm:$0xf]
    %v262 = vld [vmem:[%s1 + $0x2f4] sm:$0xff]
    %v263 = vld [vmem:[%s1 + $0x2fc] sm:$0xf]
    %v264 = vld [vmem:[%s1 + $0x300] sm:$0xff]
    %v265 = vld [vmem:[%s1 + $0x308] sm:$0xf]
    %v266 = vld [vmem:[%s1 + $0x30c] sm:$0xff]
    %v267 = vld [vmem:[%s1 + $0x314] sm:$0xf]
    %v268 = vld [vmem:[%s1 + $0x318] sm:$0xff]
    %v269 = vld [vmem:[%s1 + $0x320] sm:$0xf]
    %v270 = vld [vmem:[%s1 + $0x324] sm:$0xff]
    %v271 = vld [vmem:[%s1 + $0x32c] sm:$0xf]
    %v272 = vld [vmem:[%s1 + $0x330] sm:$0xff]
    %v273 = vld [vmem:[%s1 + $0x338] sm:$0xf]
    %v274 = vld [vmem:[%s1 + $0x33c] sm:$0xff]
    %v275 = vld [vmem:[%s1 + $0x344] sm:$0xf]
    %v276 = vld [vmem:[%s1 + $0x348] sm:$0xff]
    %v277 = vld [vmem:[%s1 + $0x350] sm:$0xf]
    %v278 = vld [vmem:[%s1 + $0x354] sm:$0xff]
    %v279 = vld [vmem:[%s1 + $0x35c] sm:$0xf]
    %v280 = vld [vmem:[%s1 + $0x360] sm:$0xff]
    %v281 = vld [vmem:[%s1 + $0x368] sm:$0xf]
    %v282 = vld [vmem:[%s1 + $0x36c] sm:$0xff]
    %v283 = vld [vmem:[%s1 + $0x374] sm:$0xf]
    %v284 = vld [vmem:[%s1 + $0x378] sm:$0xff]
    %v285 = vld [vmem:[%s1 + $0x380] sm:$0xf]
    %v286 = vld [vmem:[%s1 + $0x384] sm:$0xff]
    %v287 = vld [vmem:[%s1 + $0x38c] sm:$0xf]
    %v288 = vld [vmem:[%s1 + $0x390] sm:$0xff]
    %v289 = vld [vmem:[%s1 + $0x398] sm:$0xf]
    %v290 = vld [vmem:[%s1 + $0x39c] sm:$0xff]
    %v291 = vld [vmem:[%s1 + $0x3a4] sm:$0xf]
    %v292 = vld [vmem:[%s1 + $0x3a8] sm:$0xff]
    %v293 = vld [vmem:[%s1 + $0x3b0] sm:$0xf]
    %v294 = vld [vmem:[%s1 + $0x3b4] sm:$0xff]
    %v295 = vld [vmem:[%s1 + $0x3bc] sm:$0xf]
    %v296 = vld [vmem:[%s1 + $0x3c0] sm:$0xff]
    %v297 = vld [vmem:[%s1 + $0x3c8] sm:$0xf]
    %v298 = vld [vmem:[%s1 + $0x3cc] sm:$0xff]
    %v299 = vld [vmem:[%s1 + $0x3d4] sm:$0xf]
    %v300 = vld [vmem:[%s1 + $0x3d8] sm:$0xff]
    %v301 = vld [vmem:[%s1 + $0x3e0] sm:$0xf]
    %v302 = vld [vmem:[%s1 + $0x3e4] sm:$0xff]
    %v303 = vld [vmem:[%s1 + $0x3ec] sm:$0xf]
    %v304 = vld [vmem:[%s1 + $0x3f0] sm:$0xff]
    %v305 = vld [vmem:[%s1 + $0x3f8] sm:$0xf]
    %v306 = vld [vmem:[%s1 + $0x3fc] sm:$0xff]
    %v307 = vld [vmem:[%s1 + $0x404] sm:$0xf]
    %v308 = vld [vmem:[%s1 + $0x408] sm:$0xff]
    %v309 = vld [vmem:[%s1 + $0x410] sm:$0xf]
    %v310 = vld [vmem:[%s1 + $0x414] sm:$0xff]
    %v311 = vld [vmem:[%s1 + $0x41c] sm:$0xf]
    %v312 = vld [vmem:[%s1 + $0x420] sm:$0xff]
    %v313 = vld [vmem:[%s1 + $0x428] sm:$0xf]
    %v314 = vld [vmem:[%s1 + $0x42c] sm:$0xff]
    %v315 = vld [vmem:[%s1 + $0x434] sm:$0xf]
    %v316 = vld [vmem:[%s1 + $0x438] sm:$0xff]
    %v317 = vld [vmem:[%s1 + $0x440] sm:$0xf]
    %v318 = vld [vmem:[%s1 + $0x444] sm:$0xff]
    %v319 = vld [vmem:[%s1 + $0x44c] sm:$0xf]
    %v320 = vld [vmem:[%s1 + $0x450] sm:$0xff]
    %v321 = vld [vmem:[%s1 + $0x458] sm:$0xf]
    %v322 = vld [vmem:[%s1 + $0x45c] sm:$0xff]
    %v323 = vld [vmem:[%s1 + $0x464] sm:$0xf]
    %v324 = vld [vmem:[%s1 + $0x468] sm:$0xff]
    %v325 = vld [vmem:[%s1 + $0x470] sm:$0xf]
    %v326 = vld [vmem:[%s1 + $0x474] sm:$0xff]
    %v327 = vld [vmem:[%s1 + $0x47c] sm:$0xf]
    %v328 = vld [vmem:[%s1 + $0x480] sm:$0xff]
    %v329 = vld [vmem:[%s1 + $0x488] sm:$0xf]
    %v330 = vld [vmem:[%s1 + $0x48c] sm:$0xff]
    %v331 = vld [vmem:[%s1 + $0x494] sm:$0xf]
    %v332 = vld [vmem:[%s1 + $0x498] sm:$0xff]
    %v333 = vld [vmem:[%s1 + $0x4a0] sm:$0xf]
    %v334 = vld [vmem:[%s1 + $0x4a4] sm:$0xff]
    %v335 = vld [vmem:[%s1 + $0x4ac] sm:$0xf]
    %v336 = vld [vmem:[%s1 + $0x4b0] sm:$0xff]
    %v337 = vld [vmem:[%s1 + $0x4b8] sm:$0xf]
    %v338 = vld [vmem:[%s1 + $0x4bc] sm:$0xff]
    %v339 = vld [vmem:[%s1 + $0x4c4] sm:$0xf]
    %v340 = vld [vmem:[%s1 + $0x4c8] sm:$0xff]
    %v341 = vld [vmem:[%s1 + $0x4d0] sm:$0xf]
    %v342 = vld [vmem:[%s1 + $0x4d4] sm:$0xff]
    %v343 = vld [vmem:[%s1 + $0x4dc] sm:$0xf]
    %v344 = vld [vmem:[%s1 + $0x4e0] sm:$0xff]
    %v345 = vld [vmem:[%s1 + $0x4e8] sm:$0xf]
    %v346 = vld [vmem:[%s1 + $0x4ec] sm:$0xff]
    %v347 = vld [vmem:[%s1 + $0x4f4] sm:$0xf]
    %v348 = vld [vmem:[%s1 + $0x4f8] sm:$0xff]
    %v349 = vld [vmem:[%s1 + $0x500] sm:$0xf]
    %v350 = vld [vmem:[%s1 + $0x504] sm:$0xff]
    %v351 = vld [vmem:[%s1 + $0x50c] sm:$0xf]
    %v352 = vld [vmem:[%s1 + $0x510] sm:$0xff]
    %v353 = vld [vmem:[%s1 + $0x518] sm:$0xf]
    %v354 = vld [vmem:[%s1 + $0x51c] sm:$0xff]
    %v355 = vld [vmem:[%s1 + $0x524] sm:$0xf]
    %v356 = vld [vmem:[%s1 + $0x528] sm:$0xff]
    %v357 = vld [vmem:[%s1 + $0x530] sm:$0xf]
    %v358 = vld [vmem:[%s1 + $0x534] sm:$0xff]
    %v359 = vld [vmem:[%s1 + $0x53c] sm:$0xf]
    %v360 = vld [vmem:[%s1 + $0x540] sm:$0xff]
    %v361 = vld [vmem:[%s1 + $0x548] sm:$0xf]
    %v362 = vld [vmem:[%s1 + $0x54c] sm:$0xff]
    %v363 = vld [vmem:[%s1 + $0x554] sm:$0xf]
    %v364 = vld [vmem:[%s1 + $0x558] sm:$0xff]
    %v365 = vld [vmem:[%s1 + $0x560] sm:$0xf]
    %v366 = vld [vmem:[%s1 + $0x564] sm:$0xff]
    %v367 = vld [vmem:[%s1 + $0x56c] sm:$0xf]
    %v368 = vld [vmem:[%s1 + $0x570] sm:$0xff]
    %v369 = vld [vmem:[%s1 + $0x578] sm:$0xf]
    %v370 = vld [vmem:[%s1 + $0x57c] sm:$0xff]
    %v371 = vld [vmem:[%s1 + $0x584] sm:$0xf]
    %v372 = vld [vmem:[%s1 + $0x588] sm:$0xff]
    %v373 = vld [vmem:[%s1 + $0x590] sm:$0xf]
    %v374 = vld [vmem:[%s1 + $0x594] sm:$0xff]
    %v375 = vld [vmem:[%s1 + $0x59c] sm:$0xf]
    %v376 = vld [vmem:[%s1 + $0x5a0] sm:$0xff]
    %v377 = vld [vmem:[%s1 + $0x5a8] sm:$0xf]
    %v378 = vld [vmem:[%s1 + $0x5ac] sm:$0xff]
    %v379 = vld [vmem:[%s1 + $0x5b4] sm:$0xf]
    %v380 = vld [vmem:[%s1 + $0x5b8] sm:$0xff]
    %v381 = vld [vmem:[%s1 + $0x5c0] sm:$0xf]
    %v382 = vld [vmem:[%s1 + $0x5c4] sm:$0xff]
    %v383 = vld [vmem:[%s1 + $0x5cc] sm:$0xf]
    %v384 = vld [vmem:[%s1 + $0x5d0] sm:$0xff]
    %v385 = vld [vmem:[%s1 + $0x5d8] sm:$0xf]
    %v386 = vld [vmem:[%s1 + $0x5dc] sm:$0xff]
    %v387 = vld [vmem:[%s1 + $0x5e4] sm:$0xf]
    %v388 = vld [vmem:[%s1 + $0x5e8] sm:$0xff]
    %v389 = vld [vmem:[%s1 + $0x5f0] sm:$0xf]
    %v390 = vld [vmem:[%s1 + $0x5f4] sm:$0xff]
    %v391 = vld [vmem:[%s1 + $0x5fc] sm:$0xf]
    %v392 = vld [vmem:[%s1 + $0x600] sm:$0xff]
    %v393 = vld [vmem:[%s1 + $0x608] sm:$0xf]
    %v394 = vld [vmem:[%s1 + $0x60c] sm:$0xff]
    %v395 = vld [vmem:[%s1 + $0x614] sm:$0xf]
    %v396 = vld [vmem:[%s1 + $0x618] sm:$0xff]
    %v397 = vld [vmem:[%s1 + $0x620] sm:$0xf]
    %v398 = vld [vmem:[%s1 + $0x624] sm:$0xff]
    %v399 = vld [vmem:[%s1 + $0x62c] sm:$0xf]
    %v400 = vld [vmem:[%s1 + $0x630] sm:$0xff]
    %v401 = vld [vmem:[%s1 + $0x638] sm:$0xf]
    %v402 = vld [vmem:[%s1 + $0x63c] sm:$0xff]
    %v403 = vld [vmem:[%s1 + $0x644] sm:$0xf]
    %v404 = vld [vmem:[%s1 + $0x648] sm:$0xff]
    %v405 = vld [vmem:[%s1 + $0x650] sm:$0xf]
    %v406 = vld [vmem:[%s1 + $0x654] sm:$0xff]
    %v407 = vld [vmem:[%s1 + $0x65c] sm:$0xf]
    %v408 = vld [vmem:[%s1 + $0x660] sm:$0xff]
    %v409 = vld [vmem:[%s1 + $0x668] sm:$0xf]
    %v410 = vld [vmem:[%s1 + $0x66c] sm:$0xff]
    %v411 = vld [vmem:[%s1 + $0x674] sm:$0xf]
    %v412 = vld [vmem:[%s1 + $0x678] sm:$0xff]
    %v413 = vld [vmem:[%s1 + $0x680] sm:$0xf]
    %v414 = vld [vmem:[%s1 + $0x684] sm:$0xff]
    %v415 = vld [vmem:[%s1 + $0x68c] sm:$0xf]
    %v416 = vld [vmem:[%s1 + $0x690] sm:$0xff]
    %v417 = vld [vmem:[%s1 + $0x698] sm:$0xf]
    %v418 = vld [vmem:[%s1 + $0x69c] sm:$0xff]
    %v419 = vld [vmem:[%s1 + $0x6a4] sm:$0xf]
    %v420 = vld [vmem:[%s1 + $0x6a8] sm:$0xff]
    %v421 = vld [vmem:[%s1 + $0x6b0] sm:$0xf]
    %v422 = vld [vmem:[%s1 + $0x6b4] sm:$0xff]
    %v423 = vld [vmem:[%s1 + $0x6bc] sm:$0xf]
    %v424 = vld [vmem:[%s1 + $0x6c0] sm:$0xff]
    %v425 = vld [vmem:[%s1 + $0x6c8] sm:$0xf]
    %v426 = vld [vmem:[%s1 + $0x6cc] sm:$0xff]
    %v427 = vld [vmem:[%s1 + $0x6d4] sm:$0xf]
    %v428 = vld [vmem:[%s1 + $0x6d8] sm:$0xff]
    %v429 = vld [vmem:[%s1 + $0x6e0] sm:$0xf]
    %v430 = vld [vmem:[%s1 + $0x6e4] sm:$0xff]
    %v431 = vld [vmem:[%s1 + $0x6ec] sm:$0xf]
    %v432 = vld [vmem:[%s1 + $0x6f0] sm:$0xff]
    %v433 = vld [vmem:[%s1 + $0x6f8] sm:$0xf]
    %v434 = vld [vmem:[%s1 + $0x6fc] sm:$0xff]
    %v435 = vld [vmem:[%s1 + $0x704] sm:$0xf]
    %v436 = vld [vmem:[%s1 + $0x708] sm:$0xff]
    %v437 = vld [vmem:[%s1 + $0x710] sm:$0xf]
    %v438 = vld [vmem:[%s1 + $0x714] sm:$0xff]
    %v439 = vld [vmem:[%s1 + $0x71c] sm:$0xf]
    %v440 = vld [vmem:[%s1 + $0x720] sm:$0xff]
    %v441 = vld [vmem:[%s1 + $0x728] sm:$0xf]
    %v442 = vld [vmem:[%s1 + $0x72c] sm:$0xff]
    %v443 = vld [vmem:[%s1 + $0x734] sm:$0xf]
    %v444 = vld [vmem:[%s1 + $0x738] sm:$0xff]
    %v445 = vld [vmem:[%s1 + $0x740] sm:$0xf]
    %v446 = vld [vmem:[%s1 + $0x744] sm:$0xff]
    %v447 = vld [vmem:[%s1 + $0x74c] sm:$0xf]
    %v448 = vld [vmem:[%s1 + $0x750] sm:$0xff]
    %v449 = vld [vmem:[%s1 + $0x758] sm:$0xf]
    %v450 = vld [vmem:[%s1 + $0x75c] sm:$0xff]
    %v451 = vld [vmem:[%s1 + $0x764] sm:$0xf]
    %v452 = vld [vmem:[%s1 + $0x768] sm:$0xff]
    %v453 = vld [vmem:[%s1 + $0x770] sm:$0xf]
    %v454 = vld [vmem:[%s1 + $0x774] sm:$0xff]
    %v455 = vld [vmem:[%s1 + $0x77c] sm:$0xf]
    %v456 = vld [vmem:[%s1 + $0x780] sm:$0xff]
    %v457 = vld [vmem:[%s1 + $0x788] sm:$0xf]
    %v458 = vld [vmem:[%s1 + $0x78c] sm:$0xff]
    %v459 = vld [vmem:[%s1 + $0x794] sm:$0xf]
    %v460 = vld [vmem:[%s1 + $0x798] sm:$0xff]
    %v461 = vld [vmem:[%s1 + $0x7a0] sm:$0xf]
    %v462 = vld [vmem:[%s1 + $0x7a4] sm:$0xff]
    %v463 = vld [vmem:[%s1 + $0x7ac] sm:$0xf]
    %v464 = vld [vmem:[%s1 + $0x7b0] sm:$0xff]
    %v465 = vld [vmem:[%s1 + $0x7b8] sm:$0xf]
    %v466 = vld [vmem:[%s1 + $0x7bc] sm:$0xff]
    %v467 = vld [vmem:[%s1 + $0x7c4] sm:$0xf]
    %v468 = vld [vmem:[%s1 + $0x7c8] sm:$0xff]
    %v469 = vld [vmem:[%s1 + $0x7d0] sm:$0xf]
    %v470 = vld [vmem:[%s1 + $0x7d4] sm:$0xff]
    %v471 = vld [vmem:[%s1 + $0x7dc] sm:$0xf]
    %v472 = vld [vmem:[%s1 + $0x7e0] sm:$0xff]
    %v473 = vld [vmem:[%s1 + $0x7e8] sm:$0xf]
    %v474 = vld [vmem:[%s1 + $0x7ec] sm:$0xff]
    %v475 = vld [vmem:[%s1 + $0x7f4] sm:$0xf]
    %v476 = vld [vmem:[%s1 + $0x7f8] sm:$0xff]
    %v477 = vld [vmem:[%s1 + $0x800] sm:$0xf]
    %v478 = vld [vmem:[%s1 + $0x804] sm:$0xff]
    %v479 = vld [vmem:[%s1 + $0x80c] sm:$0xf]
    %v480 = vld [vmem:[%s1 + $0x810] sm:$0xff]
    %v481 = vld [vmem:[%s1 + $0x818] sm:$0xf]
    %v482 = vld [vmem:[%s1 + $0x81c] sm:$0xff]
    %v483 = vld [vmem:[%s1 + $0x824] sm:$0xf]
    %v484 = vld [vmem:[%s1 + $0x828] sm:$0xff]
    %v485 = vld [vmem:[%s1 + $0x830] sm:$0xf]
    %v486 = vld [vmem:[%s1 + $0x834] sm:$0xff]
    %v487 = vld [vmem:[%s1 + $0x83c] sm:$0xf]
    %v488 = vld [vmem:[%s1 + $0x840] sm:$0xff]
    %v489 = vld [vmem:[%s1 + $0x848] sm:$0xf]
    %v490 = vld [vmem:[%s1 + $0x84c] sm:$0xff]
    %v491 = vld [vmem:[%s1 + $0x854] sm:$0xf]
    %v492 = vld [vmem:[%s1 + $0x858] sm:$0xff]
    %v493 = vld [vmem:[%s1 + $0x860] sm:$0xf]
    %v494 = vld [vmem:[%s1 + $0x864] sm:$0xff]
    %v495 = vld [vmem:[%s1 + $0x86c] sm:$0xf]
    %v496 = vld [vmem:[%s1 + $0x870] sm:$0xff]
    %v497 = vld [vmem:[%s1 + $0x878] sm:$0xf]
    %v498 = vld [vmem:[%s1 + $0x87c] sm:$0xff]
    %v499 = vld [vmem:[%s1 + $0x884] sm:$0xf]
    %v500 = vld [vmem:[%s1 + $0x888] sm:$0xff]
    %v501 = vld [vmem:[%s1 + $0x890] sm:$0xf]
    %v502 = vld [vmem:[%s1 + $0x894] sm:$0xff]
    %v503 = vld [vmem:[%s1 + $0x89c] sm:$0xf]
    %v504 = vld [vmem:[%s1 + $0x8a0] sm:$0xff]
    %v505 = vld [vmem:[%s1 + $0x8a8] sm:$0xf]
    %v506 = vld [vmem:[%s1 + $0x8ac] sm:$0xff]
    %v507 = vld [vmem:[%s1 + $0x8b4] sm:$0xf]
    %v508 = vld [vmem:[%s1 + $0x8b8] sm:$0xff]
    %v509 = vld [vmem:[%s1 + $0x8c0] sm:$0xf]
    %v510 = vld [vmem:[%s1 + $0x8c4] sm:$0xff]
    %v511 = vld [vmem:[%s1 + $0x8cc] sm:$0xf]
    %v512 = vld [vmem:[%s1 + $0x8d0] sm:$0xff]
    %v513 = vld [vmem:[%s1 + $0x8d8] sm:$0xf]
    %v514 = vld [vmem:[%s1 + $0x8dc] sm:$0xff]
    %v515 = vld [vmem:[%s1 + $0x8e4] sm:$0xf]
    %v516 = vld [vmem:[%s1 + $0x8e8] sm:$0xff]
    %v517 = vld [vmem:[%s1 + $0x8f0] sm:$0xf]
    %v518 = vld [vmem:[%s1 + $0x8f4] sm:$0xff]
    %v519 = vld [vmem:[%s1 + $0x8fc] sm:$0xf]
    %v520 = vld [vmem:[%s2] sm:$0x7]
    %v522 = vlaneseq
    %v523 = vshrl.u32 %v522, 7
    %v524 = vsub.s32 0, %v523
    %v525 = vrot.slane %v520, %v524
    %v526 = vlaneseq
    %v527 = vshrl.u32 %v526, 7
    %v528 = vsub.s32 1, %v527
    %v529 = vrot.slane %v520, %v528
    %v530 = vlaneseq
    %v531 = vshrl.u32 %v530, 7
    %v532 = vsub.s32 2, %v531
    %v533 = vrot.slane %v520, %v532
    %v633 = vunpack.c.l.b16 %v40
    %v634 = vunpack.c.h.b16 %v40
    %v635 = vunpack.c.l.b16 %v41
    %v636 = vunpack.c.h.b16 %v41
    %v637 = vunpack.c.l.b16 %v42
    %v638 = vunpack.c.h.b16 %v42
    %v639 = vunpack.c.l.b16 %v43
    %v640 = vunpack.c.h.b16 %v43
    %v641 = vunpack.c.l.b16 %v44
    %v642 = vunpack.c.h.b16 %v44
    %v643 = vunpack.c.l.b16 %v45
    %v644 = vunpack.c.h.b16 %v45
    %v645 = vunpack.c.l.b16 %v46
    %v646 = vunpack.c.h.b16 %v46
    %v647 = vunpack.c.l.b16 %v47
    %v648 = vunpack.c.h.b16 %v47
    %v649 = vunpack.c.l.b16 %v48
    %v650 = vunpack.c.h.b16 %v48
    %v651 = vunpack.c.l.b16 %v49
    %v652 = vunpack.c.h.b16 %v49
    %v653 = vunpack.c.l.b16 %v50
    %v654 = vunpack.c.h.b16 %v50
    %v655 = vunpack.c.l.b16 %v51
    %v656 = vunpack.c.h.b16 %v51
    %v657 = vunpack.c.l.b16 %v52
    %v658 = vunpack.c.h.b16 %v52
    %v659 = vunpack.c.l.b16 %v53
    %v660 = vunpack.c.h.b16 %v53
    %v661 = vunpack.c.l.b16 %v54
    %v662 = vunpack.c.h.b16 %v54
    %v663 = vunpack.c.l.b16 %v55
    %v664 = vunpack.c.h.b16 %v55
    %v665 = vunpack.c.l.b16 %v56
    %v666 = vunpack.c.h.b16 %v56
    %v667 = vunpack.c.l.b16 %v57
    %v668 = vunpack.c.h.b16 %v57
    %v669 = vunpack.c.l.b16 %v58
    %v670 = vunpack.c.h.b16 %v58
    %v671 = vunpack.c.l.b16 %v59
    %v672 = vunpack.c.h.b16 %v59
    %v673 = vunpack.c.l.b16 %v60
    %v674 = vunpack.c.h.b16 %v60
    %v675 = vunpack.c.l.b16 %v61
    %v676 = vunpack.c.h.b16 %v61
    %v677 = vunpack.c.l.b16 %v62
    %v678 = vunpack.c.h.b16 %v62
    %v679 = vunpack.c.l.b16 %v63
    %v680 = vunpack.c.h.b16 %v63
    %v681 = vunpack.c.l.b16 %v64
    %v682 = vunpack.c.h.b16 %v64
    %v683 = vunpack.c.l.b16 %v65
    %v684 = vunpack.c.h.b16 %v65
    %v685 = vunpack.c.l.b16 %v66
    %v686 = vunpack.c.h.b16 %v66
    %v687 = vunpack.c.l.b16 %v67
    %v688 = vunpack.c.h.b16 %v67
    %v689 = vunpack.c.l.b16 %v68
    %v690 = vunpack.c.h.b16 %v68
    %v691 = vunpack.c.l.b16 %v69
    %v692 = vunpack.c.h.b16 %v69
    %v693 = vunpack.c.l.b16 %v70
    %v694 = vunpack.c.h.b16 %v70
    %v695 = vunpack.c.l.b16 %v71
    %v696 = vunpack.c.h.b16 %v71
    %v697 = vunpack.c.l.b16 %v72
    %v698 = vunpack.c.h.b16 %v72
    %v699 = vunpack.c.l.b16 %v73
    %v700 = vunpack.c.h.b16 %v73
    %v701 = vunpack.c.l.b16 %v74
    %v702 = vunpack.c.h.b16 %v74
    %v703 = vunpack.c.l.b16 %v75
    %v704 = vunpack.c.h.b16 %v75
    %v705 = vunpack.c.l.b16 %v76
    %v706 = vunpack.c.h.b16 %v76
    %v707 = vunpack.c.l.b16 %v77
    %v708 = vunpack.c.h.b16 %v77
    %v709 = vunpack.c.l.b16 %v78
    %v710 = vunpack.c.h.b16 %v78
    %v711 = vunpack.c.l.b16 %v79
    %v712 = vunpack.c.h.b16 %v79
    %v713 = vunpack.c.l.b16 %v80
    %v714 = vunpack.c.h.b16 %v80
    %v715 = vunpack.c.l.b16 %v81
    %v716 = vunpack.c.h.b16 %v81
    %v717 = vunpack.c.l.b16 %v82
    %v718 = vunpack.c.h.b16 %v82
    %v719 = vunpack.c.l.b16 %v83
    %v720 = vunpack.c.h.b16 %v83
    %v721 = vunpack.c.l.b16 %v84
    %v722 = vunpack.c.h.b16 %v84
    %v723 = vunpack.c.l.b16 %v85
    %v724 = vunpack.c.h.b16 %v85
    %v725 = vunpack.c.l.b16 %v86
    %v726 = vunpack.c.h.b16 %v86
    %v727 = vunpack.c.l.b16 %v87
    %v728 = vunpack.c.h.b16 %v87
    %v729 = vunpack.c.l.b16 %v88
    %v730 = vunpack.c.h.b16 %v88
    %v731 = vunpack.c.l.b16 %v89
    %v732 = vunpack.c.h.b16 %v89
    %v733 = vunpack.c.l.b16 %v90
    %v734 = vunpack.c.h.b16 %v90
    %v735 = vunpack.c.l.b16 %v91
    %v736 = vunpack.c.h.b16 %v91
    %v737 = vunpack.c.l.b16 %v92
    %v738 = vunpack.c.h.b16 %v92
    %v739 = vunpack.c.l.b16 %v93
    %v740 = vunpack.c.h.b16 %v93
    %v741 = vunpack.c.l.b16 %v94
    %v742 = vunpack.c.h.b16 %v94
    %v743 = vunpack.c.l.b16 %v95
    %v744 = vunpack.c.h.b16 %v95
    %v745 = vunpack.c.l.b16 %v96
    %v746 = vunpack.c.h.b16 %v96
    %v747 = vunpack.c.l.b16 %v97
    %v748 = vunpack.c.h.b16 %v97
    %v749 = vunpack.c.l.b16 %v98
    %v750 = vunpack.c.h.b16 %v98
    %v751 = vunpack.c.l.b16 %v99
    %v752 = vunpack.c.h.b16 %v99
    %v753 = vunpack.c.l.b16 %v100
    %v754 = vunpack.c.h.b16 %v100
    %v755 = vunpack.c.l.b16 %v101
    %v756 = vunpack.c.h.b16 %v101
    %v757 = vunpack.c.l.b16 %v102
    %v758 = vunpack.c.h.b16 %v102
    %v759 = vunpack.c.l.b16 %v103
    %v760 = vunpack.c.h.b16 %v103
    %v761 = vunpack.c.l.b16 %v104
    %v762 = vunpack.c.h.b16 %v104
    %v763 = vunpack.c.l.b16 %v105
    %v764 = vunpack.c.h.b16 %v105
    %v765 = vunpack.c.l.b16 %v106
    %v766 = vunpack.c.h.b16 %v106
    %v767 = vunpack.c.l.b16 %v107
    %v768 = vunpack.c.h.b16 %v107
    %v769 = vunpack.c.l.b16 %v108
    %v770 = vunpack.c.h.b16 %v108
    %v771 = vunpack.c.l.b16 %v109
    %v772 = vunpack.c.h.b16 %v109
    %v773 = vunpack.c.l.b16 %v110
    %v774 = vunpack.c.h.b16 %v110
    %v775 = vunpack.c.l.b16 %v111
    %v776 = vunpack.c.h.b16 %v111
    %v777 = vunpack.c.l.b16 %v112
    %v778 = vunpack.c.h.b16 %v112
    %v779 = vunpack.c.l.b16 %v113
    %v780 = vunpack.c.h.b16 %v113
    %v781 = vunpack.c.l.b16 %v114
    %v782 = vunpack.c.h.b16 %v114
    %v783 = vunpack.c.l.b16 %v115
    %v784 = vunpack.c.h.b16 %v115
    %v785 = vunpack.c.l.b16 %v116
    %v786 = vunpack.c.h.b16 %v116
    %v787 = vunpack.c.l.b16 %v117
    %v788 = vunpack.c.h.b16 %v117
    %v789 = vunpack.c.l.b16 %v118
    %v790 = vunpack.c.h.b16 %v118
    %v791 = vunpack.c.l.b16 %v119
    %v792 = vunpack.c.h.b16 %v119
    %v793 = vunpack.c.l.b16 %v120
    %v794 = vunpack.c.h.b16 %v120
    %v795 = vunpack.c.l.b16 %v121
    %v796 = vunpack.c.h.b16 %v121
    %v797 = vunpack.c.l.b16 %v122
    %v798 = vunpack.c.h.b16 %v122
    %v799 = vunpack.c.l.b16 %v123
    %v800 = vunpack.c.h.b16 %v123
    %v801 = vunpack.c.l.b16 %v124
    %v802 = vunpack.c.h.b16 %v124
    %v803 = vunpack.c.l.b16 %v125
    %v804 = vunpack.c.h.b16 %v125
    %v805 = vunpack.c.l.b16 %v126
    %v806 = vunpack.c.h.b16 %v126
    %v807 = vunpack.c.l.b16 %v127
    %v808 = vunpack.c.h.b16 %v127
    %v809 = vunpack.c.l.b16 %v128
    %v810 = vunpack.c.h.b16 %v128
    %v811 = vunpack.c.l.b16 %v129
    %v812 = vunpack.c.h.b16 %v129
    %v813 = vunpack.c.l.b16 %v130
    %v814 = vunpack.c.h.b16 %v130
    %v815 = vunpack.c.l.b16 %v131
    %v816 = vunpack.c.h.b16 %v131
    %v817 = vunpack.c.l.b16 %v132
    %v818 = vunpack.c.h.b16 %v132
    %v819 = vunpack.c.l.b16 %v133
    %v820 = vunpack.c.h.b16 %v133
    %v821 = vunpack.c.l.b16 %v134
    %v822 = vunpack.c.h.b16 %v134
    %v823 = vunpack.c.l.b16 %v135
    %v824 = vunpack.c.h.b16 %v135
    %v825 = vpack.c.b16 %v645, %v633
    %v826 = vpack.c.b16 %v646, %v634
    %v827 = vpack.c.b16 %v647, %v635
    %v828 = vpack.c.b16 %v648, %v636
    %v829 = vpack.c.b16 %v649, %v637
    %v830 = vpack.c.b16 %v650, %v638
    %v831 = vpack.c.b16 %v651, %v639
    %v832 = vpack.c.b16 %v652, %v640
    %v833 = vpack.c.b16 %v653, %v641
    %v834 = vpack.c.b16 %v654, %v642
    %v835 = vpack.c.b16 %v655, %v643
    %v836 = vpack.c.b16 %v656, %v644
    %v837 = vpack.c.b16 %v669, %v657
    %v838 = vpack.c.b16 %v670, %v658
    %v839 = vpack.c.b16 %v671, %v659
    %v840 = vpack.c.b16 %v672, %v660
    %v841 = vpack.c.b16 %v673, %v661
    %v842 = vpack.c.b16 %v674, %v662
    %v843 = vpack.c.b16 %v675, %v663
    %v844 = vpack.c.b16 %v676, %v664
    %v845 = vpack.c.b16 %v677, %v665
    %v846 = vpack.c.b16 %v678, %v666
    %v847 = vpack.c.b16 %v679, %v667
    %v848 = vpack.c.b16 %v680, %v668
    %v849 = vpack.c.b16 %v693, %v681
    %v850 = vpack.c.b16 %v694, %v682
    %v851 = vpack.c.b16 %v695, %v683
    %v852 = vpack.c.b16 %v696, %v684
    %v853 = vpack.c.b16 %v697, %v685
    %v854 = vpack.c.b16 %v698, %v686
    %v855 = vpack.c.b16 %v699, %v687
    %v856 = vpack.c.b16 %v700, %v688
    %v857 = vpack.c.b16 %v701, %v689
    %v858 = vpack.c.b16 %v702, %v690
    %v859 = vpack.c.b16 %v703, %v691
    %v860 = vpack.c.b16 %v704, %v692
    %v861 = vpack.c.b16 %v717, %v705
    %v862 = vpack.c.b16 %v718, %v706
    %v863 = vpack.c.b16 %v719, %v707
    %v864 = vpack.c.b16 %v720, %v708
    %v865 = vpack.c.b16 %v721, %v709
    %v866 = vpack.c.b16 %v722, %v710
    %v867 = vpack.c.b16 %v723, %v711
    %v868 = vpack.c.b16 %v724, %v712
    %v869 = vpack.c.b16 %v725, %v713
    %v870 = vpack.c.b16 %v726, %v714
    %v871 = vpack.c.b16 %v727, %v715
    %v872 = vpack.c.b16 %v728, %v716
    %v873 = vpack.c.b16 %v741, %v729
    %v874 = vpack.c.b16 %v742, %v730
    %v875 = vpack.c.b16 %v743, %v731
    %v876 = vpack.c.b16 %v744, %v732
    %v877 = vpack.c.b16 %v745, %v733
    %v878 = vpack.c.b16 %v746, %v734
    %v879 = vpack.c.b16 %v747, %v735
    %v880 = vpack.c.b16 %v748, %v736
    %v881 = vpack.c.b16 %v749, %v737
    %v882 = vpack.c.b16 %v750, %v738
    %v883 = vpack.c.b16 %v751, %v739
    %v884 = vpack.c.b16 %v752, %v740
    %v885 = vpack.c.b16 %v765, %v753
    %v886 = vpack.c.b16 %v766, %v754
    %v887 = vpack.c.b16 %v767, %v755
    %v888 = vpack.c.b16 %v768, %v756
    %v889 = vpack.c.b16 %v769, %v757
    %v890 = vpack.c.b16 %v770, %v758
    %v891 = vpack.c.b16 %v771, %v759
    %v892 = vpack.c.b16 %v772, %v760
    %v893 = vpack.c.b16 %v773, %v761
    %v894 = vpack.c.b16 %v774, %v762
    %v895 = vpack.c.b16 %v775, %v763
    %v896 = vpack.c.b16 %v776, %v764
    %v897 = vpack.c.b16 %v789, %v777
    %v898 = vpack.c.b16 %v790, %v778
    %v899 = vpack.c.b16 %v791, %v779
    %v900 = vpack.c.b16 %v792, %v780
    %v901 = vpack.c.b16 %v793, %v781
    %v902 = vpack.c.b16 %v794, %v782
    %v903 = vpack.c.b16 %v795, %v783
    %v904 = vpack.c.b16 %v796, %v784
    %v905 = vpack.c.b16 %v797, %v785
    %v906 = vpack.c.b16 %v798, %v786
    %v907 = vpack.c.b16 %v799, %v787
    %v908 = vpack.c.b16 %v800, %v788
    %v909 = vpack.c.b16 %v813, %v801
    %v910 = vpack.c.b16 %v814, %v802
    %v911 = vpack.c.b16 %v815, %v803
    %v912 = vpack.c.b16 %v816, %v804
    %v913 = vpack.c.b16 %v817, %v805
    %v914 = vpack.c.b16 %v818, %v806
    %v915 = vpack.c.b16 %v819, %v807
    %v916 = vpack.c.b16 %v820, %v808
    %v917 = vpack.c.b16 %v821, %v809
    %v918 = vpack.c.b16 %v822, %v810
    %v919 = vpack.c.b16 %v823, %v811
    %v920 = vpack.c.b16 %v824, %v812
    %v1401 = vunpack.c.l.b16 %v136
    %v1402 = vunpack.c.h.b16 %v136
    %v1403 = vunpack.c.l.b16 %v137
    %v1404 = vunpack.c.l.b16 %v138
    %v1405 = vunpack.c.h.b16 %v138
    %v1406 = vunpack.c.l.b16 %v139
    %v1407 = vunpack.c.l.b16 %v140
    %v1408 = vunpack.c.h.b16 %v140
    %v1409 = vunpack.c.l.b16 %v141
    %v1410 = vunpack.c.l.b16 %v142
    %v1411 = vunpack.c.h.b16 %v142
    %v1412 = vunpack.c.l.b16 %v143
    %v1413 = vunpack.c.l.b16 %v144
    %v1414 = vunpack.c.h.b16 %v144
    %v1415 = vunpack.c.l.b16 %v145
    %v1416 = vunpack.c.l.b16 %v146
    %v1417 = vunpack.c.h.b16 %v146
    %v1418 = vunpack.c.l.b16 %v147
    %v1419 = vunpack.c.l.b16 %v148
    %v1420 = vunpack.c.h.b16 %v148
    %v1421 = vunpack.c.l.b16 %v149
    %v1422 = vunpack.c.l.b16 %v150
    %v1423 = vunpack.c.h.b16 %v150
    %v1424 = vunpack.c.l.b16 %v151
    %v1425 = vunpack.c.l.b16 %v152
    %v1426 = vunpack.c.h.b16 %v152
    %v1427 = vunpack.c.l.b16 %v153
    %v1428 = vunpack.c.l.b16 %v154
    %v1429 = vunpack.c.h.b16 %v154
    %v1430 = vunpack.c.l.b16 %v155
    %v1431 = vunpack.c.l.b16 %v156
    %v1432 = vunpack.c.h.b16 %v156
    %v1433 = vunpack.c.l.b16 %v157
    %v1434 = vunpack.c.l.b16 %v158
    %v1435 = vunpack.c.h.b16 %v158
    %v1436 = vunpack.c.l.b16 %v159
    %v1437 = vunpack.c.l.b16 %v160
    %v1438 = vunpack.c.h.b16 %v160
    %v1439 = vunpack.c.l.b16 %v161
    %v1440 = vunpack.c.l.b16 %v162
    %v1441 = vunpack.c.h.b16 %v162
    %v1442 = vunpack.c.l.b16 %v163
    %v1443 = vunpack.c.l.b16 %v164
    %v1444 = vunpack.c.h.b16 %v164
    %v1445 = vunpack.c.l.b16 %v165
    %v1446 = vunpack.c.l.b16 %v166
    %v1447 = vunpack.c.h.b16 %v166
    %v1448 = vunpack.c.l.b16 %v167
    %v1449 = vunpack.c.l.b16 %v168
    %v1450 = vunpack.c.h.b16 %v168
    %v1451 = vunpack.c.l.b16 %v169
    %v1452 = vunpack.c.l.b16 %v170
    %v1453 = vunpack.c.h.b16 %v170
    %v1454 = vunpack.c.l.b16 %v171
    %v1455 = vunpack.c.l.b16 %v172
    %v1456 = vunpack.c.h.b16 %v172
    %v1457 = vunpack.c.l.b16 %v173
    %v1458 = vunpack.c.l.b16 %v174
    %v1459 = vunpack.c.h.b16 %v174
    %v1460 = vunpack.c.l.b16 %v175
    %v1461 = vunpack.c.l.b16 %v176
    %v1462 = vunpack.c.h.b16 %v176
    %v1463 = vunpack.c.l.b16 %v177
    %v1464 = vunpack.c.l.b16 %v178
    %v1465 = vunpack.c.h.b16 %v178
    %v1466 = vunpack.c.l.b16 %v179
    %v1467 = vunpack.c.l.b16 %v180
    %v1468 = vunpack.c.h.b16 %v180
    %v1469 = vunpack.c.l.b16 %v181
    %v1470 = vunpack.c.l.b16 %v182
    %v1471 = vunpack.c.h.b16 %v182
    %v1472 = vunpack.c.l.b16 %v183
    %v1473 = vunpack.c.l.b16 %v184
    %v1474 = vunpack.c.h.b16 %v184
    %v1475 = vunpack.c.l.b16 %v185
    %v1476 = vunpack.c.l.b16 %v186
    %v1477 = vunpack.c.h.b16 %v186
    %v1478 = vunpack.c.l.b16 %v187
    %v1479 = vunpack.c.l.b16 %v188
    %v1480 = vunpack.c.h.b16 %v188
    %v1481 = vunpack.c.l.b16 %v189
    %v1482 = vunpack.c.l.b16 %v190
    %v1483 = vunpack.c.h.b16 %v190
    %v1484 = vunpack.c.l.b16 %v191
    %v1485 = vunpack.c.l.b16 %v192
    %v1486 = vunpack.c.h.b16 %v192
    %v1487 = vunpack.c.l.b16 %v193
    %v1488 = vunpack.c.l.b16 %v194
    %v1489 = vunpack.c.h.b16 %v194
    %v1490 = vunpack.c.l.b16 %v195
    %v1491 = vunpack.c.l.b16 %v196
    %v1492 = vunpack.c.h.b16 %v196
    %v1493 = vunpack.c.l.b16 %v197
    %v1494 = vunpack.c.l.b16 %v198
    %v1495 = vunpack.c.h.b16 %v198
    %v1496 = vunpack.c.l.b16 %v199
    %v1497 = vunpack.c.l.b16 %v200
    %v1498 = vunpack.c.h.b16 %v200
    %v1499 = vunpack.c.l.b16 %v201
    %v1500 = vunpack.c.l.b16 %v202
    %v1501 = vunpack.c.h.b16 %v202
    %v1502 = vunpack.c.l.b16 %v203
    %v1503 = vunpack.c.l.b16 %v204
    %v1504 = vunpack.c.h.b16 %v204
    %v1505 = vunpack.c.l.b16 %v205
    %v1506 = vunpack.c.l.b16 %v206
    %v1507 = vunpack.c.h.b16 %v206
    %v1508 = vunpack.c.l.b16 %v207
    %v1509 = vunpack.c.l.b16 %v208
    %v1510 = vunpack.c.h.b16 %v208
    %v1511 = vunpack.c.l.b16 %v209
    %v1512 = vunpack.c.l.b16 %v210
    %v1513 = vunpack.c.h.b16 %v210
    %v1514 = vunpack.c.l.b16 %v211
    %v1515 = vunpack.c.l.b16 %v212
    %v1516 = vunpack.c.h.b16 %v212
    %v1517 = vunpack.c.l.b16 %v213
    %v1518 = vunpack.c.l.b16 %v214
    %v1519 = vunpack.c.h.b16 %v214
    %v1520 = vunpack.c.l.b16 %v215
    %v1521 = vunpack.c.l.b16 %v216
    %v1522 = vunpack.c.h.b16 %v216
    %v1523 = vunpack.c.l.b16 %v217
    %v1524 = vunpack.c.l.b16 %v218
    %v1525 = vunpack.c.h.b16 %v218
    %v1526 = vunpack.c.l.b16 %v219
    %v1527 = vunpack.c.l.b16 %v220
    %v1528 = vunpack.c.h.b16 %v220
    %v1529 = vunpack.c.l.b16 %v221
    %v1530 = vunpack.c.l.b16 %v222
    %v1531 = vunpack.c.h.b16 %v222
    %v1532 = vunpack.c.l.b16 %v223
    %v1533 = vunpack.c.l.b16 %v224
    %v1534 = vunpack.c.h.b16 %v224
    %v1535 = vunpack.c.l.b16 %v225
    %v1536 = vunpack.c.l.b16 %v226
    %v1537 = vunpack.c.h.b16 %v226
    %v1538 = vunpack.c.l.b16 %v227
    %v1539 = vunpack.c.l.b16 %v228
    %v1540 = vunpack.c.h.b16 %v228
    %v1541 = vunpack.c.l.b16 %v229
    %v1542 = vunpack.c.l.b16 %v230
    %v1543 = vunpack.c.h.b16 %v230
    %v1544 = vunpack.c.l.b16 %v231
    %v1545 = vunpack.c.l.b16 %v232
    %v1546 = vunpack.c.h.b16 %v232
    %v1547 = vunpack.c.l.b16 %v233
    %v1548 = vunpack.c.l.b16 %v234
    %v1549 = vunpack.c.h.b16 %v234
    %v1550 = vunpack.c.l.b16 %v235
    %v1551 = vunpack.c.l.b16 %v236
    %v1552 = vunpack.c.h.b16 %v236
    %v1553 = vunpack.c.l.b16 %v237
    %v1554 = vunpack.c.l.b16 %v238
    %v1555 = vunpack.c.h.b16 %v238
    %v1556 = vunpack.c.l.b16 %v239
    %v1557 = vunpack.c.l.b16 %v240
    %v1558 = vunpack.c.h.b16 %v240
    %v1559 = vunpack.c.l.b16 %v241
    %v1560 = vunpack.c.l.b16 %v242
    %v1561 = vunpack.c.h.b16 %v242
    %v1562 = vunpack.c.l.b16 %v243
    %v1563 = vunpack.c.l.b16 %v244
    %v1564 = vunpack.c.h.b16 %v244
    %v1565 = vunpack.c.l.b16 %v245
    %v1566 = vunpack.c.l.b16 %v246
    %v1567 = vunpack.c.h.b16 %v246
    %v1568 = vunpack.c.l.b16 %v247
    %v1569 = vunpack.c.l.b16 %v248
    %v1570 = vunpack.c.h.b16 %v248
    %v1571 = vunpack.c.l.b16 %v249
    %v1572 = vunpack.c.l.b16 %v250
    %v1573 = vunpack.c.h.b16 %v250
    %v1574 = vunpack.c.l.b16 %v251
    %v1575 = vunpack.c.l.b16 %v252
    %v1576 = vunpack.c.h.b16 %v252
    %v1577 = vunpack.c.l.b16 %v253
    %v1578 = vunpack.c.l.b16 %v254
    %v1579 = vunpack.c.h.b16 %v254
    %v1580 = vunpack.c.l.b16 %v255
    %v1581 = vunpack.c.l.b16 %v256
    %v1582 = vunpack.c.h.b16 %v256
    %v1583 = vunpack.c.l.b16 %v257
    %v1584 = vunpack.c.l.b16 %v258
    %v1585 = vunpack.c.h.b16 %v258
    %v1586 = vunpack.c.l.b16 %v259
    %v1587 = vunpack.c.l.b16 %v260
    %v1588 = vunpack.c.h.b16 %v260
    %v1589 = vunpack.c.l.b16 %v261
    %v1590 = vunpack.c.l.b16 %v262
    %v1591 = vunpack.c.h.b16 %v262
    %v1592 = vunpack.c.l.b16 %v263
    %v1593 = vunpack.c.l.b16 %v264
    %v1594 = vunpack.c.h.b16 %v264
    %v1595 = vunpack.c.l.b16 %v265
    %v1596 = vunpack.c.l.b16 %v266
    %v1597 = vunpack.c.h.b16 %v266
    %v1598 = vunpack.c.l.b16 %v267
    %v1599 = vunpack.c.l.b16 %v268
    %v1600 = vunpack.c.h.b16 %v268
    %v1601 = vunpack.c.l.b16 %v269
    %v1602 = vunpack.c.l.b16 %v270
    %v1603 = vunpack.c.h.b16 %v270
    %v1604 = vunpack.c.l.b16 %v271
    %v1605 = vunpack.c.l.b16 %v272
    %v1606 = vunpack.c.h.b16 %v272
    %v1607 = vunpack.c.l.b16 %v273
    %v1608 = vunpack.c.l.b16 %v274
    %v1609 = vunpack.c.h.b16 %v274
    %v1610 = vunpack.c.l.b16 %v275
    %v1611 = vunpack.c.l.b16 %v276
    %v1612 = vunpack.c.h.b16 %v276
    %v1613 = vunpack.c.l.b16 %v277
    %v1614 = vunpack.c.l.b16 %v278
    %v1615 = vunpack.c.h.b16 %v278
    %v1616 = vunpack.c.l.b16 %v279
    %v1617 = vunpack.c.l.b16 %v280
    %v1618 = vunpack.c.h.b16 %v280
    %v1619 = vunpack.c.l.b16 %v281
    %v1620 = vunpack.c.l.b16 %v282
    %v1621 = vunpack.c.h.b16 %v282
    %v1622 = vunpack.c.l.b16 %v283
    %v1623 = vunpack.c.l.b16 %v284
    %v1624 = vunpack.c.h.b16 %v284
    %v1625 = vunpack.c.l.b16 %v285
    %v1626 = vunpack.c.l.b16 %v286
    %v1627 = vunpack.c.h.b16 %v286
    %v1628 = vunpack.c.l.b16 %v287
    %v1629 = vunpack.c.l.b16 %v288
    %v1630 = vunpack.c.h.b16 %v288
    %v1631 = vunpack.c.l.b16 %v289
    %v1632 = vunpack.c.l.b16 %v290
    %v1633 = vunpack.c.h.b16 %v290
    %v1634 = vunpack.c.l.b16 %v291
    %v1635 = vunpack.c.l.b16 %v292
    %v1636 = vunpack.c.h.b16 %v292
    %v1637 = vunpack.c.l.b16 %v293
    %v1638 = vunpack.c.l.b16 %v294
    %v1639 = vunpack.c.h.b16 %v294
    %v1640 = vunpack.c.l.b16 %v295
    %v1641 = vunpack.c.l.b16 %v296
    %v1642 = vunpack.c.h.b16 %v296
    %v1643 = vunpack.c.l.b16 %v297
    %v1644 = vunpack.c.l.b16 %v298
    %v1645 = vunpack.c.h.b16 %v298
    %v1646 = vunpack.c.l.b16 %v299
    %v1647 = vunpack.c.l.b16 %v300
    %v1648 = vunpack.c.h.b16 %v300
    %v1649 = vunpack.c.l.b16 %v301
    %v1650 = vunpack.c.l.b16 %v302
    %v1651 = vunpack.c.h.b16 %v302
    %v1652 = vunpack.c.l.b16 %v303
    %v1653 = vunpack.c.l.b16 %v304
    %v1654 = vunpack.c.h.b16 %v304
    %v1655 = vunpack.c.l.b16 %v305
    %v1656 = vunpack.c.l.b16 %v306
    %v1657 = vunpack.c.h.b16 %v306
    %v1658 = vunpack.c.l.b16 %v307
    %v1659 = vunpack.c.l.b16 %v308
    %v1660 = vunpack.c.h.b16 %v308
    %v1661 = vunpack.c.l.b16 %v309
    %v1662 = vunpack.c.l.b16 %v310
    %v1663 = vunpack.c.h.b16 %v310
    %v1664 = vunpack.c.l.b16 %v311
    %v1665 = vunpack.c.l.b16 %v312
    %v1666 = vunpack.c.h.b16 %v312
    %v1667 = vunpack.c.l.b16 %v313
    %v1668 = vunpack.c.l.b16 %v314
    %v1669 = vunpack.c.h.b16 %v314
    %v1670 = vunpack.c.l.b16 %v315
    %v1671 = vunpack.c.l.b16 %v316
    %v1672 = vunpack.c.h.b16 %v316
    %v1673 = vunpack.c.l.b16 %v317
    %v1674 = vunpack.c.l.b16 %v318
    %v1675 = vunpack.c.h.b16 %v318
    %v1676 = vunpack.c.l.b16 %v319
    %v1677 = vunpack.c.l.b16 %v320
    %v1678 = vunpack.c.h.b16 %v320
    %v1679 = vunpack.c.l.b16 %v321
    %v1680 = vunpack.c.l.b16 %v322
    %v1681 = vunpack.c.h.b16 %v322
    %v1682 = vunpack.c.l.b16 %v323
    %v1683 = vunpack.c.l.b16 %v324
    %v1684 = vunpack.c.h.b16 %v324
    %v1685 = vunpack.c.l.b16 %v325
    %v1686 = vunpack.c.l.b16 %v326
    %v1687 = vunpack.c.h.b16 %v326
    %v1688 = vunpack.c.l.b16 %v327
    %v1689 = vunpack.c.l.b16 %v328
    %v1690 = vunpack.c.h.b16 %v328
    %v1691 = vunpack.c.l.b16 %v329
    %v1692 = vunpack.c.l.b16 %v330
    %v1693 = vunpack.c.h.b16 %v330
    %v1694 = vunpack.c.l.b16 %v331
    %v1695 = vunpack.c.l.b16 %v332
    %v1696 = vunpack.c.h.b16 %v332
    %v1697 = vunpack.c.l.b16 %v333
    %v1698 = vunpack.c.l.b16 %v334
    %v1699 = vunpack.c.h.b16 %v334
    %v1700 = vunpack.c.l.b16 %v335
    %v1701 = vunpack.c.l.b16 %v336
    %v1702 = vunpack.c.h.b16 %v336
    %v1703 = vunpack.c.l.b16 %v337
    %v1704 = vunpack.c.l.b16 %v338
    %v1705 = vunpack.c.h.b16 %v338
    %v1706 = vunpack.c.l.b16 %v339
    %v1707 = vunpack.c.l.b16 %v340
    %v1708 = vunpack.c.h.b16 %v340
    %v1709 = vunpack.c.l.b16 %v341
    %v1710 = vunpack.c.l.b16 %v342
    %v1711 = vunpack.c.h.b16 %v342
    %v1712 = vunpack.c.l.b16 %v343
    %v1713 = vunpack.c.l.b16 %v344
    %v1714 = vunpack.c.h.b16 %v344
    %v1715 = vunpack.c.l.b16 %v345
    %v1716 = vunpack.c.l.b16 %v346
    %v1717 = vunpack.c.h.b16 %v346
    %v1718 = vunpack.c.l.b16 %v347
    %v1719 = vunpack.c.l.b16 %v348
    %v1720 = vunpack.c.h.b16 %v348
    %v1721 = vunpack.c.l.b16 %v349
    %v1722 = vunpack.c.l.b16 %v350
    %v1723 = vunpack.c.h.b16 %v350
    %v1724 = vunpack.c.l.b16 %v351
    %v1725 = vunpack.c.l.b16 %v352
    %v1726 = vunpack.c.h.b16 %v352
    %v1727 = vunpack.c.l.b16 %v353
    %v1728 = vunpack.c.l.b16 %v354
    %v1729 = vunpack.c.h.b16 %v354
    %v1730 = vunpack.c.l.b16 %v355
    %v1731 = vunpack.c.l.b16 %v356
    %v1732 = vunpack.c.h.b16 %v356
    %v1733 = vunpack.c.l.b16 %v357
    %v1734 = vunpack.c.l.b16 %v358
    %v1735 = vunpack.c.h.b16 %v358
    %v1736 = vunpack.c.l.b16 %v359
    %v1737 = vunpack.c.l.b16 %v360
    %v1738 = vunpack.c.h.b16 %v360
    %v1739 = vunpack.c.l.b16 %v361
    %v1740 = vunpack.c.l.b16 %v362
    %v1741 = vunpack.c.h.b16 %v362
    %v1742 = vunpack.c.l.b16 %v363
    %v1743 = vunpack.c.l.b16 %v364
    %v1744 = vunpack.c.h.b16 %v364
    %v1745 = vunpack.c.l.b16 %v365
    %v1746 = vunpack.c.l.b16 %v366
    %v1747 = vunpack.c.h.b16 %v366
    %v1748 = vunpack.c.l.b16 %v367
    %v1749 = vunpack.c.l.b16 %v368
    %v1750 = vunpack.c.h.b16 %v368
    %v1751 = vunpack.c.l.b16 %v369
    %v1752 = vunpack.c.l.b16 %v370
    %v1753 = vunpack.c.h.b16 %v370
    %v1754 = vunpack.c.l.b16 %v371
    %v1755 = vunpack.c.l.b16 %v372
    %v1756 = vunpack.c.h.b16 %v372
    %v1757 = vunpack.c.l.b16 %v373
    %v1758 = vunpack.c.l.b16 %v374
    %v1759 = vunpack.c.h.b16 %v374
    %v1760 = vunpack.c.l.b16 %v375
    %v1761 = vunpack.c.l.b16 %v376
    %v1762 = vunpack.c.h.b16 %v376
    %v1763 = vunpack.c.l.b16 %v377
    %v1764 = vunpack.c.l.b16 %v378
    %v1765 = vunpack.c.h.b16 %v378
    %v1766 = vunpack.c.l.b16 %v379
    %v1767 = vunpack.c.l.b16 %v380
    %v1768 = vunpack.c.h.b16 %v380
    %v1769 = vunpack.c.l.b16 %v381
    %v1770 = vunpack.c.l.b16 %v382
    %v1771 = vunpack.c.h.b16 %v382
    %v1772 = vunpack.c.l.b16 %v383
    %v1773 = vunpack.c.l.b16 %v384
    %v1774 = vunpack.c.h.b16 %v384
    %v1775 = vunpack.c.l.b16 %v385
    %v1776 = vunpack.c.l.b16 %v386
    %v1777 = vunpack.c.h.b16 %v386
    %v1778 = vunpack.c.l.b16 %v387
    %v1779 = vunpack.c.l.b16 %v388
    %v1780 = vunpack.c.h.b16 %v388
    %v1781 = vunpack.c.l.b16 %v389
    %v1782 = vunpack.c.l.b16 %v390
    %v1783 = vunpack.c.h.b16 %v390
    %v1784 = vunpack.c.l.b16 %v391
    %v1785 = vunpack.c.l.b16 %v392
    %v1786 = vunpack.c.h.b16 %v392
    %v1787 = vunpack.c.l.b16 %v393
    %v1788 = vunpack.c.l.b16 %v394
    %v1789 = vunpack.c.h.b16 %v394
    %v1790 = vunpack.c.l.b16 %v395
    %v1791 = vunpack.c.l.b16 %v396
    %v1792 = vunpack.c.h.b16 %v396
    %v1793 = vunpack.c.l.b16 %v397
    %v1794 = vunpack.c.l.b16 %v398
    %v1795 = vunpack.c.h.b16 %v398
    %v1796 = vunpack.c.l.b16 %v399
    %v1797 = vunpack.c.l.b16 %v400
    %v1798 = vunpack.c.h.b16 %v400
    %v1799 = vunpack.c.l.b16 %v401
    %v1800 = vunpack.c.l.b16 %v402
    %v1801 = vunpack.c.h.b16 %v402
    %v1802 = vunpack.c.l.b16 %v403
    %v1803 = vunpack.c.l.b16 %v404
    %v1804 = vunpack.c.h.b16 %v404
    %v1805 = vunpack.c.l.b16 %v405
    %v1806 = vunpack.c.l.b16 %v406
    %v1807 = vunpack.c.h.b16 %v406
    %v1808 = vunpack.c.l.b16 %v407
    %v1809 = vunpack.c.l.b16 %v408
    %v1810 = vunpack.c.h.b16 %v408
    %v1811 = vunpack.c.l.b16 %v409
    %v1812 = vunpack.c.l.b16 %v410
    %v1813 = vunpack.c.h.b16 %v410
    %v1814 = vunpack.c.l.b16 %v411
    %v1815 = vunpack.c.l.b16 %v412
    %v1816 = vunpack.c.h.b16 %v412
    %v1817 = vunpack.c.l.b16 %v413
    %v1818 = vunpack.c.l.b16 %v414
    %v1819 = vunpack.c.h.b16 %v414
    %v1820 = vunpack.c.l.b16 %v415
    %v1821 = vunpack.c.l.b16 %v416
    %v1822 = vunpack.c.h.b16 %v416
    %v1823 = vunpack.c.l.b16 %v417
    %v1824 = vunpack.c.l.b16 %v418
    %v1825 = vunpack.c.h.b16 %v418
    %v1826 = vunpack.c.l.b16 %v419
    %v1827 = vunpack.c.l.b16 %v420
    %v1828 = vunpack.c.h.b16 %v420
    %v1829 = vunpack.c.l.b16 %v421
    %v1830 = vunpack.c.l.b16 %v422
    %v1831 = vunpack.c.h.b16 %v422
    %v1832 = vunpack.c.l.b16 %v423
    %v1833 = vunpack.c.l.b16 %v424
    %v1834 = vunpack.c.h.b16 %v424
    %v1835 = vunpack.c.l.b16 %v425
    %v1836 = vunpack.c.l.b16 %v426
    %v1837 = vunpack.c.h.b16 %v426
    %v1838 = vunpack.c.l.b16 %v427
    %v1839 = vunpack.c.l.b16 %v428
    %v1840 = vunpack.c.h.b16 %v428
    %v1841 = vunpack.c.l.b16 %v429
    %v1842 = vunpack.c.l.b16 %v430
    %v1843 = vunpack.c.h.b16 %v430
    %v1844 = vunpack.c.l.b16 %v431
    %v1845 = vunpack.c.l.b16 %v432
    %v1846 = vunpack.c.h.b16 %v432
    %v1847 = vunpack.c.l.b16 %v433
    %v1848 = vunpack.c.l.b16 %v434
    %v1849 = vunpack.c.h.b16 %v434
    %v1850 = vunpack.c.l.b16 %v435
    %v1851 = vunpack.c.l.b16 %v436
    %v1852 = vunpack.c.h.b16 %v436
    %v1853 = vunpack.c.l.b16 %v437
    %v1854 = vunpack.c.l.b16 %v438
    %v1855 = vunpack.c.h.b16 %v438
    %v1856 = vunpack.c.l.b16 %v439
    %v1857 = vunpack.c.l.b16 %v440
    %v1858 = vunpack.c.h.b16 %v440
    %v1859 = vunpack.c.l.b16 %v441
    %v1860 = vunpack.c.l.b16 %v442
    %v1861 = vunpack.c.h.b16 %v442
    %v1862 = vunpack.c.l.b16 %v443
    %v1863 = vunpack.c.l.b16 %v444
    %v1864 = vunpack.c.h.b16 %v444
    %v1865 = vunpack.c.l.b16 %v445
    %v1866 = vunpack.c.l.b16 %v446
    %v1867 = vunpack.c.h.b16 %v446
    %v1868 = vunpack.c.l.b16 %v447
    %v1869 = vunpack.c.l.b16 %v448
    %v1870 = vunpack.c.h.b16 %v448
    %v1871 = vunpack.c.l.b16 %v449
    %v1872 = vunpack.c.l.b16 %v450
    %v1873 = vunpack.c.h.b16 %v450
    %v1874 = vunpack.c.l.b16 %v451
    %v1875 = vunpack.c.l.b16 %v452
    %v1876 = vunpack.c.h.b16 %v452
    %v1877 = vunpack.c.l.b16 %v453
    %v1878 = vunpack.c.l.b16 %v454
    %v1879 = vunpack.c.h.b16 %v454
    %v1880 = vunpack.c.l.b16 %v455
    %v1881 = vunpack.c.l.b16 %v456
    %v1882 = vunpack.c.h.b16 %v456
    %v1883 = vunpack.c.l.b16 %v457
    %v1884 = vunpack.c.l.b16 %v458
    %v1885 = vunpack.c.h.b16 %v458
    %v1886 = vunpack.c.l.b16 %v459
    %v1887 = vunpack.c.l.b16 %v460
    %v1888 = vunpack.c.h.b16 %v460
    %v1889 = vunpack.c.l.b16 %v461
    %v1890 = vunpack.c.l.b16 %v462
    %v1891 = vunpack.c.h.b16 %v462
    %v1892 = vunpack.c.l.b16 %v463
    %v1893 = vunpack.c.l.b16 %v464
    %v1894 = vunpack.c.h.b16 %v464
    %v1895 = vunpack.c.l.b16 %v465
    %v1896 = vunpack.c.l.b16 %v466
    %v1897 = vunpack.c.h.b16 %v466
    %v1898 = vunpack.c.l.b16 %v467
    %v1899 = vunpack.c.l.b16 %v468
    %v1900 = vunpack.c.h.b16 %v468
    %v1901 = vunpack.c.l.b16 %v469
    %v1902 = vunpack.c.l.b16 %v470
    %v1903 = vunpack.c.h.b16 %v470
    %v1904 = vunpack.c.l.b16 %v471
    %v1905 = vunpack.c.l.b16 %v472
    %v1906 = vunpack.c.h.b16 %v472
    %v1907 = vunpack.c.l.b16 %v473
    %v1908 = vunpack.c.l.b16 %v474
    %v1909 = vunpack.c.h.b16 %v474
    %v1910 = vunpack.c.l.b16 %v475
    %v1911 = vunpack.c.l.b16 %v476
    %v1912 = vunpack.c.h.b16 %v476
    %v1913 = vunpack.c.l.b16 %v477
    %v1914 = vunpack.c.l.b16 %v478
    %v1915 = vunpack.c.h.b16 %v478
    %v1916 = vunpack.c.l.b16 %v479
    %v1917 = vunpack.c.l.b16 %v480
    %v1918 = vunpack.c.h.b16 %v480
    %v1919 = vunpack.c.l.b16 %v481
    %v1920 = vunpack.c.l.b16 %v482
    %v1921 = vunpack.c.h.b16 %v482
    %v1922 = vunpack.c.l.b16 %v483
    %v1923 = vunpack.c.l.b16 %v484
    %v1924 = vunpack.c.h.b16 %v484
    %v1925 = vunpack.c.l.b16 %v485
    %v1926 = vunpack.c.l.b16 %v486
    %v1927 = vunpack.c.h.b16 %v486
    %v1928 = vunpack.c.l.b16 %v487
    %v1929 = vunpack.c.l.b16 %v488
    %v1930 = vunpack.c.h.b16 %v488
    %v1931 = vunpack.c.l.b16 %v489
    %v1932 = vunpack.c.l.b16 %v490
    %v1933 = vunpack.c.h.b16 %v490
    %v1934 = vunpack.c.l.b16 %v491
    %v1935 = vunpack.c.l.b16 %v492
    %v1936 = vunpack.c.h.b16 %v492
    %v1937 = vunpack.c.l.b16 %v493
    %v1938 = vunpack.c.l.b16 %v494
    %v1939 = vunpack.c.h.b16 %v494
    %v1940 = vunpack.c.l.b16 %v495
    %v1941 = vunpack.c.l.b16 %v496
    %v1942 = vunpack.c.h.b16 %v496
    %v1943 = vunpack.c.l.b16 %v497
    %v1944 = vunpack.c.l.b16 %v498
    %v1945 = vunpack.c.h.b16 %v498
    %v1946 = vunpack.c.l.b16 %v499
    %v1947 = vunpack.c.l.b16 %v500
    %v1948 = vunpack.c.h.b16 %v500
    %v1949 = vunpack.c.l.b16 %v501
    %v1950 = vunpack.c.l.b16 %v502
    %v1951 = vunpack.c.h.b16 %v502
    %v1952 = vunpack.c.l.b16 %v503
    %v1953 = vunpack.c.l.b16 %v504
    %v1954 = vunpack.c.h.b16 %v504
    %v1955 = vunpack.c.l.b16 %v505
    %v1956 = vunpack.c.l.b16 %v506
    %v1957 = vunpack.c.h.b16 %v506
    %v1958 = vunpack.c.l.b16 %v507
    %v1959 = vunpack.c.l.b16 %v508
    %v1960 = vunpack.c.h.b16 %v508
    %v1961 = vunpack.c.l.b16 %v509
    %v1962 = vunpack.c.l.b16 %v510
    %v1963 = vunpack.c.h.b16 %v510
    %v1964 = vunpack.c.l.b16 %v511
    %v1965 = vunpack.c.l.b16 %v512
    %v1966 = vunpack.c.h.b16 %v512
    %v1967 = vunpack.c.l.b16 %v513
    %v1968 = vunpack.c.l.b16 %v514
    %v1969 = vunpack.c.h.b16 %v514
    %v1970 = vunpack.c.l.b16 %v515
    %v1971 = vunpack.c.l.b16 %v516
    %v1972 = vunpack.c.h.b16 %v516
    %v1973 = vunpack.c.l.b16 %v517
    %v1974 = vunpack.c.l.b16 %v518
    %v1975 = vunpack.c.h.b16 %v518
    %v1976 = vunpack.c.l.b16 %v519
    %v1977 = vpack.c.b16 %v1404, %v1401
    %v1978 = vpack.c.b16 %v1405, %v1402
    %v1979 = vpack.c.b16 %v1406, %v1403
    %v1980 = vpack.c.b16 %v1410, %v1407
    %v1981 = vpack.c.b16 %v1411, %v1408
    %v1982 = vpack.c.b16 %v1412, %v1409
    %v1983 = vpack.c.b16 %v1416, %v1413
    %v1984 = vpack.c.b16 %v1417, %v1414
    %v1985 = vpack.c.b16 %v1418, %v1415
    %v1986 = vpack.c.b16 %v1422, %v1419
    %v1987 = vpack.c.b16 %v1423, %v1420
    %v1988 = vpack.c.b16 %v1424, %v1421
    %v1989 = vpack.c.b16 %v1428, %v1425
    %v1990 = vpack.c.b16 %v1429, %v1426
    %v1991 = vpack.c.b16 %v1430, %v1427
    %v1992 = vpack.c.b16 %v1434, %v1431
    %v1993 = vpack.c.b16 %v1435, %v1432
    %v1994 = vpack.c.b16 %v1436, %v1433
    %v1995 = vpack.c.b16 %v1440, %v1437
    %v1996 = vpack.c.b16 %v1441, %v1438
    %v1997 = vpack.c.b16 %v1442, %v1439
    %v1998 = vpack.c.b16 %v1446, %v1443
    %v1999 = vpack.c.b16 %v1447, %v1444
    %v2000 = vpack.c.b16 %v1448, %v1445
    %v2001 = vpack.c.b16 %v1452, %v1449
    %v2002 = vpack.c.b16 %v1453, %v1450
    %v2003 = vpack.c.b16 %v1454, %v1451
    %v2004 = vpack.c.b16 %v1458, %v1455
    %v2005 = vpack.c.b16 %v1459, %v1456
    %v2006 = vpack.c.b16 %v1460, %v1457
    %v2007 = vpack.c.b16 %v1464, %v1461
    %v2008 = vpack.c.b16 %v1465, %v1462
    %v2009 = vpack.c.b16 %v1466, %v1463
    %v2010 = vpack.c.b16 %v1470, %v1467
    %v2011 = vpack.c.b16 %v1471, %v1468
    %v2012 = vpack.c.b16 %v1472, %v1469
    %v2013 = vpack.c.b16 %v1476, %v1473
    %v2014 = vpack.c.b16 %v1477, %v1474
    %v2015 = vpack.c.b16 %v1478, %v1475
    %v2016 = vpack.c.b16 %v1482, %v1479
    %v2017 = vpack.c.b16 %v1483, %v1480
    %v2018 = vpack.c.b16 %v1484, %v1481
    %v2019 = vpack.c.b16 %v1488, %v1485
    %v2020 = vpack.c.b16 %v1489, %v1486
    %v2021 = vpack.c.b16 %v1490, %v1487
    %v2022 = vpack.c.b16 %v1494, %v1491
    %v2023 = vpack.c.b16 %v1495, %v1492
    %v2024 = vpack.c.b16 %v1496, %v1493
    %v2025 = vpack.c.b16 %v1500, %v1497
    %v2026 = vpack.c.b16 %v1501, %v1498
    %v2027 = vpack.c.b16 %v1502, %v1499
    %v2028 = vpack.c.b16 %v1506, %v1503
    %v2029 = vpack.c.b16 %v1507, %v1504
    %v2030 = vpack.c.b16 %v1508, %v1505
    %v2031 = vpack.c.b16 %v1512, %v1509
    %v2032 = vpack.c.b16 %v1513, %v1510
    %v2033 = vpack.c.b16 %v1514, %v1511
    %v2034 = vpack.c.b16 %v1518, %v1515
    %v2035 = vpack.c.b16 %v1519, %v1516
    %v2036 = vpack.c.b16 %v1520, %v1517
    %v2037 = vpack.c.b16 %v1524, %v1521
    %v2038 = vpack.c.b16 %v1525, %v1522
    %v2039 = vpack.c.b16 %v1526, %v1523
    %v2040 = vpack.c.b16 %v1530, %v1527
    %v2041 = vpack.c.b16 %v1531, %v1528
    %v2042 = vpack.c.b16 %v1532, %v1529
    %v2043 = vpack.c.b16 %v1536, %v1533
    %v2044 = vpack.c.b16 %v1537, %v1534
    %v2045 = vpack.c.b16 %v1538, %v1535
    %v2046 = vpack.c.b16 %v1542, %v1539
    %v2047 = vpack.c.b16 %v1543, %v1540
    %v2048 = vpack.c.b16 %v1544, %v1541
    %v2049 = vpack.c.b16 %v1548, %v1545
    %v2050 = vpack.c.b16 %v1549, %v1546
    %v2051 = vpack.c.b16 %v1550, %v1547
    %v2052 = vpack.c.b16 %v1554, %v1551
    %v2053 = vpack.c.b16 %v1555, %v1552
    %v2054 = vpack.c.b16 %v1556, %v1553
    %v2055 = vpack.c.b16 %v1560, %v1557
    %v2056 = vpack.c.b16 %v1561, %v1558
    %v2057 = vpack.c.b16 %v1562, %v1559
    %v2058 = vpack.c.b16 %v1566, %v1563
    %v2059 = vpack.c.b16 %v1567, %v1564
    %v2060 = vpack.c.b16 %v1568, %v1565
    %v2061 = vpack.c.b16 %v1572, %v1569
    %v2062 = vpack.c.b16 %v1573, %v1570
    %v2063 = vpack.c.b16 %v1574, %v1571
    %v2064 = vpack.c.b16 %v1578, %v1575
    %v2065 = vpack.c.b16 %v1579, %v1576
    %v2066 = vpack.c.b16 %v1580, %v1577
    %v2067 = vpack.c.b16 %v1584, %v1581
    %v2068 = vpack.c.b16 %v1585, %v1582
    %v2069 = vpack.c.b16 %v1586, %v1583
    %v2070 = vpack.c.b16 %v1590, %v1587
    %v2071 = vpack.c.b16 %v1591, %v1588
    %v2072 = vpack.c.b16 %v1592, %v1589
    %v2073 = vpack.c.b16 %v1596, %v1593
    %v2074 = vpack.c.b16 %v1597, %v1594
    %v2075 = vpack.c.b16 %v1598, %v1595
    %v2076 = vpack.c.b16 %v1602, %v1599
    %v2077 = vpack.c.b16 %v1603, %v1600
    %v2078 = vpack.c.b16 %v1604, %v1601
    %v2079 = vpack.c.b16 %v1608, %v1605
    %v2080 = vpack.c.b16 %v1609, %v1606
    %v2081 = vpack.c.b16 %v1610, %v1607
    %v2082 = vpack.c.b16 %v1614, %v1611
    %v2083 = vpack.c.b16 %v1615, %v1612
    %v2084 = vpack.c.b16 %v1616, %v1613
    %v2085 = vpack.c.b16 %v1620, %v1617
    %v2086 = vpack.c.b16 %v1621, %v1618
    %v2087 = vpack.c.b16 %v1622, %v1619
    %v2088 = vpack.c.b16 %v1626, %v1623
    %v2089 = vpack.c.b16 %v1627, %v1624
    %v2090 = vpack.c.b16 %v1628, %v1625
    %v2091 = vpack.c.b16 %v1632, %v1629
    %v2092 = vpack.c.b16 %v1633, %v1630
    %v2093 = vpack.c.b16 %v1634, %v1631
    %v2094 = vpack.c.b16 %v1638, %v1635
    %v2095 = vpack.c.b16 %v1639, %v1636
    %v2096 = vpack.c.b16 %v1640, %v1637
    %v2097 = vpack.c.b16 %v1644, %v1641
    %v2098 = vpack.c.b16 %v1645, %v1642
    %v2099 = vpack.c.b16 %v1646, %v1643
    %v2100 = vpack.c.b16 %v1650, %v1647
    %v2101 = vpack.c.b16 %v1651, %v1648
    %v2102 = vpack.c.b16 %v1652, %v1649
    %v2103 = vpack.c.b16 %v1656, %v1653
    %v2104 = vpack.c.b16 %v1657, %v1654
    %v2105 = vpack.c.b16 %v1658, %v1655
    %v2106 = vpack.c.b16 %v1662, %v1659
    %v2107 = vpack.c.b16 %v1663, %v1660
    %v2108 = vpack.c.b16 %v1664, %v1661
    %v2109 = vpack.c.b16 %v1668, %v1665
    %v2110 = vpack.c.b16 %v1669, %v1666
    %v2111 = vpack.c.b16 %v1670, %v1667
    %v2112 = vpack.c.b16 %v1674, %v1671
    %v2113 = vpack.c.b16 %v1675, %v1672
    %v2114 = vpack.c.b16 %v1676, %v1673
    %v2115 = vpack.c.b16 %v1680, %v1677
    %v2116 = vpack.c.b16 %v1681, %v1678
    %v2117 = vpack.c.b16 %v1682, %v1679
    %v2118 = vpack.c.b16 %v1686, %v1683
    %v2119 = vpack.c.b16 %v1687, %v1684
    %v2120 = vpack.c.b16 %v1688, %v1685
    %v2121 = vpack.c.b16 %v1692, %v1689
    %v2122 = vpack.c.b16 %v1693, %v1690
    %v2123 = vpack.c.b16 %v1694, %v1691
    %v2124 = vpack.c.b16 %v1698, %v1695
    %v2125 = vpack.c.b16 %v1699, %v1696
    %v2126 = vpack.c.b16 %v1700, %v1697
    %v2127 = vpack.c.b16 %v1704, %v1701
    %v2128 = vpack.c.b16 %v1705, %v1702
    %v2129 = vpack.c.b16 %v1706, %v1703
    %v2130 = vpack.c.b16 %v1710, %v1707
    %v2131 = vpack.c.b16 %v1711, %v1708
    %v2132 = vpack.c.b16 %v1712, %v1709
    %v2133 = vpack.c.b16 %v1716, %v1713
    %v2134 = vpack.c.b16 %v1717, %v1714
    %v2135 = vpack.c.b16 %v1718, %v1715
    %v2136 = vpack.c.b16 %v1722, %v1719
    %v2137 = vpack.c.b16 %v1723, %v1720
    %v2138 = vpack.c.b16 %v1724, %v1721
    %v2139 = vpack.c.b16 %v1728, %v1725
    %v2140 = vpack.c.b16 %v1729, %v1726
    %v2141 = vpack.c.b16 %v1730, %v1727
    %v2142 = vpack.c.b16 %v1734, %v1731
    %v2143 = vpack.c.b16 %v1735, %v1732
    %v2144 = vpack.c.b16 %v1736, %v1733
    %v2145 = vpack.c.b16 %v1740, %v1737
    %v2146 = vpack.c.b16 %v1741, %v1738
    %v2147 = vpack.c.b16 %v1742, %v1739
    %v2148 = vpack.c.b16 %v1746, %v1743
    %v2149 = vpack.c.b16 %v1747, %v1744
    %v2150 = vpack.c.b16 %v1748, %v1745
    %v2151 = vpack.c.b16 %v1752, %v1749
    %v2152 = vpack.c.b16 %v1753, %v1750
    %v2153 = vpack.c.b16 %v1754, %v1751
    %v2154 = vpack.c.b16 %v1758, %v1755
    %v2155 = vpack.c.b16 %v1759, %v1756
    %v2156 = vpack.c.b16 %v1760, %v1757
    %v2157 = vpack.c.b16 %v1764, %v1761
    %v2158 = vpack.c.b16 %v1765, %v1762
    %v2159 = vpack.c.b16 %v1766, %v1763
    %v2160 = vpack.c.b16 %v1770, %v1767
    %v2161 = vpack.c.b16 %v1771, %v1768
    %v2162 = vpack.c.b16 %v1772, %v1769
    %v2163 = vpack.c.b16 %v1776, %v1773
    %v2164 = vpack.c.b16 %v1777, %v1774
    %v2165 = vpack.c.b16 %v1778, %v1775
    %v2166 = vpack.c.b16 %v1782, %v1779
    %v2167 = vpack.c.b16 %v1783, %v1780
    %v2168 = vpack.c.b16 %v1784, %v1781
    %v2169 = vpack.c.b16 %v1788, %v1785
    %v2170 = vpack.c.b16 %v1789, %v1786
    %v2171 = vpack.c.b16 %v1790, %v1787
    %v2172 = vpack.c.b16 %v1794, %v1791
    %v2173 = vpack.c.b16 %v1795, %v1792
    %v2174 = vpack.c.b16 %v1796, %v1793
    %v2175 = vpack.c.b16 %v1800, %v1797
    %v2176 = vpack.c.b16 %v1801, %v1798
    %v2177 = vpack.c.b16 %v1802, %v1799
    %v2178 = vpack.c.b16 %v1806, %v1803
    %v2179 = vpack.c.b16 %v1807, %v1804
    %v2180 = vpack.c.b16 %v1808, %v1805
    %v2181 = vpack.c.b16 %v1812, %v1809
    %v2182 = vpack.c.b16 %v1813, %v1810
    %v2183 = vpack.c.b16 %v1814, %v1811
    %v2184 = vpack.c.b16 %v1818, %v1815
    %v2185 = vpack.c.b16 %v1819, %v1816
    %v2186 = vpack.c.b16 %v1820, %v1817
    %v2187 = vpack.c.b16 %v1824, %v1821
    %v2188 = vpack.c.b16 %v1825, %v1822
    %v2189 = vpack.c.b16 %v1826, %v1823
    %v2190 = vpack.c.b16 %v1830, %v1827
    %v2191 = vpack.c.b16 %v1831, %v1828
    %v2192 = vpack.c.b16 %v1832, %v1829
    %v2193 = vpack.c.b16 %v1836, %v1833
    %v2194 = vpack.c.b16 %v1837, %v1834
    %v2195 = vpack.c.b16 %v1838, %v1835
    %v2196 = vpack.c.b16 %v1842, %v1839
    %v2197 = vpack.c.b16 %v1843, %v1840
    %v2198 = vpack.c.b16 %v1844, %v1841
    %v2199 = vpack.c.b16 %v1848, %v1845
    %v2200 = vpack.c.b16 %v1849, %v1846
    %v2201 = vpack.c.b16 %v1850, %v1847
    %v2202 = vpack.c.b16 %v1854, %v1851
    %v2203 = vpack.c.b16 %v1855, %v1852
    %v2204 = vpack.c.b16 %v1856, %v1853
    %v2205 = vpack.c.b16 %v1860, %v1857
    %v2206 = vpack.c.b16 %v1861, %v1858
    %v2207 = vpack.c.b16 %v1862, %v1859
    %v2208 = vpack.c.b16 %v1866, %v1863
    %v2209 = vpack.c.b16 %v1867, %v1864
    %v2210 = vpack.c.b16 %v1868, %v1865
    %v2211 = vpack.c.b16 %v1872, %v1869
    %v2212 = vpack.c.b16 %v1873, %v1870
    %v2213 = vpack.c.b16 %v1874, %v1871
    %v2214 = vpack.c.b16 %v1878, %v1875
    %v2215 = vpack.c.b16 %v1879, %v1876
    %v2216 = vpack.c.b16 %v1880, %v1877
    %v2217 = vpack.c.b16 %v1884, %v1881
    %v2218 = vpack.c.b16 %v1885, %v1882
    %v2219 = vpack.c.b16 %v1886, %v1883
    %v2220 = vpack.c.b16 %v1890, %v1887
    %v2221 = vpack.c.b16 %v1891, %v1888
    %v2222 = vpack.c.b16 %v1892, %v1889
    %v2223 = vpack.c.b16 %v1896, %v1893
    %v2224 = vpack.c.b16 %v1897, %v1894
    %v2225 = vpack.c.b16 %v1898, %v1895
    %v2226 = vpack.c.b16 %v1902, %v1899
    %v2227 = vpack.c.b16 %v1903, %v1900
    %v2228 = vpack.c.b16 %v1904, %v1901
    %v2229 = vpack.c.b16 %v1908, %v1905
    %v2230 = vpack.c.b16 %v1909, %v1906
    %v2231 = vpack.c.b16 %v1910, %v1907
    %v2232 = vpack.c.b16 %v1914, %v1911
    %v2233 = vpack.c.b16 %v1915, %v1912
    %v2234 = vpack.c.b16 %v1916, %v1913
    %v2235 = vpack.c.b16 %v1920, %v1917
    %v2236 = vpack.c.b16 %v1921, %v1918
    %v2237 = vpack.c.b16 %v1922, %v1919
    %v2238 = vpack.c.b16 %v1926, %v1923
    %v2239 = vpack.c.b16 %v1927, %v1924
    %v2240 = vpack.c.b16 %v1928, %v1925
    %v2241 = vpack.c.b16 %v1932, %v1929
    %v2242 = vpack.c.b16 %v1933, %v1930
    %v2243 = vpack.c.b16 %v1934, %v1931
    %v2244 = vpack.c.b16 %v1938, %v1935
    %v2245 = vpack.c.b16 %v1939, %v1936
    %v2246 = vpack.c.b16 %v1940, %v1937
    %v2247 = vpack.c.b16 %v1944, %v1941
    %v2248 = vpack.c.b16 %v1945, %v1942
    %v2249 = vpack.c.b16 %v1946, %v1943
    %v2250 = vpack.c.b16 %v1950, %v1947
    %v2251 = vpack.c.b16 %v1951, %v1948
    %v2252 = vpack.c.b16 %v1952, %v1949
    %v2253 = vpack.c.b16 %v1956, %v1953
    %v2254 = vpack.c.b16 %v1957, %v1954
    %v2255 = vpack.c.b16 %v1958, %v1955
    %v2256 = vpack.c.b16 %v1962, %v1959
    %v2257 = vpack.c.b16 %v1963, %v1960
    %v2258 = vpack.c.b16 %v1964, %v1961
    %v2259 = vpack.c.b16 %v1968, %v1965
    %v2260 = vpack.c.b16 %v1969, %v1966
    %v2261 = vpack.c.b16 %v1970, %v1967
    %v2262 = vpack.c.b16 %v1974, %v1971
    %v2263 = vpack.c.b16 %v1975, %v1972
    %v2264 = vpack.c.b16 %v1976, %v1973
    %2553 = vmatprep.subr.bf16.mxu0 %v1978
    %2554 = vmatpush1.bf16.msra.mxu0 %v1977
    %2555 = vmatprep.subr.bf16.mxu0 %v1981
    %2556 = vmatpush1.bf16.msra.mxu0 %v1980
    %2557 = vmatprep.subr.bf16.mxu0 %v1984
    %2558 = vmatpush1.bf16.msra.mxu0 %v1983
    %2559 = vmatprep.subr.bf16.mxu0 %v1987
    %2560 = vmatpush1.bf16.msra.mxu0 %v1986
    %2561 = vmatprep.subr.bf16.mxu0 %v1990
    %2562 = vmatpush1.bf16.msra.mxu0 %v1989
    %2563 = vmatprep.subr.bf16.mxu0 %v1993
    %2564 = vmatpush1.bf16.msra.mxu0 %v1992
    %2565 = vmatprep.subr.bf16.mxu0 %v1996
    %2566 = vmatpush1.bf16.msra.mxu0 %v1995
    %2567 = vmatprep.subr.bf16.mxu0 %v1999
    %2568 = vmatpush1.bf16.msra.mxu0 %v1998
    %2569 = vmatprep.subr.bf16.mxu0 %v2002
    %2570 = vmatpush1.bf16.msra.mxu0 %v2001
    %2571 = vmatprep.subr.bf16.mxu0 %v2005
    %2572 = vmatpush1.bf16.msra.mxu0 %v2004
    %2573 = vmatprep.subr.bf16.mxu0 %v2008
    %2574 = vmatpush1.bf16.msra.mxu0 %v2007
    %2575 = vmatprep.subr.bf16.mxu0 %v2011
    %2576 = vmatpush1.bf16.msra.mxu0 %v2010
    %2577 = vmatprep.subr.bf16.mxu0 %v2014
    %2578 = vmatpush1.bf16.msra.mxu0 %v2013
    %2579 = vmatprep.subr.bf16.mxu0 %v2017
    %2580 = vmatpush1.bf16.msra.mxu0 %v2016
    %2581 = vmatprep.subr.bf16.mxu0 %v2020
    %2582 = vmatpush1.bf16.msra.mxu0 %v2019
    %2583 = vmatprep.subr.bf16.mxu0 %v2023
    %2584 = vmatpush1.bf16.msra.mxu0 %v2022
    %2585 = vmatprep.mubr.bf16.mxu0 %v826
    %2586 = vmatmul.mubr.bf16.gmra.mrb[0].mxu0 %v825
    %v2587 = vpop.f32.mrb[0].mxu0
    %v2588 = vadd.f32 %v525, %v2587
    %v2589 = vpop.f32.mrb[0].mxu0
    %v2590 = vadd.f32 %v529, %v2589
    %v2591 = vpop.f32.mrb[0].mxu0
    %v2592 = vadd.f32 %v525, %v2591
    %v2593 = vpop.f32.mrb[0].mxu0
    %v2594 = vadd.f32 %v529, %v2593
    %2595 = vmatprep.mubr.bf16.mxu0 %v838
    %2596 = vmatmul.mubr.bf16.gmra.mrb[0].mxu0 %v837
    %v2597 = vpop.f32.mrb[0].mxu0
    %v2598 = vadd.f32 %v525, %v2597
    %v2599 = vpop.f32.mrb[0].mxu0
    %v2600 = vadd.f32 %v529, %v2599
    %v2601 = vpop.f32.mrb[0].mxu0
    %v2602 = vadd.f32 %v525, %v2601
    %v2603 = vpop.f32.mrb[0].mxu0
    %v2604 = vadd.f32 %v529, %v2603
    %2605 = vmatprep.mubr.bf16.mxu0 %v850
    %2606 = vmatmul.mubr.bf16.gmra.mrb[0].mxu0 %v849
    %v2607 = vpop.f32.mrb[0].mxu0
    %v2608 = vadd.f32 %v525, %v2607
    %v2609 = vpop.f32.mrb[0].mxu0
    %v2610 = vadd.f32 %v529, %v2609
    %v2611 = vpop.f32.mrb[0].mxu0
    %v2612 = vadd.f32 %v525, %v2611
    %v2613 = vpop.f32.mrb[0].mxu0
    %v2614 = vadd.f32 %v529, %v2613
    %2615 = vmatprep.mubr.bf16.mxu0 %v862
    %2616 = vmatmul.mubr.bf16.gmra.mrb[0].mxu0 %v861
    %v2617 = vpop.f32.mrb[0].mxu0
    %v2618 = vadd.f32 %v525, %v2617
    %v2619 = vpop.f32.mrb[0].mxu0
    %v2620 = vadd.f32 %v529, %v2619
    %v2621 = vpop.f32.mrb[0].mxu0
    %v2622 = vadd.f32 %v525, %v2621
    %v2623 = vpop.f32.mrb[0].mxu0
    %v2624 = vadd.f32 %v529, %v2623
    %2625 = vmatprep.mubr.bf16.mxu0 %v874
    %2626 = vmatmul.mubr.bf16.gmra.mrb[0].mxu0 %v873
    %v2627 = vpop.f32.mrb[0].mxu0
    %v2628 = vadd.f32 %v525, %v2627
    %v2629 = vpop.f32.mrb[0].mxu0
    %v2630 = vadd.f32 %v529, %v2629
    %v2631 = vpop.f32.mrb[0].mxu0
    %v2632 = vadd.f32 %v525, %v2631
    %v2633 = vpop.f32.mrb[0].mxu0
    %v2634 = vadd.f32 %v529, %v2633
    %2635 = vmatprep.mubr.bf16.mxu0 %v886
    %2636 = vmatmul.mubr.bf16.gmra.mrb[0].mxu0 %v885
    %v2637 = vpop.f32.mrb[0].mxu0
    %v2638 = vadd.f32 %v525, %v2637
    %v2639 = vpop.f32.mrb[0].mxu0
    %v2640 = vadd.f32 %v529, %v2639
    %v2641 = vpop.f32.mrb[0].mxu0
    %v2642 = vadd.f32 %v525, %v2641
    %v2643 = vpop.f32.mrb[0].mxu0
    %v2644 = vadd.f32 %v529, %v2643
    %2645 = vmatprep.mubr.bf16.mxu0 %v898
    %2646 = vmatmul.mubr.bf16.gmra.mrb[0].mxu0 %v897
    %v2647 = vpop.f32.mrb[0].mxu0
    %v2648 = vadd.f32 %v525, %v2647
    %v2649 = vpop.f32.mrb[0].mxu0
    %v2650 = vadd.f32 %v529, %v2649
    %v2651 = vpop.f32.mrb[0].mxu0
    %v2652 = vadd.f32 %v525, %v2651
    %v2653 = vpop.f32.mrb[0].mxu0
    %v2654 = vadd.f32 %v529, %v2653
    %2655 = vmatprep.mubr.bf16.mxu0 %v910
    %2656 = vmatmul.mubr.bf16.gmra.mrb[0].mxu0 %v909
    %v2657 = vpop.f32.mrb[0].mxu0
    %v2658 = vadd.f32 %v525, %v2657
    %v2659 = vpop.f32.mrb[0].mxu0
    %v2660 = vadd.f32 %v529, %v2659
    %v2661 = vpop.f32.mrb[0].mxu0
    %v2662 = vadd.f32 %v525, %v2661
    %v2663 = vpop.f32.mrb[0].mxu0
    %v2664 = vadd.f32 %v529, %v2663
    %2665 = vdwg.mxu0
    %2666 = vmatprep.subr.bf16.mxu0 %v2026
    %2667 = vmatpush1.bf16.msra.mxu0 %v2025
    %2668 = vmatprep.subr.bf16.mxu0 %v2029
    %2669 = vmatpush1.bf16.msra.mxu0 %v2028
    %2670 = vmatprep.subr.bf16.mxu0 %v2032
    %2671 = vmatpush1.bf16.msra.mxu0 %v2031
    %2672 = vmatprep.subr.bf16.mxu0 %v2035
    %2673 = vmatpush1.bf16.msra.mxu0 %v2034
    %2674 = vmatprep.subr.bf16.mxu0 %v2038
    %2675 = vmatpush1.bf16.msra.mxu0 %v2037
    %2676 = vmatprep.subr.bf16.mxu0 %v2041
    %2677 = vmatpush1.bf16.msra.mxu0 %v2040
    %2678 = vmatprep.subr.bf16.mxu0 %v2044
    %2679 = vmatpush1.bf16.msra.mxu0 %v2043
    %2680 = vmatprep.subr.bf16.mxu0 %v2047
    %2681 = vmatpush1.bf16.msra.mxu0 %v2046
    %2682 = vmatprep.subr.bf16.mxu0 %v2050
    %2683 = vmatpush1.bf16.msra.mxu0 %v2049
    %2684 = vmatprep.subr.bf16.mxu0 %v2053
    %2685 = vmatpush1.bf16.msra.mxu0 %v2052
    %2686 = vmatprep.subr.bf16.mxu0 %v2056
    %2687 = vmatpush1.bf16.msra.mxu0 %v2055
    %2688 = vmatprep.subr.bf16.mxu0 %v2059
    %2689 = vmatpush1.bf16.msra.mxu0 %v2058
    %2690 = vmatprep.subr.bf16.mxu0 %v2062
    %2691 = vmatpush1.bf16.msra.mxu0 %v2061
    %2692 = vmatprep.subr.bf16.mxu0 %v2065
    %2693 = vmatpush1.bf16.msra.mxu0 %v2064
    %2694 = vmatprep.subr.bf16.mxu0 %v2068
    %2695 = vmatpush1.bf16.msra.mxu0 %v2067
    %2696 = vmatprep.subr.bf16.mxu0 %v2071
    %2697 = vmatpush1.bf16.msra.mxu0 %v2070
    %2698 = vmatprep.mubr.bf16.mxu0 %v828
    %2699 = vmatmul.mubr.bf16.gmra.mrb[0].mxu0 %v827
    %v2700 = vpop.f32.mrb[0].mxu0
    %v2701 = vadd.f32 %v2588, %v2700
    %v2702 = vpop.f32.mrb[0].mxu0
    %v2703 = vadd.f32 %v2590, %v2702
    %v2704 = vpop.f32.mrb[0].mxu0
    %v2705 = vadd.f32 %v2592, %v2704
    %v2706 = vpop.f32.mrb[0].mxu0
    %v2707 = vadd.f32 %v2594, %v2706
    %2708 = vmatprep.mubr.bf16.mxu0 %v840
    %2709 = vmatmul.mubr.bf16.gmra.mrb[0].mxu0 %v839
    %v2710 = vpop.f32.mrb[0].mxu0
    %v2711 = vadd.f32 %v2598, %v2710
    %v2712 = vpop.f32.mrb[0].mxu0
    %v2713 = vadd.f32 %v2600, %v2712
    %v2714 = vpop.f32.mrb[0].mxu0
    %v2715 = vadd.f32 %v2602, %v2714
    %v2716 = vpop.f32.mrb[0].mxu0
    %v2717 = vadd.f32 %v2604, %v2716
    %2718 = vmatprep.mubr.bf16.mxu0 %v852
    %2719 = vmatmul.mubr.bf16.gmra.mrb[0].mxu0 %v851
    %v2720 = vpop.f32.mrb[0].mxu0
    %v2721 = vadd.f32 %v2608, %v2720
    %v2722 = vpop.f32.mrb[0].mxu0
    %v2723 = vadd.f32 %v2610, %v2722
    %v2724 = vpop.f32.mrb[0].mxu0
    %v2725 = vadd.f32 %v2612, %v2724
    %v2726 = vpop.f32.mrb[0].mxu0
    %v2727 = vadd.f32 %v2614, %v2726
    %2728 = vmatprep.mubr.bf16.mxu0 %v864
    %2729 = vmatmul.mubr.bf16.gmra.mrb[0].mxu0 %v863
    %v2730 = vpop.f32.mrb[0].mxu0
    %v2731 = vadd.f32 %v2618, %v2730
    %v2732 = vpop.f32.mrb[0].mxu0
    %v2733 = vadd.f32 %v2620, %v2732
    %v2734 = vpop.f32.mrb[0].mxu0
    %v2735 = vadd.f32 %v2622, %v2734
    %v2736 = vpop.f32.mrb[0].mxu0
    %v2737 = vadd.f32 %v2624, %v2736
    %2738 = vmatprep.mubr.bf16.mxu0 %v876
    %2739 = vmatmul.mubr.bf16.gmra.mrb[0].mxu0 %v875
    %v2740 = vpop.f32.mrb[0].mxu0
    %v2741 = vadd.f32 %v2628, %v2740
    %v2742 = vpop.f32.mrb[0].mxu0
    %v2743 = vadd.f32 %v2630, %v2742
    %v2744 = vpop.f32.mrb[0].mxu0
    %v2745 = vadd.f32 %v2632, %v2744
    %v2746 = vpop.f32.mrb[0].mxu0
    %v2747 = vadd.f32 %v2634, %v2746
    %2748 = vmatprep.mubr.bf16.mxu0 %v888
    %2749 = vmatmul.mubr.bf16.gmra.mrb[0].mxu0 %v887
    %v2750 = vpop.f32.mrb[0].mxu0
    %v2751 = vadd.f32 %v2638, %v2750
    %v2752 = vpop.f32.mrb[0].mxu0
    %v2753 = vadd.f32 %v2640, %v2752
    %v2754 = vpop.f32.mrb[0].mxu0
    %v2755 = vadd.f32 %v2642, %v2754
    %v2756 = vpop.f32.mrb[0].mxu0
    %v2757 = vadd.f32 %v2644, %v2756
    %2758 = vmatprep.mubr.bf16.mxu0 %v900
    %2759 = vmatmul.mubr.bf16.gmra.mrb[0].mxu0 %v899
    %v2760 = vpop.f32.mrb[0].mxu0
    %v2761 = vadd.f32 %v2648, %v2760
    %v2762 = vpop.f32.mrb[0].mxu0
    %v2763 = vadd.f32 %v2650, %v2762
    %v2764 = vpop.f32.mrb[0].mxu0
    %v2765 = vadd.f32 %v2652, %v2764
    %v2766 = vpop.f32.mrb[0].mxu0
    %v2767 = vadd.f32 %v2654, %v2766
    %2768 = vmatprep.mubr.bf16.mxu0 %v912
    %2769 = vmatmul.mubr.bf16.gmra.mrb[0].mxu0 %v911
    %v2770 = vpop.f32.mrb[0].mxu0
    %v2771 = vadd.f32 %v2658, %v2770
    %v2772 = vpop.f32.mrb[0].mxu0
    %v2773 = vadd.f32 %v2660, %v2772
    %v2774 = vpop.f32.mrb[0].mxu0
    %v2775 = vadd.f32 %v2662, %v2774
    %v2776 = vpop.f32.mrb[0].mxu0
    %v2777 = vadd.f32 %v2664, %v2776
    %2778 = vdwg.mxu0
    %2779 = vmatprep.subr.bf16.mxu0 %v2074
    %2780 = vmatpush1.bf16.msra.mxu0 %v2073
    %2781 = vmatprep.subr.bf16.mxu0 %v2077
    %2782 = vmatpush1.bf16.msra.mxu0 %v2076
    %2783 = vmatprep.subr.bf16.mxu0 %v2080
    %2784 = vmatpush1.bf16.msra.mxu0 %v2079
    %2785 = vmatprep.subr.bf16.mxu0 %v2083
    %2786 = vmatpush1.bf16.msra.mxu0 %v2082
    %2787 = vmatprep.subr.bf16.mxu0 %v2086
    %2788 = vmatpush1.bf16.msra.mxu0 %v2085
    %2789 = vmatprep.subr.bf16.mxu0 %v2089
    %2790 = vmatpush1.bf16.msra.mxu0 %v2088
    %2791 = vmatprep.subr.bf16.mxu0 %v2092
    %2792 = vmatpush1.bf16.msra.mxu0 %v2091
    %2793 = vmatprep.subr.bf16.mxu0 %v2095
    %2794 = vmatpush1.bf16.msra.mxu0 %v2094
    %2795 = vmatprep.subr.bf16.mxu0 %v2098
    %2796 = vmatpush1.bf16.msra.mxu0 %v2097
    %2797 = vmatprep.subr.bf16.mxu0 %v2101
    %2798 = vmatpush1.bf16.msra.mxu0 %v2100
    %2799 = vmatprep.subr.bf16.mxu0 %v2104
    %2800 = vmatpush1.bf16.msra.mxu0 %v2103
    %2801 = vmatprep.subr.bf16.mxu0 %v2107
    %2802 = vmatpush1.bf16.msra.mxu0 %v2106
    %2803 = vmatprep.subr.bf16.mxu0 %v2110
    %2804 = vmatpush1.bf16.msra.mxu0 %v2109
    %2805 = vmatprep.subr.bf16.mxu0 %v2113
    %2806 = vmatpush1.bf16.msra.mxu0 %v2112
    %2807 = vmatprep.subr.bf16.mxu0 %v2116
    %2808 = vmatpush1.bf16.msra.mxu0 %v2115
    %2809 = vmatprep.subr.bf16.mxu0 %v2119
    %2810 = vmatpush1.bf16.msra.mxu0 %v2118
    %2811 = vmatprep.mubr.bf16.mxu0 %v830
    %2812 = vmatmul.mubr.bf16.gmra.mrb[0].mxu0 %v829
    %v2813 = vpop.f32.mrb[0].mxu0
    %v2814 = vadd.f32 %v2701, %v2813
    %v2815 = vpop.f32.mrb[0].mxu0
    %v2816 = vadd.f32 %v2703, %v2815
    %v2817 = vpop.f32.mrb[0].mxu0
    %v2818 = vadd.f32 %v2705, %v2817
    %v2819 = vpop.f32.mrb[0].mxu0
    %v2820 = vadd.f32 %v2707, %v2819
    %2821 = vmatprep.mubr.bf16.mxu0 %v842
    %2822 = vmatmul.mubr.bf16.gmra.mrb[0].mxu0 %v841
    %v2823 = vpop.f32.mrb[0].mxu0
    %v2824 = vadd.f32 %v2711, %v2823
    %v2825 = vpop.f32.mrb[0].mxu0
    %v2826 = vadd.f32 %v2713, %v2825
    %v2827 = vpop.f32.mrb[0].mxu0
    %v2828 = vadd.f32 %v2715, %v2827
    %v2829 = vpop.f32.mrb[0].mxu0
    %v2830 = vadd.f32 %v2717, %v2829
    %2831 = vmatprep.mubr.bf16.mxu0 %v854
    %2832 = vmatmul.mubr.bf16.gmra.mrb[0].mxu0 %v853
    %v2833 = vpop.f32.mrb[0].mxu0
    %v2834 = vadd.f32 %v2721, %v2833
    %v2835 = vpop.f32.mrb[0].mxu0
    %v2836 = vadd.f32 %v2723, %v2835
    %v2837 = vpop.f32.mrb[0].mxu0
    %v2838 = vadd.f32 %v2725, %v2837
    %v2839 = vpop.f32.mrb[0].mxu0
    %v2840 = vadd.f32 %v2727, %v2839
    %2841 = vmatprep.mubr.bf16.mxu0 %v866
    %2842 = vmatmul.mubr.bf16.gmra.mrb[0].mxu0 %v865
    %v2843 = vpop.f32.mrb[0].mxu0
    %v2844 = vadd.f32 %v2731, %v2843
    %v2845 = vpop.f32.mrb[0].mxu0
    %v2846 = vadd.f32 %v2733, %v2845
    %v2847 = vpop.f32.mrb[0].mxu0
    %v2848 = vadd.f32 %v2735, %v2847
    %v2849 = vpop.f32.mrb[0].mxu0
    %v2850 = vadd.f32 %v2737, %v2849
    %2851 = vmatprep.mubr.bf16.mxu0 %v878
    %2852 = vmatmul.mubr.bf16.gmra.mrb[0].mxu0 %v877
    %v2853 = vpop.f32.mrb[0].mxu0
    %v2854 = vadd.f32 %v2741, %v2853
    %v2855 = vpop.f32.mrb[0].mxu0
    %v2856 = vadd.f32 %v2743, %v2855
    %v2857 = vpop.f32.mrb[0].mxu0
    %v2858 = vadd.f32 %v2745, %v2857
    %v2859 = vpop.f32.mrb[0].mxu0
    %v2860 = vadd.f32 %v2747, %v2859
    %2861 = vmatprep.mubr.bf16.mxu0 %v890
    %2862 = vmatmul.mubr.bf16.gmra.mrb[0].mxu0 %v889
    %v2863 = vpop.f32.mrb[0].mxu0
    %v2864 = vadd.f32 %v2751, %v2863
    %v2865 = vpop.f32.mrb[0].mxu0
    %v2866 = vadd.f32 %v2753, %v2865
    %v2867 = vpop.f32.mrb[0].mxu0
    %v2868 = vadd.f32 %v2755, %v2867
    %v2869 = vpop.f32.mrb[0].mxu0
    %v2870 = vadd.f32 %v2757, %v2869
    %2871 = vmatprep.mubr.bf16.mxu0 %v902
    %2872 = vmatmul.mubr.bf16.gmra.mrb[0].mxu0 %v901
    %v2873 = vpop.f32.mrb[0].mxu0
    %v2874 = vadd.f32 %v2761, %v2873
    %v2875 = vpop.f32.mrb[0].mxu0
    %v2876 = vadd.f32 %v2763, %v2875
    %v2877 = vpop.f32.mrb[0].mxu0
    %v2878 = vadd.f32 %v2765, %v2877
    %v2879 = vpop.f32.mrb[0].mxu0
    %v2880 = vadd.f32 %v2767, %v2879
    %2881 = vmatprep.mubr.bf16.mxu0 %v914
    %2882 = vmatmul.mubr.bf16.gmra.mrb[0].mxu0 %v913
    %v2883 = vpop.f32.mrb[0].mxu0
    %v2884 = vadd.f32 %v2771, %v2883
    %v2885 = vpop.f32.mrb[0].mxu0
    %v2886 = vadd.f32 %v2773, %v2885
    %v2887 = vpop.f32.mrb[0].mxu0
    %v2888 = vadd.f32 %v2775, %v2887
    %v2889 = vpop.f32.mrb[0].mxu0
    %v2890 = vadd.f32 %v2777, %v2889
    %2891 = vdwg.mxu0
    %2892 = vmatprep.subr.bf16.mxu0 %v2122
    %2893 = vmatpush1.bf16.msra.mxu0 %v2121
    %2894 = vmatprep.subr.bf16.mxu0 %v2125
    %2895 = vmatpush1.bf16.msra.mxu0 %v2124
    %2896 = vmatprep.subr.bf16.mxu0 %v2128
    %2897 = vmatpush1.bf16.msra.mxu0 %v2127
    %2898 = vmatprep.subr.bf16.mxu0 %v2131
    %2899 = vmatpush1.bf16.msra.mxu0 %v2130
    %2900 = vmatprep.subr.bf16.mxu0 %v2134
    %2901 = vmatpush1.bf16.msra.mxu0 %v2133
    %2902 = vmatprep.subr.bf16.mxu0 %v2137
    %2903 = vmatpush1.bf16.msra.mxu0 %v2136
    %2904 = vmatprep.subr.bf16.mxu0 %v2140
    %2905 = vmatpush1.bf16.msra.mxu0 %v2139
    %2906 = vmatprep.subr.bf16.mxu0 %v2143
    %2907 = vmatpush1.bf16.msra.mxu0 %v2142
    %2908 = vmatprep.subr.bf16.mxu0 %v2146
    %2909 = vmatpush1.bf16.msra.mxu0 %v2145
    %2910 = vmatprep.subr.bf16.mxu0 %v2149
    %2911 = vmatpush1.bf16.msra.mxu0 %v2148
    %2912 = vmatprep.subr.bf16.mxu0 %v2152
    %2913 = vmatpush1.bf16.msra.mxu0 %v2151
    %2914 = vmatprep.subr.bf16.mxu0 %v2155
    %2915 = vmatpush1.bf16.msra.mxu0 %v2154
    %2916 = vmatprep.subr.bf16.mxu0 %v2158
    %2917 = vmatpush1.bf16.msra.mxu0 %v2157
    %2918 = vmatprep.subr.bf16.mxu0 %v2161
    %2919 = vmatpush1.bf16.msra.mxu0 %v2160
    %2920 = vmatprep.subr.bf16.mxu0 %v2164
    %2921 = vmatpush1.bf16.msra.mxu0 %v2163
    %2922 = vmatprep.subr.bf16.mxu0 %v2167
    %2923 = vmatpush1.bf16.msra.mxu0 %v2166
    %2924 = vmatprep.mubr.bf16.mxu0 %v832
    %2925 = vmatmul.mubr.bf16.gmra.mrb[0].mxu0 %v831
    %v2926 = vpop.f32.mrb[0].mxu0
    %v2927 = vadd.f32 %v2814, %v2926
    %v2928 = vpop.f32.mrb[0].mxu0
    %v2929 = vadd.f32 %v2816, %v2928
    %v2930 = vpop.f32.mrb[0].mxu0
    %v2931 = vadd.f32 %v2818, %v2930
    %v2932 = vpop.f32.mrb[0].mxu0
    %v2933 = vadd.f32 %v2820, %v2932
    %2934 = vmatprep.mubr.bf16.mxu0 %v844
    %2935 = vmatmul.mubr.bf16.gmra.mrb[0].mxu0 %v843
    %v2936 = vpop.f32.mrb[0].mxu0
    %v2937 = vadd.f32 %v2824, %v2936
    %v2938 = vpop.f32.mrb[0].mxu0
    %v2939 = vadd.f32 %v2826, %v2938
    %v2940 = vpop.f32.mrb[0].mxu0
    %v2941 = vadd.f32 %v2828, %v2940
    %v2942 = vpop.f32.mrb[0].mxu0
    %v2943 = vadd.f32 %v2830, %v2942
    %2944 = vmatprep.mubr.bf16.mxu0 %v856
    %2945 = vmatmul.mubr.bf16.gmra.mrb[0].mxu0 %v855
    %v2946 = vpop.f32.mrb[0].mxu0
    %v2947 = vadd.f32 %v2834, %v2946
    %v2948 = vpop.f32.mrb[0].mxu0
    %v2949 = vadd.f32 %v2836, %v2948
    %v2950 = vpop.f32.mrb[0].mxu0
    %v2951 = vadd.f32 %v2838, %v2950
    %v2952 = vpop.f32.mrb[0].mxu0
    %v2953 = vadd.f32 %v2840, %v2952
    %2954 = vmatprep.mubr.bf16.mxu0 %v868
    %2955 = vmatmul.mubr.bf16.gmra.mrb[0].mxu0 %v867
    %v2956 = vpop.f32.mrb[0].mxu0
    %v2957 = vadd.f32 %v2844, %v2956
    %v2958 = vpop.f32.mrb[0].mxu0
    %v2959 = vadd.f32 %v2846, %v2958
    %v2960 = vpop.f32.mrb[0].mxu0
    %v2961 = vadd.f32 %v2848, %v2960
    %v2962 = vpop.f32.mrb[0].mxu0
    %v2963 = vadd.f32 %v2850, %v2962
    %2964 = vmatprep.mubr.bf16.mxu0 %v880
    %2965 = vmatmul.mubr.bf16.gmra.mrb[0].mxu0 %v879
    %v2966 = vpop.f32.mrb[0].mxu0
    %v2967 = vadd.f32 %v2854, %v2966
    %v2968 = vpop.f32.mrb[0].mxu0
    %v2969 = vadd.f32 %v2856, %v2968
    %v2970 = vpop.f32.mrb[0].mxu0
    %v2971 = vadd.f32 %v2858, %v2970
    %v2972 = vpop.f32.mrb[0].mxu0
    %v2973 = vadd.f32 %v2860, %v2972
    %2974 = vmatprep.mubr.bf16.mxu0 %v892
    %2975 = vmatmul.mubr.bf16.gmra.mrb[0].mxu0 %v891
    %v2976 = vpop.f32.mrb[0].mxu0
    %v2977 = vadd.f32 %v2864, %v2976
    %v2978 = vpop.f32.mrb[0].mxu0
    %v2979 = vadd.f32 %v2866, %v2978
    %v2980 = vpop.f32.mrb[0].mxu0
    %v2981 = vadd.f32 %v2868, %v2980
    %v2982 = vpop.f32.mrb[0].mxu0
    %v2983 = vadd.f32 %v2870, %v2982
    %2984 = vmatprep.mubr.bf16.mxu0 %v904
    %2985 = vmatmul.mubr.bf16.gmra.mrb[0].mxu0 %v903
    %v2986 = vpop.f32.mrb[0].mxu0
    %v2987 = vadd.f32 %v2874, %v2986
    %v2988 = vpop.f32.mrb[0].mxu0
    %v2989 = vadd.f32 %v2876, %v2988
    %v2990 = vpop.f32.mrb[0].mxu0
    %v2991 = vadd.f32 %v2878, %v2990
    %v2992 = vpop.f32.mrb[0].mxu0
    %v2993 = vadd.f32 %v2880, %v2992
    %2994 = vmatprep.mubr.bf16.mxu0 %v916
    %2995 = vmatmul.mubr.bf16.gmra.mrb[0].mxu0 %v915
    %v2996 = vpop.f32.mrb[0].mxu0
    %v2997 = vadd.f32 %v2884, %v2996
    %v2998 = vpop.f32.mrb[0].mxu0
    %v2999 = vadd.f32 %v2886, %v2998
    %v3000 = vpop.f32.mrb[0].mxu0
    %v3001 = vadd.f32 %v2888, %v3000
    %v3002 = vpop.f32.mrb[0].mxu0
    %v3003 = vadd.f32 %v2890, %v3002
    %3004 = vdwg.mxu0
    %3005 = vmatprep.subr.bf16.mxu0 %v2170
    %3006 = vmatpush1.bf16.msra.mxu0 %v2169
    %3007 = vmatprep.subr.bf16.mxu0 %v2173
    %3008 = vmatpush1.bf16.msra.mxu0 %v2172
    %3009 = vmatprep.subr.bf16.mxu0 %v2176
    %3010 = vmatpush1.bf16.msra.mxu0 %v2175
    %3011 = vmatprep.subr.bf16.mxu0 %v2179
    %3012 = vmatpush1.bf16.msra.mxu0 %v2178
    %3013 = vmatprep.subr.bf16.mxu0 %v2182
    %3014 = vmatpush1.bf16.msra.mxu0 %v2181
    %3015 = vmatprep.subr.bf16.mxu0 %v2185
    %3016 = vmatpush1.bf16.msra.mxu0 %v2184
    %3017 = vmatprep.subr.bf16.mxu0 %v2188
    %3018 = vmatpush1.bf16.msra.mxu0 %v2187
    %3019 = vmatprep.subr.bf16.mxu0 %v2191
    %3020 = vmatpush1.bf16.msra.mxu0 %v2190
    %3021 = vmatprep.subr.bf16.mxu0 %v2194
    %3022 = vmatpush1.bf16.msra.mxu0 %v2193
    %3023 = vmatprep.subr.bf16.mxu0 %v2197
    %3024 = vmatpush1.bf16.msra.mxu0 %v2196
    %3025 = vmatprep.subr.bf16.mxu0 %v2200
    %3026 = vmatpush1.bf16.msra.mxu0 %v2199
    %3027 = vmatprep.subr.bf16.mxu0 %v2203
    %3028 = vmatpush1.bf16.msra.mxu0 %v2202
    %3029 = vmatprep.subr.bf16.mxu0 %v2206
    %3030 = vmatpush1.bf16.msra.mxu0 %v2205
    %3031 = vmatprep.subr.bf16.mxu0 %v2209
    %3032 = vmatpush1.bf16.msra.mxu0 %v2208
    %3033 = vmatprep.subr.bf16.mxu0 %v2212
    %3034 = vmatpush1.bf16.msra.mxu0 %v2211
    %3035 = vmatprep.subr.bf16.mxu0 %v2215
    %3036 = vmatpush1.bf16.msra.mxu0 %v2214
    %3037 = vmatprep.mubr.bf16.mxu0 %v834
    %3038 = vmatmul.mubr.bf16.gmra.mrb[0].mxu0 %v833
    %v3039 = vpop.f32.mrb[0].mxu0
    %v3040 = vadd.f32 %v2927, %v3039
    %v3041 = vpop.f32.mrb[0].mxu0
    %v3042 = vadd.f32 %v2929, %v3041
    %v3043 = vpop.f32.mrb[0].mxu0
    %v3044 = vadd.f32 %v2931, %v3043
    %v3045 = vpop.f32.mrb[0].mxu0
    %v3046 = vadd.f32 %v2933, %v3045
    %3047 = vmatprep.mubr.bf16.mxu0 %v846
    %3048 = vmatmul.mubr.bf16.gmra.mrb[0].mxu0 %v845
    %v3049 = vpop.f32.mrb[0].mxu0
    %v3050 = vadd.f32 %v2937, %v3049
    %v3051 = vpop.f32.mrb[0].mxu0
    %v3052 = vadd.f32 %v2939, %v3051
    %v3053 = vpop.f32.mrb[0].mxu0
    %v3054 = vadd.f32 %v2941, %v3053
    %v3055 = vpop.f32.mrb[0].mxu0
    %v3056 = vadd.f32 %v2943, %v3055
    %3057 = vmatprep.mubr.bf16.mxu0 %v858
    %3058 = vmatmul.mubr.bf16.gmra.mrb[0].mxu0 %v857
    %v3059 = vpop.f32.mrb[0].mxu0
    %v3060 = vadd.f32 %v2947, %v3059
    %v3061 = vpop.f32.mrb[0].mxu0
    %v3062 = vadd.f32 %v2949, %v3061
    %v3063 = vpop.f32.mrb[0].mxu0
    %v3064 = vadd.f32 %v2951, %v3063
    %v3065 = vpop.f32.mrb[0].mxu0
    %v3066 = vadd.f32 %v2953, %v3065
    %3067 = vmatprep.mubr.bf16.mxu0 %v870
    %3068 = vmatmul.mubr.bf16.gmra.mrb[0].mxu0 %v869
    %v3069 = vpop.f32.mrb[0].mxu0
    %v3070 = vadd.f32 %v2957, %v3069
    %v3071 = vpop.f32.mrb[0].mxu0
    %v3072 = vadd.f32 %v2959, %v3071
    %v3073 = vpop.f32.mrb[0].mxu0
    %v3074 = vadd.f32 %v2961, %v3073
    %v3075 = vpop.f32.mrb[0].mxu0
    %v3076 = vadd.f32 %v2963, %v3075
    %3077 = vmatprep.mubr.bf16.mxu0 %v882
    %3078 = vmatmul.mubr.bf16.gmra.mrb[0].mxu0 %v881
    %v3079 = vpop.f32.mrb[0].mxu0
    %v3080 = vadd.f32 %v2967, %v3079
    %v3081 = vpop.f32.mrb[0].mxu0
    %v3082 = vadd.f32 %v2969, %v3081
    %v3083 = vpop.f32.mrb[0].mxu0
    %v3084 = vadd.f32 %v2971, %v3083
    %v3085 = vpop.f32.mrb[0].mxu0
    %v3086 = vadd.f32 %v2973, %v3085
    %3087 = vmatprep.mubr.bf16.mxu0 %v894
    %3088 = vmatmul.mubr.bf16.gmra.mrb[0].mxu0 %v893
    %v3089 = vpop.f32.mrb[0].mxu0
    %v3090 = vadd.f32 %v2977, %v3089
    %v3091 = vpop.f32.mrb[0].mxu0
    %v3092 = vadd.f32 %v2979, %v3091
    %v3093 = vpop.f32.mrb[0].mxu0
    %v3094 = vadd.f32 %v2981, %v3093
    %v3095 = vpop.f32.mrb[0].mxu0
    %v3096 = vadd.f32 %v2983, %v3095
    %3097 = vmatprep.mubr.bf16.mxu0 %v906
    %3098 = vmatmul.mubr.bf16.gmra.mrb[0].mxu0 %v905
    %v3099 = vpop.f32.mrb[0].mxu0
    %v3100 = vadd.f32 %v2987, %v3099
    %v3101 = vpop.f32.mrb[0].mxu0
    %v3102 = vadd.f32 %v2989, %v3101
    %v3103 = vpop.f32.mrb[0].mxu0
    %v3104 = vadd.f32 %v2991, %v3103
    %v3105 = vpop.f32.mrb[0].mxu0
    %v3106 = vadd.f32 %v2993, %v3105
    %3107 = vmatprep.mubr.bf16.mxu0 %v918
    %3108 = vmatmul.mubr.bf16.gmra.mrb[0].mxu0 %v917
    %v3109 = vpop.f32.mrb[0].mxu0
    %v3110 = vadd.f32 %v2997, %v3109
    %v3111 = vpop.f32.mrb[0].mxu0
    %v3112 = vadd.f32 %v2999, %v3111
    %v3113 = vpop.f32.mrb[0].mxu0
    %v3114 = vadd.f32 %v3001, %v3113
    %v3115 = vpop.f32.mrb[0].mxu0
    %v3116 = vadd.f32 %v3003, %v3115
    %3117 = vdwg.mxu0
    %3118 = vmatprep.subr.bf16.mxu0 %v2218
    %3119 = vmatpush1.bf16.msra.mxu0 %v2217
    %3120 = vmatprep.subr.bf16.mxu0 %v2221
    %3121 = vmatpush1.bf16.msra.mxu0 %v2220
    %3122 = vmatprep.subr.bf16.mxu0 %v2224
    %3123 = vmatpush1.bf16.msra.mxu0 %v2223
    %3124 = vmatprep.subr.bf16.mxu0 %v2227
    %3125 = vmatpush1.bf16.msra.mxu0 %v2226
    %3126 = vmatprep.subr.bf16.mxu0 %v2230
    %3127 = vmatpush1.bf16.msra.mxu0 %v2229
    %3128 = vmatprep.subr.bf16.mxu0 %v2233
    %3129 = vmatpush1.bf16.msra.mxu0 %v2232
    %3130 = vmatprep.subr.bf16.mxu0 %v2236
    %3131 = vmatpush1.bf16.msra.mxu0 %v2235
    %3132 = vmatprep.subr.bf16.mxu0 %v2239
    %3133 = vmatpush1.bf16.msra.mxu0 %v2238
    %3134 = vmatprep.subr.bf16.mxu0 %v2242
    %3135 = vmatpush1.bf16.msra.mxu0 %v2241
    %3136 = vmatprep.subr.bf16.mxu0 %v2245
    %3137 = vmatpush1.bf16.msra.mxu0 %v2244
    %3138 = vmatprep.subr.bf16.mxu0 %v2248
    %3139 = vmatpush1.bf16.msra.mxu0 %v2247
    %3140 = vmatprep.subr.bf16.mxu0 %v2251
    %3141 = vmatpush1.bf16.msra.mxu0 %v2250
    %3142 = vmatprep.subr.bf16.mxu0 %v2254
    %3143 = vmatpush1.bf16.msra.mxu0 %v2253
    %3144 = vmatprep.subr.bf16.mxu0 %v2257
    %3145 = vmatpush1.bf16.msra.mxu0 %v2256
    %3146 = vmatprep.subr.bf16.mxu0 %v2260
    %3147 = vmatpush1.bf16.msra.mxu0 %v2259
    %3148 = vmatprep.subr.bf16.mxu0 %v2263
    %3149 = vmatpush1.bf16.msra.mxu0 %v2262
    %3150 = vmatprep.mubr.bf16.mxu0 %v836
    %3151 = vmatmul.mubr.bf16.gmra.mrb[0].mxu0 %v835
    %v3152 = vpop.f32.mrb[0].mxu0
    %v3153 = vadd.f32 %v3040, %v3152
    %v3154 = vpop.f32.mrb[0].mxu0
    %v3155 = vadd.f32 %v3042, %v3154
    %v3156 = vpop.f32.mrb[0].mxu0
    %v3157 = vadd.f32 %v3044, %v3156
    %v3158 = vpop.f32.mrb[0].mxu0
    %v3159 = vadd.f32 %v3046, %v3158
    %3160 = vmatprep.mubr.bf16.mxu0 %v848
    %3161 = vmatmul.mubr.bf16.gmra.mrb[0].mxu0 %v847
    %v3162 = vpop.f32.mrb[0].mxu0
    %v3163 = vadd.f32 %v3050, %v3162
    %v3164 = vpop.f32.mrb[0].mxu0
    %v3165 = vadd.f32 %v3052, %v3164
    %v3166 = vpop.f32.mrb[0].mxu0
    %v3167 = vadd.f32 %v3054, %v3166
    %v3168 = vpop.f32.mrb[0].mxu0
    %v3169 = vadd.f32 %v3056, %v3168
    %3170 = vmatprep.mubr.bf16.mxu0 %v860
    %3171 = vmatmul.mubr.bf16.gmra.mrb[0].mxu0 %v859
    %v3172 = vpop.f32.mrb[0].mxu0
    %v3173 = vadd.f32 %v3060, %v3172
    %v3174 = vpop.f32.mrb[0].mxu0
    %v3175 = vadd.f32 %v3062, %v3174
    %v3176 = vpop.f32.mrb[0].mxu0
    %v3177 = vadd.f32 %v3064, %v3176
    %v3178 = vpop.f32.mrb[0].mxu0
    %v3179 = vadd.f32 %v3066, %v3178
    %3180 = vmatprep.mubr.bf16.mxu0 %v872
    %3181 = vmatmul.mubr.bf16.gmra.mrb[0].mxu0 %v871
    %v3182 = vpop.f32.mrb[0].mxu0
    %v3183 = vadd.f32 %v3070, %v3182
    %v3184 = vpop.f32.mrb[0].mxu0
    %v3185 = vadd.f32 %v3072, %v3184
    %v3186 = vpop.f32.mrb[0].mxu0
    %v3187 = vadd.f32 %v3074, %v3186
    %v3188 = vpop.f32.mrb[0].mxu0
    %v3189 = vadd.f32 %v3076, %v3188
    %3190 = vmatprep.mubr.bf16.mxu0 %v884
    %3191 = vmatmul.mubr.bf16.gmra.mrb[0].mxu0 %v883
    %v3192 = vpop.f32.mrb[0].mxu0
    %v3193 = vadd.f32 %v3080, %v3192
    %v3194 = vpop.f32.mrb[0].mxu0
    %v3195 = vadd.f32 %v3082, %v3194
    %v3196 = vpop.f32.mrb[0].mxu0
    %v3197 = vadd.f32 %v3084, %v3196
    %v3198 = vpop.f32.mrb[0].mxu0
    %v3199 = vadd.f32 %v3086, %v3198
    %3200 = vmatprep.mubr.bf16.mxu0 %v896
    %3201 = vmatmul.mubr.bf16.gmra.mrb[0].mxu0 %v895
    %v3202 = vpop.f32.mrb[0].mxu0
    %v3203 = vadd.f32 %v3090, %v3202
    %v3204 = vpop.f32.mrb[0].mxu0
    %v3205 = vadd.f32 %v3092, %v3204
    %v3206 = vpop.f32.mrb[0].mxu0
    %v3207 = vadd.f32 %v3094, %v3206
    %v3208 = vpop.f32.mrb[0].mxu0
    %v3209 = vadd.f32 %v3096, %v3208
    %3210 = vmatprep.mubr.bf16.mxu0 %v908
    %3211 = vmatmul.mubr.bf16.gmra.mrb[0].mxu0 %v907
    %v3212 = vpop.f32.mrb[0].mxu0
    %v3213 = vadd.f32 %v3100, %v3212
    %v3214 = vpop.f32.mrb[0].mxu0
    %v3215 = vadd.f32 %v3102, %v3214
    %v3216 = vpop.f32.mrb[0].mxu0
    %v3217 = vadd.f32 %v3104, %v3216
    %v3218 = vpop.f32.mrb[0].mxu0
    %v3219 = vadd.f32 %v3106, %v3218
    %3220 = vmatprep.mubr.bf16.mxu0 %v920
    %3221 = vmatmul.mubr.bf16.gmra.mrb[0].mxu0 %v919
    %v3222 = vpop.f32.mrb[0].mxu0
    %v3223 = vadd.f32 %v3110, %v3222
    %v3224 = vpop.f32.mrb[0].mxu0
    %v3225 = vadd.f32 %v3112, %v3224
    %v3226 = vpop.f32.mrb[0].mxu0
    %v3227 = vadd.f32 %v3114, %v3226
    %v3228 = vpop.f32.mrb[0].mxu0
    %v3229 = vadd.f32 %v3116, %v3228
    %3230 = vdwg.mxu0
    %3231 = vmatprep.subr.bf16.mxu0 0
    %3232 = vmatpush1.bf16.msra.mxu0 %v1979
    %3233 = vmatprep.subr.bf16.mxu0 0
    %3234 = vmatpush1.bf16.msra.mxu0 %v1982
    %3235 = vmatprep.subr.bf16.mxu0 0
    %3236 = vmatpush1.bf16.msra.mxu0 %v1985
    %3237 = vmatprep.subr.bf16.mxu0 0
    %3238 = vmatpush1.bf16.msra.mxu0 %v1988
    %3239 = vmatprep.subr.bf16.mxu0 0
    %3240 = vmatpush1.bf16.msra.mxu0 %v1991
    %3241 = vmatprep.subr.bf16.mxu0 0
    %3242 = vmatpush1.bf16.msra.mxu0 %v1994
    %3243 = vmatprep.subr.bf16.mxu0 0
    %3244 = vmatpush1.bf16.msra.mxu0 %v1997
    %3245 = vmatprep.subr.bf16.mxu0 0
    %3246 = vmatpush1.bf16.msra.mxu0 %v2000
    %3247 = vmatprep.subr.bf16.mxu0 0
    %3248 = vmatpush1.bf16.msra.mxu0 %v2003
    %3249 = vmatprep.subr.bf16.mxu0 0
    %3250 = vmatpush1.bf16.msra.mxu0 %v2006
    %3251 = vmatprep.subr.bf16.mxu0 0
    %3252 = vmatpush1.bf16.msra.mxu0 %v2009
    %3253 = vmatprep.subr.bf16.mxu0 0
    %3254 = vmatpush1.bf16.msra.mxu0 %v2012
    %3255 = vmatprep.subr.bf16.mxu0 0
    %3256 = vmatpush1.bf16.msra.mxu0 %v2015
    %3257 = vmatprep.subr.bf16.mxu0 0
    %3258 = vmatpush1.bf16.msra.mxu0 %v2018
    %3259 = vmatprep.subr.bf16.mxu0 0
    %3260 = vmatpush1.bf16.msra.mxu0 %v2021
    %3261 = vmatprep.subr.bf16.mxu0 0
    %3262 = vmatpush1.bf16.msra.mxu0 %v2024
    %3263 = vmatprep.mubr.bf16.mxu0 %v826
    %3264 = vmatmul.mubr.bf16.gmra.mrb[0].mxu0 %v825
    %v3265 = vpop.f32.mrb[0].mxu0
    %v3266 = vadd.f32 %v533, %v3265
    %v3267 = vpop.f32.mrb[0].mxu0
    %v3268 = vpop.f32.mrb[0].mxu0
    %v3269 = vadd.f32 %v533, %v3268
    %v3270 = vpop.f32.mrb[0].mxu0
    %3271 = vmatprep.mubr.bf16.mxu0 %v838
    %3272 = vmatmul.mubr.bf16.gmra.mrb[0].mxu0 %v837
    %v3273 = vpop.f32.mrb[0].mxu0
    %v3274 = vadd.f32 %v533, %v3273
    %v3275 = vpop.f32.mrb[0].mxu0
    %v3276 = vpop.f32.mrb[0].mxu0
    %v3277 = vadd.f32 %v533, %v3276
    %v3278 = vpop.f32.mrb[0].mxu0
    %3279 = vmatprep.mubr.bf16.mxu0 %v850
    %3280 = vmatmul.mubr.bf16.gmra.mrb[0].mxu0 %v849
    %v3281 = vpop.f32.mrb[0].mxu0
    %v3282 = vadd.f32 %v533, %v3281
    %v3283 = vpop.f32.mrb[0].mxu0
    %v3284 = vpop.f32.mrb[0].mxu0
    %v3285 = vadd.f32 %v533, %v3284
    %v3286 = vpop.f32.mrb[0].mxu0
    %3287 = vmatprep.mubr.bf16.mxu0 %v862
    %3288 = vmatmul.mubr.bf16.gmra.mrb[0].mxu0 %v861
    %v3289 = vpop.f32.mrb[0].mxu0
    %v3290 = vadd.f32 %v533, %v3289
    %v3291 = vpop.f32.mrb[0].mxu0
    %v3292 = vpop.f32.mrb[0].mxu0
    %v3293 = vadd.f32 %v533, %v3292
    %v3294 = vpop.f32.mrb[0].mxu0
    %3295 = vmatprep.mubr.bf16.mxu0 %v874
    %3296 = vmatmul.mubr.bf16.gmra.mrb[0].mxu0 %v873
    %v3297 = vpop.f32.mrb[0].mxu0
    %v3298 = vadd.f32 %v533, %v3297
    %v3299 = vpop.f32.mrb[0].mxu0
    %v3300 = vpop.f32.mrb[0].mxu0
    %v3301 = vadd.f32 %v533, %v3300
    %v3302 = vpop.f32.mrb[0].mxu0
    %3303 = vmatprep.mubr.bf16.mxu0 %v886
    %3304 = vmatmul.mubr.bf16.gmra.mrb[0].mxu0 %v885
    %v3305 = vpop.f32.mrb[0].mxu0
    %v3306 = vadd.f32 %v533, %v3305
    %v3307 = vpop.f32.mrb[0].mxu0
    %v3308 = vpop.f32.mrb[0].mxu0
    %v3309 = vadd.f32 %v533, %v3308
    %v3310 = vpop.f32.mrb[0].mxu0
    %3311 = vmatprep.mubr.bf16.mxu0 %v898
    %3312 = vmatmul.mubr.bf16.gmra.mrb[0].mxu0 %v897
    %v3313 = vpop.f32.mrb[0].mxu0
    %v3314 = vadd.f32 %v533, %v3313
    %v3315 = vpop.f32.mrb[0].mxu0
    %v3316 = vpop.f32.mrb[0].mxu0
    %v3317 = vadd.f32 %v533, %v3316
    %v3318 = vpop.f32.mrb[0].mxu0
    %3319 = vmatprep.mubr.bf16.mxu0 %v910
    %3320 = vmatmul.mubr.bf16.gmra.mrb[0].mxu0 %v909
    %v3321 = vpop.f32.mrb[0].mxu0
    %v3322 = vadd.f32 %v533, %v3321
    %v3323 = vpop.f32.mrb[0].mxu0
    %v3324 = vpop.f32.mrb[0].mxu0
    %v3325 = vadd.f32 %v533, %v3324
    %v3326 = vpop.f32.mrb[0].mxu0
    %3327 = vdwg.mxu0
    %3328 = vmatprep.subr.bf16.mxu0 0
    %3329 = vmatpush1.bf16.msra.mxu0 %v2027
    %3330 = vmatprep.subr.bf16.mxu0 0
    %3331 = vmatpush1.bf16.msra.mxu0 %v2030
    %3332 = vmatprep.subr.bf16.mxu0 0
    %3333 = vmatpush1.bf16.msra.mxu0 %v2033
    %3334 = vmatprep.subr.bf16.mxu0 0
    %3335 = vmatpush1.bf16.msra.mxu0 %v2036
    %3336 = vmatprep.subr.bf16.mxu0 0
    %3337 = vmatpush1.bf16.msra.mxu0 %v2039
    %3338 = vmatprep.subr.bf16.mxu0 0
    %3339 = vmatpush1.bf16.msra.mxu0 %v2042
    %3340 = vmatprep.subr.bf16.mxu0 0
    %3341 = vmatpush1.bf16.msra.mxu0 %v2045
    %3342 = vmatprep.subr.bf16.mxu0 0
    %3343 = vmatpush1.bf16.msra.mxu0 %v2048
    %3344 = vmatprep.subr.bf16.mxu0 0
    %3345 = vmatpush1.bf16.msra.mxu0 %v2051
    %3346 = vmatprep.subr.bf16.mxu0 0
    %3347 = vmatpush1.bf16.msra.mxu0 %v2054
    %3348 = vmatprep.subr.bf16.mxu0 0
    %3349 = vmatpush1.bf16.msra.mxu0 %v2057
    %3350 = vmatprep.subr.bf16.mxu0 0
    %3351 = vmatpush1.bf16.msra.mxu0 %v2060
    %3352 = vmatprep.subr.bf16.mxu0 0
    %3353 = vmatpush1.bf16.msra.mxu0 %v2063
    %3354 = vmatprep.subr.bf16.mxu0 0
    %3355 = vmatpush1.bf16.msra.mxu0 %v2066
    %3356 = vmatprep.subr.bf16.mxu0 0
    %3357 = vmatpush1.bf16.msra.mxu0 %v2069
    %3358 = vmatprep.subr.bf16.mxu0 0
    %3359 = vmatpush1.bf16.msra.mxu0 %v2072
    %3360 = vmatprep.mubr.bf16.mxu0 %v828
    %3361 = vmatmul.mubr.bf16.gmra.mrb[0].mxu0 %v827
    %v3362 = vpop.f32.mrb[0].mxu0
    %v3363 = vadd.f32 %v3266, %v3362
    %v3364 = vpop.f32.mrb[0].mxu0
    %v3365 = vpop.f32.mrb[0].mxu0
    %v3366 = vadd.f32 %v3269, %v3365
    %v3367 = vpop.f32.mrb[0].mxu0
    %3368 = vmatprep.mubr.bf16.mxu0 %v840
    %3369 = vmatmul.mubr.bf16.gmra.mrb[0].mxu0 %v839
    %v3370 = vpop.f32.mrb[0].mxu0
    %v3371 = vadd.f32 %v3274, %v3370
    %v3372 = vpop.f32.mrb[0].mxu0
    %v3373 = vpop.f32.mrb[0].mxu0
    %v3374 = vadd.f32 %v3277, %v3373
    %v3375 = vpop.f32.mrb[0].mxu0
    %3376 = vmatprep.mubr.bf16.mxu0 %v852
    %3377 = vmatmul.mubr.bf16.gmra.mrb[0].mxu0 %v851
    %v3378 = vpop.f32.mrb[0].mxu0
    %v3379 = vadd.f32 %v3282, %v3378
    %v3380 = vpop.f32.mrb[0].mxu0
    %v3381 = vpop.f32.mrb[0].mxu0
    %v3382 = vadd.f32 %v3285, %v3381
    %v3383 = vpop.f32.mrb[0].mxu0
    %3384 = vmatprep.mubr.bf16.mxu0 %v864
    %3385 = vmatmul.mubr.bf16.gmra.mrb[0].mxu0 %v863
    %v3386 = vpop.f32.mrb[0].mxu0
    %v3387 = vadd.f32 %v3290, %v3386
    %v3388 = vpop.f32.mrb[0].mxu0
    %v3389 = vpop.f32.mrb[0].mxu0
    %v3390 = vadd.f32 %v3293, %v3389
    %v3391 = vpop.f32.mrb[0].mxu0
    %3392 = vmatprep.mubr.bf16.mxu0 %v876
    %3393 = vmatmul.mubr.bf16.gmra.mrb[0].mxu0 %v875
    %v3394 = vpop.f32.mrb[0].mxu0
    %v3395 = vadd.f32 %v3298, %v3394
    %v3396 = vpop.f32.mrb[0].mxu0
    %v3397 = vpop.f32.mrb[0].mxu0
    %v3398 = vadd.f32 %v3301, %v3397
    %v3399 = vpop.f32.mrb[0].mxu0
    %3400 = vmatprep.mubr.bf16.mxu0 %v888
    %3401 = vmatmul.mubr.bf16.gmra.mrb[0].mxu0 %v887
    %v3402 = vpop.f32.mrb[0].mxu0
    %v3403 = vadd.f32 %v3306, %v3402
    %v3404 = vpop.f32.mrb[0].mxu0
    %v3405 = vpop.f32.mrb[0].mxu0
    %v3406 = vadd.f32 %v3309, %v3405
    %v3407 = vpop.f32.mrb[0].mxu0
    %3408 = vmatprep.mubr.bf16.mxu0 %v900
    %3409 = vmatmul.mubr.bf16.gmra.mrb[0].mxu0 %v899
    %v3410 = vpop.f32.mrb[0].mxu0
    %v3411 = vadd.f32 %v3314, %v3410
    %v3412 = vpop.f32.mrb[0].mxu0
    %v3413 = vpop.f32.mrb[0].mxu0
    %v3414 = vadd.f32 %v3317, %v3413
    %v3415 = vpop.f32.mrb[0].mxu0
    %3416 = vmatprep.mubr.bf16.mxu0 %v912
    %3417 = vmatmul.mubr.bf16.gmra.mrb[0].mxu0 %v911
    %v3418 = vpop.f32.mrb[0].mxu0
    %v3419 = vadd.f32 %v3322, %v3418
    %v3420 = vpop.f32.mrb[0].mxu0
    %v3421 = vpop.f32.mrb[0].mxu0
    %v3422 = vadd.f32 %v3325, %v3421
    %v3423 = vpop.f32.mrb[0].mxu0
    %3424 = vdwg.mxu0
    %3425 = vmatprep.subr.bf16.mxu0 0
    %3426 = vmatpush1.bf16.msra.mxu0 %v2075
    %3427 = vmatprep.subr.bf16.mxu0 0
    %3428 = vmatpush1.bf16.msra.mxu0 %v2078
    %3429 = vmatprep.subr.bf16.mxu0 0
    %3430 = vmatpush1.bf16.msra.mxu0 %v2081
    %3431 = vmatprep.subr.bf16.mxu0 0
    %3432 = vmatpush1.bf16.msra.mxu0 %v2084
    %3433 = vmatprep.subr.bf16.mxu0 0
    %3434 = vmatpush1.bf16.msra.mxu0 %v2087
    %3435 = vmatprep.subr.bf16.mxu0 0
    %3436 = vmatpush1.bf16.msra.mxu0 %v2090
    %3437 = vmatprep.subr.bf16.mxu0 0
    %3438 = vmatpush1.bf16.msra.mxu0 %v2093
    %3439 = vmatprep.subr.bf16.mxu0 0
    %3440 = vmatpush1.bf16.msra.mxu0 %v2096
    %3441 = vmatprep.subr.bf16.mxu0 0
    %3442 = vmatpush1.bf16.msra.mxu0 %v2099
    %3443 = vmatprep.subr.bf16.mxu0 0
    %3444 = vmatpush1.bf16.msra.mxu0 %v2102
    %3445 = vmatprep.subr.bf16.mxu0 0
    %3446 = vmatpush1.bf16.msra.mxu0 %v2105
    %3447 = vmatprep.subr.bf16.mxu0 0
    %3448 = vmatpush1.bf16.msra.mxu0 %v2108
    %3449 = vmatprep.subr.bf16.mxu0 0
    %3450 = vmatpush1.bf16.msra.mxu0 %v2111
    %3451 = vmatprep.subr.bf16.mxu0 0
    %3452 = vmatpush1.bf16.msra.mxu0 %v2114
    %3453 = vmatprep.subr.bf16.mxu0 0
    %3454 = vmatpush1.bf16.msra.mxu0 %v2117
    %3455 = vmatprep.subr.bf16.mxu0 0
    %3456 = vmatpush1.bf16.msra.mxu0 %v2120
    %3457 = vmatprep.mubr.bf16.mxu0 %v830
    %3458 = vmatmul.mubr.bf16.gmra.mrb[0].mxu0 %v829
    %v3459 = vpop.f32.mrb[0].mxu0
    %v3460 = vadd.f32 %v3363, %v3459
    %v3461 = vpop.f32.mrb[0].mxu0
    %v3462 = vpop.f32.mrb[0].mxu0
    %v3463 = vadd.f32 %v3366, %v3462
    %v3464 = vpop.f32.mrb[0].mxu0
    %3465 = vmatprep.mubr.bf16.mxu0 %v842
    %3466 = vmatmul.mubr.bf16.gmra.mrb[0].mxu0 %v841
    %v3467 = vpop.f32.mrb[0].mxu0
    %v3468 = vadd.f32 %v3371, %v3467
    %v3469 = vpop.f32.mrb[0].mxu0
    %v3470 = vpop.f32.mrb[0].mxu0
    %v3471 = vadd.f32 %v3374, %v3470
    %v3472 = vpop.f32.mrb[0].mxu0
    %3473 = vmatprep.mubr.bf16.mxu0 %v854
    %3474 = vmatmul.mubr.bf16.gmra.mrb[0].mxu0 %v853
    %v3475 = vpop.f32.mrb[0].mxu0
    %v3476 = vadd.f32 %v3379, %v3475
    %v3477 = vpop.f32.mrb[0].mxu0
    %v3478 = vpop.f32.mrb[0].mxu0
    %v3479 = vadd.f32 %v3382, %v3478
    %v3480 = vpop.f32.mrb[0].mxu0
    %3481 = vmatprep.mubr.bf16.mxu0 %v866
    %3482 = vmatmul.mubr.bf16.gmra.mrb[0].mxu0 %v865
    %v3483 = vpop.f32.mrb[0].mxu0
    %v3484 = vadd.f32 %v3387, %v3483
    %v3485 = vpop.f32.mrb[0].mxu0
    %v3486 = vpop.f32.mrb[0].mxu0
    %v3487 = vadd.f32 %v3390, %v3486
    %v3488 = vpop.f32.mrb[0].mxu0
    %3489 = vmatprep.mubr.bf16.mxu0 %v878
    %3490 = vmatmul.mubr.bf16.gmra.mrb[0].mxu0 %v877
    %v3491 = vpop.f32.mrb[0].mxu0
    %v3492 = vadd.f32 %v3395, %v3491
    %v3493 = vpop.f32.mrb[0].mxu0
    %v3494 = vpop.f32.mrb[0].mxu0
    %v3495 = vadd.f32 %v3398, %v3494
    %v3496 = vpop.f32.mrb[0].mxu0
    %3497 = vmatprep.mubr.bf16.mxu0 %v890
    %3498 = vmatmul.mubr.bf16.gmra.mrb[0].mxu0 %v889
    %v3499 = vpop.f32.mrb[0].mxu0
    %v3500 = vadd.f32 %v3403, %v3499
    %v3501 = vpop.f32.mrb[0].mxu0
    %v3502 = vpop.f32.mrb[0].mxu0
    %v3503 = vadd.f32 %v3406, %v3502
    %v3504 = vpop.f32.mrb[0].mxu0
    %3505 = vmatprep.mubr.bf16.mxu0 %v902
    %3506 = vmatmul.mubr.bf16.gmra.mrb[0].mxu0 %v901
    %v3507 = vpop.f32.mrb[0].mxu0
    %v3508 = vadd.f32 %v3411, %v3507
    %v3509 = vpop.f32.mrb[0].mxu0
    %v3510 = vpop.f32.mrb[0].mxu0
    %v3511 = vadd.f32 %v3414, %v3510
    %v3512 = vpop.f32.mrb[0].mxu0
    %3513 = vmatprep.mubr.bf16.mxu0 %v914
    %3514 = vmatmul.mubr.bf16.gmra.mrb[0].mxu0 %v913
    %v3515 = vpop.f32.mrb[0].mxu0
    %v3516 = vadd.f32 %v3419, %v3515
    %v3517 = vpop.f32.mrb[0].mxu0
    %v3518 = vpop.f32.mrb[0].mxu0
    %v3519 = vadd.f32 %v3422, %v3518
    %v3520 = vpop.f32.mrb[0].mxu0
    %3521 = vdwg.mxu0
    %3522 = vmatprep.subr.bf16.mxu0 0
    %3523 = vmatpush1.bf16.msra.mxu0 %v2123
    %3524 = vmatprep.subr.bf16.mxu0 0
    %3525 = vmatpush1.bf16.msra.mxu0 %v2126
    %3526 = vmatprep.subr.bf16.mxu0 0
    %3527 = vmatpush1.bf16.msra.mxu0 %v2129
    %3528 = vmatprep.subr.bf16.mxu0 0
    %3529 = vmatpush1.bf16.msra.mxu0 %v2132
    %3530 = vmatprep.subr.bf16.mxu0 0
    %3531 = vmatpush1.bf16.msra.mxu0 %v2135
    %3532 = vmatprep.subr.bf16.mxu0 0
    %3533 = vmatpush1.bf16.msra.mxu0 %v2138
    %3534 = vmatprep.subr.bf16.mxu0 0
    %3535 = vmatpush1.bf16.msra.mxu0 %v2141
    %3536 = vmatprep.subr.bf16.mxu0 0
    %3537 = vmatpush1.bf16.msra.mxu0 %v2144
    %3538 = vmatprep.subr.bf16.mxu0 0
    %3539 = vmatpush1.bf16.msra.mxu0 %v2147
    %3540 = vmatprep.subr.bf16.mxu0 0
    %3541 = vmatpush1.bf16.msra.mxu0 %v2150
    %3542 = vmatprep.subr.bf16.mxu0 0
    %3543 = vmatpush1.bf16.msra.mxu0 %v2153
    %3544 = vmatprep.subr.bf16.mxu0 0
    %3545 = vmatpush1.bf16.msra.mxu0 %v2156
    %3546 = vmatprep.subr.bf16.mxu0 0
    %3547 = vmatpush1.bf16.msra.mxu0 %v2159
    %3548 = vmatprep.subr.bf16.mxu0 0
    %3549 = vmatpush1.bf16.msra.mxu0 %v2162
    %3550 = vmatprep.subr.bf16.mxu0 0
    %3551 = vmatpush1.bf16.msra.mxu0 %v2165
    %3552 = vmatprep.subr.bf16.mxu0 0
    %3553 = vmatpush1.bf16.msra.mxu0 %v2168
    %3554 = vmatprep.mubr.bf16.mxu0 %v832
    %3555 = vmatmul.mubr.bf16.gmra.mrb[0].mxu0 %v831
    %v3556 = vpop.f32.mrb[0].mxu0
    %v3557 = vadd.f32 %v3460, %v3556
    %v3558 = vpop.f32.mrb[0].mxu0
    %v3559 = vpop.f32.mrb[0].mxu0
    %v3560 = vadd.f32 %v3463, %v3559
    %v3561 = vpop.f32.mrb[0].mxu0
    %3562 = vmatprep.mubr.bf16.mxu0 %v844
    %3563 = vmatmul.mubr.bf16.gmra.mrb[0].mxu0 %v843
    %v3564 = vpop.f32.mrb[0].mxu0
    %v3565 = vadd.f32 %v3468, %v3564
    %v3566 = vpop.f32.mrb[0].mxu0
    %v3567 = vpop.f32.mrb[0].mxu0
    %v3568 = vadd.f32 %v3471, %v3567
    %v3569 = vpop.f32.mrb[0].mxu0
    %3570 = vmatprep.mubr.bf16.mxu0 %v856
    %3571 = vmatmul.mubr.bf16.gmra.mrb[0].mxu0 %v855
    %v3572 = vpop.f32.mrb[0].mxu0
    %v3573 = vadd.f32 %v3476, %v3572
    %v3574 = vpop.f32.mrb[0].mxu0
    %v3575 = vpop.f32.mrb[0].mxu0
    %v3576 = vadd.f32 %v3479, %v3575
    %v3577 = vpop.f32.mrb[0].mxu0
    %3578 = vmatprep.mubr.bf16.mxu0 %v868
    %3579 = vmatmul.mubr.bf16.gmra.mrb[0].mxu0 %v867
    %v3580 = vpop.f32.mrb[0].mxu0
    %v3581 = vadd.f32 %v3484, %v3580
    %v3582 = vpop.f32.mrb[0].mxu0
    %v3583 = vpop.f32.mrb[0].mxu0
    %v3584 = vadd.f32 %v3487, %v3583
    %v3585 = vpop.f32.mrb[0].mxu0
    %3586 = vmatprep.mubr.bf16.mxu0 %v880
    %3587 = vmatmul.mubr.bf16.gmra.mrb[0].mxu0 %v879
    %v3588 = vpop.f32.mrb[0].mxu0
    %v3589 = vadd.f32 %v3492, %v3588
    %v3590 = vpop.f32.mrb[0].mxu0
    %v3591 = vpop.f32.mrb[0].mxu0
    %v3592 = vadd.f32 %v3495, %v3591
    %v3593 = vpop.f32.mrb[0].mxu0
    %3594 = vmatprep.mubr.bf16.mxu0 %v892
    %3595 = vmatmul.mubr.bf16.gmra.mrb[0].mxu0 %v891
    %v3596 = vpop.f32.mrb[0].mxu0
    %v3597 = vadd.f32 %v3500, %v3596
    %v3598 = vpop.f32.mrb[0].mxu0
    %v3599 = vpop.f32.mrb[0].mxu0
    %v3600 = vadd.f32 %v3503, %v3599
    %v3601 = vpop.f32.mrb[0].mxu0
    %3602 = vmatprep.mubr.bf16.mxu0 %v904
    %3603 = vmatmul.mubr.bf16.gmra.mrb[0].mxu0 %v903
    %v3604 = vpop.f32.mrb[0].mxu0
    %v3605 = vadd.f32 %v3508, %v3604
    %v3606 = vpop.f32.mrb[0].mxu0
    %v3607 = vpop.f32.mrb[0].mxu0
    %v3608 = vadd.f32 %v3511, %v3607
    %v3609 = vpop.f32.mrb[0].mxu0
    %3610 = vmatprep.mubr.bf16.mxu0 %v916
    %3611 = vmatmul.mubr.bf16.gmra.mrb[0].mxu0 %v915
    %v3612 = vpop.f32.mrb[0].mxu0
    %v3613 = vadd.f32 %v3516, %v3612
    %v3614 = vpop.f32.mrb[0].mxu0
    %v3615 = vpop.f32.mrb[0].mxu0
    %v3616 = vadd.f32 %v3519, %v3615
    %v3617 = vpop.f32.mrb[0].mxu0
    %3618 = vdwg.mxu0
    %3619 = vmatprep.subr.bf16.mxu0 0
    %3620 = vmatpush1.bf16.msra.mxu0 %v2171
    %3621 = vmatprep.subr.bf16.mxu0 0
    %3622 = vmatpush1.bf16.msra.mxu0 %v2174
    %3623 = vmatprep.subr.bf16.mxu0 0
    %3624 = vmatpush1.bf16.msra.mxu0 %v2177
    %3625 = vmatprep.subr.bf16.mxu0 0
    %3626 = vmatpush1.bf16.msra.mxu0 %v2180
    %3627 = vmatprep.subr.bf16.mxu0 0
    %3628 = vmatpush1.bf16.msra.mxu0 %v2183
    %3629 = vmatprep.subr.bf16.mxu0 0
    %3630 = vmatpush1.bf16.msra.mxu0 %v2186
    %3631 = vmatprep.subr.bf16.mxu0 0
    %3632 = vmatpush1.bf16.msra.mxu0 %v2189
    %3633 = vmatprep.subr.bf16.mxu0 0
    %3634 = vmatpush1.bf16.msra.mxu0 %v2192
    %3635 = vmatprep.subr.bf16.mxu0 0
    %3636 = vmatpush1.bf16.msra.mxu0 %v2195
    %3637 = vmatprep.subr.bf16.mxu0 0
    %3638 = vmatpush1.bf16.msra.mxu0 %v2198
    %3639 = vmatprep.subr.bf16.mxu0 0
    %3640 = vmatpush1.bf16.msra.mxu0 %v2201
    %3641 = vmatprep.subr.bf16.mxu0 0
    %3642 = vmatpush1.bf16.msra.mxu0 %v2204
    %3643 = vmatprep.subr.bf16.mxu0 0
    %3644 = vmatpush1.bf16.msra.mxu0 %v2207
    %3645 = vmatprep.subr.bf16.mxu0 0
    %3646 = vmatpush1.bf16.msra.mxu0 %v2210
    %3647 = vmatprep.subr.bf16.mxu0 0
    %3648 = vmatpush1.bf16.msra.mxu0 %v2213
    %3649 = vmatprep.subr.bf16.mxu0 0
    %3650 = vmatpush1.bf16.msra.mxu0 %v2216
    %3651 = vmatprep.mubr.bf16.mxu0 %v834
    %3652 = vmatmul.mubr.bf16.gmra.mrb[0].mxu0 %v833
    %v3653 = vpop.f32.mrb[0].mxu0
    %v3654 = vadd.f32 %v3557, %v3653
    %v3655 = vpop.f32.mrb[0].mxu0
    %v3656 = vpop.f32.mrb[0].mxu0
    %v3657 = vadd.f32 %v3560, %v3656
    %v3658 = vpop.f32.mrb[0].mxu0
    %3659 = vmatprep.mubr.bf16.mxu0 %v846
    %3660 = vmatmul.mubr.bf16.gmra.mrb[0].mxu0 %v845
    %v3661 = vpop.f32.mrb[0].mxu0
    %v3662 = vadd.f32 %v3565, %v3661
    %v3663 = vpop.f32.mrb[0].mxu0
    %v3664 = vpop.f32.mrb[0].mxu0
    %v3665 = vadd.f32 %v3568, %v3664
    %v3666 = vpop.f32.mrb[0].mxu0
    %3667 = vmatprep.mubr.bf16.mxu0 %v858
    %3668 = vmatmul.mubr.bf16.gmra.mrb[0].mxu0 %v857
    %v3669 = vpop.f32.mrb[0].mxu0
    %v3670 = vadd.f32 %v3573, %v3669
    %v3671 = vpop.f32.mrb[0].mxu0
    %v3672 = vpop.f32.mrb[0].mxu0
    %v3673 = vadd.f32 %v3576, %v3672
    %v3674 = vpop.f32.mrb[0].mxu0
    %3675 = vmatprep.mubr.bf16.mxu0 %v870
    %3676 = vmatmul.mubr.bf16.gmra.mrb[0].mxu0 %v869
    %v3677 = vpop.f32.mrb[0].mxu0
    %v3678 = vadd.f32 %v3581, %v3677
    %v3679 = vpop.f32.mrb[0].mxu0
    %v3680 = vpop.f32.mrb[0].mxu0
    %v3681 = vadd.f32 %v3584, %v3680
    %v3682 = vpop.f32.mrb[0].mxu0
    %3683 = vmatprep.mubr.bf16.mxu0 %v882
    %3684 = vmatmul.mubr.bf16.gmra.mrb[0].mxu0 %v881
    %v3685 = vpop.f32.mrb[0].mxu0
    %v3686 = vadd.f32 %v3589, %v3685
    %v3687 = vpop.f32.mrb[0].mxu0
    %v3688 = vpop.f32.mrb[0].mxu0
    %v3689 = vadd.f32 %v3592, %v3688
    %v3690 = vpop.f32.mrb[0].mxu0
    %3691 = vmatprep.mubr.bf16.mxu0 %v894
    %3692 = vmatmul.mubr.bf16.gmra.mrb[0].mxu0 %v893
    %v3693 = vpop.f32.mrb[0].mxu0
    %v3694 = vadd.f32 %v3597, %v3693
    %v3695 = vpop.f32.mrb[0].mxu0
    %v3696 = vpop.f32.mrb[0].mxu0
    %v3697 = vadd.f32 %v3600, %v3696
    %v3698 = vpop.f32.mrb[0].mxu0
    %3699 = vmatprep.mubr.bf16.mxu0 %v906
    %3700 = vmatmul.mubr.bf16.gmra.mrb[0].mxu0 %v905
    %v3701 = vpop.f32.mrb[0].mxu0
    %v3702 = vadd.f32 %v3605, %v3701
    %v3703 = vpop.f32.mrb[0].mxu0
    %v3704 = vpop.f32.mrb[0].mxu0
    %v3705 = vadd.f32 %v3608, %v3704
    %v3706 = vpop.f32.mrb[0].mxu0
    %3707 = vmatprep.mubr.bf16.mxu0 %v918
    %3708 = vmatmul.mubr.bf16.gmra.mrb[0].mxu0 %v917
    %v3709 = vpop.f32.mrb[0].mxu0
    %v3710 = vadd.f32 %v3613, %v3709
    %v3711 = vpop.f32.mrb[0].mxu0
    %v3712 = vpop.f32.mrb[0].mxu0
    %v3713 = vadd.f32 %v3616, %v3712
    %v3714 = vpop.f32.mrb[0].mxu0
    %3715 = vdwg.mxu0
    %3716 = vmatprep.subr.bf16.mxu0 0
    %3717 = vmatpush1.bf16.msra.mxu0 %v2219
    %3718 = vmatprep.subr.bf16.mxu0 0
    %3719 = vmatpush1.bf16.msra.mxu0 %v2222
    %3720 = vmatprep.subr.bf16.mxu0 0
    %3721 = vmatpush1.bf16.msra.mxu0 %v2225
    %3722 = vmatprep.subr.bf16.mxu0 0
    %3723 = vmatpush1.bf16.msra.mxu0 %v2228
    %3724 = vmatprep.subr.bf16.mxu0 0
    %3725 = vmatpush1.bf16.msra.mxu0 %v2231
    %3726 = vmatprep.subr.bf16.mxu0 0
    %3727 = vmatpush1.bf16.msra.mxu0 %v2234
    %3728 = vmatprep.subr.bf16.mxu0 0
    %3729 = vmatpush1.bf16.msra.mxu0 %v2237
    %3730 = vmatprep.subr.bf16.mxu0 0
    %3731 = vmatpush1.bf16.msra.mxu0 %v2240
    %3732 = vmatprep.subr.bf16.mxu0 0
    %3733 = vmatpush1.bf16.msra.mxu0 %v2243
    %3734 = vmatprep.subr.bf16.mxu0 0
    %3735 = vmatpush1.bf16.msra.mxu0 %v2246
    %3736 = vmatprep.subr.bf16.mxu0 0
    %3737 = vmatpush1.bf16.msra.mxu0 %v2249
    %3738 = vmatprep.subr.bf16.mxu0 0
    %3739 = vmatpush1.bf16.msra.mxu0 %v2252
    %3740 = vmatprep.subr.bf16.mxu0 0
    %3741 = vmatpush1.bf16.msra.mxu0 %v2255
    %3742 = vmatprep.subr.bf16.mxu0 0
    %3743 = vmatpush1.bf16.msra.mxu0 %v2258
    %3744 = vmatprep.subr.bf16.mxu0 0
    %3745 = vmatpush1.bf16.msra.mxu0 %v2261
    %3746 = vmatprep.subr.bf16.mxu0 0
    %3747 = vmatpush1.bf16.msra.mxu0 %v2264
    %3748 = vmatprep.mubr.bf16.mxu0 %v836
    %3749 = vmatmul.mubr.bf16.gmra.mrb[0].mxu0 %v835
    %v3750 = vpop.f32.mrb[0].mxu0
    %v3751 = vadd.f32 %v3654, %v3750
    %v3752 = vpop.f32.mrb[0].mxu0
    %v3753 = vpop.f32.mrb[0].mxu0
    %v3754 = vadd.f32 %v3657, %v3753
    %v3755 = vpop.f32.mrb[0].mxu0
    %3756 = vmatprep.mubr.bf16.mxu0 %v848
    %3757 = vmatmul.mubr.bf16.gmra.mrb[0].mxu0 %v847
    %v3758 = vpop.f32.mrb[0].mxu0
    %v3759 = vadd.f32 %v3662, %v3758
    %v3760 = vpop.f32.mrb[0].mxu0
    %v3761 = vpop.f32.mrb[0].mxu0
    %v3762 = vadd.f32 %v3665, %v3761
    %v3763 = vpop.f32.mrb[0].mxu0
    %3764 = vmatprep.mubr.bf16.mxu0 %v860
    %3765 = vmatmul.mubr.bf16.gmra.mrb[0].mxu0 %v859
    %v3766 = vpop.f32.mrb[0].mxu0
    %v3767 = vadd.f32 %v3670, %v3766
    %v3768 = vpop.f32.mrb[0].mxu0
    %v3769 = vpop.f32.mrb[0].mxu0
    %v3770 = vadd.f32 %v3673, %v3769
    %v3771 = vpop.f32.mrb[0].mxu0
    %3772 = vmatprep.mubr.bf16.mxu0 %v872
    %3773 = vmatmul.mubr.bf16.gmra.mrb[0].mxu0 %v871
    %v3774 = vpop.f32.mrb[0].mxu0
    %v3775 = vadd.f32 %v3678, %v3774
    %v3776 = vpop.f32.mrb[0].mxu0
    %v3777 = vpop.f32.mrb[0].mxu0
    %v3778 = vadd.f32 %v3681, %v3777
    %v3779 = vpop.f32.mrb[0].mxu0
    %3780 = vmatprep.mubr.bf16.mxu0 %v884
    %3781 = vmatmul.mubr.bf16.gmra.mrb[0].mxu0 %v883
    %v3782 = vpop.f32.mrb[0].mxu0
    %v3783 = vadd.f32 %v3686, %v3782
    %v3784 = vpop.f32.mrb[0].mxu0
    %v3785 = vpop.f32.mrb[0].mxu0
    %v3786 = vadd.f32 %v3689, %v3785
    %v3787 = vpop.f32.mrb[0].mxu0
    %3788 = vmatprep.mubr.bf16.mxu0 %v896
    %3789 = vmatmul.mubr.bf16.gmra.mrb[0].mxu0 %v895
    %v3790 = vpop.f32.mrb[0].mxu0
    %v3791 = vadd.f32 %v3694, %v3790
    %v3792 = vpop.f32.mrb[0].mxu0
    %v3793 = vpop.f32.mrb[0].mxu0
    %v3794 = vadd.f32 %v3697, %v3793
    %v3795 = vpop.f32.mrb[0].mxu0
    %3796 = vmatprep.mubr.bf16.mxu0 %v908
    %3797 = vmatmul.mubr.bf16.gmra.mrb[0].mxu0 %v907
    %v3798 = vpop.f32.mrb[0].mxu0
    %v3799 = vadd.f32 %v3702, %v3798
    %v3800 = vpop.f32.mrb[0].mxu0
    %v3801 = vpop.f32.mrb[0].mxu0
    %v3802 = vadd.f32 %v3705, %v3801
    %v3803 = vpop.f32.mrb[0].mxu0
    %3804 = vmatprep.mubr.bf16.mxu0 %v920
    %3805 = vmatmul.mubr.bf16.gmra.mrb[0].mxu0 %v919
    %v3806 = vpop.f32.mrb[0].mxu0
    %v3807 = vadd.f32 %v3710, %v3806
    %v3808 = vpop.f32.mrb[0].mxu0
    %v3809 = vpop.f32.mrb[0].mxu0
    %v3810 = vadd.f32 %v3713, %v3809
    %v3811 = vpop.f32.mrb[0].mxu0
    %3812 = vdwg.mxu0
    %vm3813 = vcmp.gt.f32.partialorder %v3153, 0.0
    %vm3814 = vcmp.gt.f32.partialorder %v3155, 0.0
    %vm3815 = vcmp.gt.f32.partialorder %v3751, 0.0
    %vm3816 = vcmp.gt.f32.partialorder %v3157, 0.0
    %vm3817 = vcmp.gt.f32.partialorder %v3159, 0.0
    %vm3818 = vcmp.gt.f32.partialorder %v3754, 0.0
    %vm3819 = vcmp.gt.f32.partialorder %v3163, 0.0
    %vm3820 = vcmp.gt.f32.partialorder %v3165, 0.0
    %vm3821 = vcmp.gt.f32.partialorder %v3759, 0.0
    %vm3822 = vcmp.gt.f32.partialorder %v3167, 0.0
    %vm3823 = vcmp.gt.f32.partialorder %v3169, 0.0
    %vm3824 = vcmp.gt.f32.partialorder %v3762, 0.0
    %vm3825 = vcmp.gt.f32.partialorder %v3173, 0.0
    %vm3826 = vcmp.gt.f32.partialorder %v3175, 0.0
    %vm3827 = vcmp.gt.f32.partialorder %v3767, 0.0
    %vm3828 = vcmp.gt.f32.partialorder %v3177, 0.0
    %vm3829 = vcmp.gt.f32.partialorder %v3179, 0.0
    %vm3830 = vcmp.gt.f32.partialorder %v3770, 0.0
    %vm3831 = vcmp.gt.f32.partialorder %v3183, 0.0
    %vm3832 = vcmp.gt.f32.partialorder %v3185, 0.0
    %vm3833 = vcmp.gt.f32.partialorder %v3775, 0.0
    %vm3834 = vcmp.gt.f32.partialorder %v3187, 0.0
    %vm3835 = vcmp.gt.f32.partialorder %v3189, 0.0
    %vm3836 = vcmp.gt.f32.partialorder %v3778, 0.0
    %vm3837 = vcmp.gt.f32.partialorder %v3193, 0.0
    %vm3838 = vcmp.gt.f32.partialorder %v3195, 0.0
    %vm3839 = vcmp.gt.f32.partialorder %v3783, 0.0
    %vm3840 = vcmp.gt.f32.partialorder %v3197, 0.0
    %vm3841 = vcmp.gt.f32.partialorder %v3199, 0.0
    %vm3842 = vcmp.gt.f32.partialorder %v3786, 0.0
    %vm3843 = vcmp.gt.f32.partialorder %v3203, 0.0
    %vm3844 = vcmp.gt.f32.partialorder %v3205, 0.0
    %vm3845 = vcmp.gt.f32.partialorder %v3791, 0.0
    %vm3846 = vcmp.gt.f32.partialorder %v3207, 0.0
    %vm3847 = vcmp.gt.f32.partialorder %v3209, 0.0
    %vm3848 = vcmp.gt.f32.partialorder %v3794, 0.0
    %vm3849 = vcmp.gt.f32.partialorder %v3213, 0.0
    %vm3850 = vcmp.gt.f32.partialorder %v3215, 0.0
    %vm3851 = vcmp.gt.f32.partialorder %v3799, 0.0
    %vm3852 = vcmp.gt.f32.partialorder %v3217, 0.0
    %vm3853 = vcmp.gt.f32.partialorder %v3219, 0.0
    %vm3854 = vcmp.gt.f32.partialorder %v3802, 0.0
    %vm3855 = vcmp.gt.f32.partialorder %v3223, 0.0
    %vm3856 = vcmp.gt.f32.partialorder %v3225, 0.0
    %vm3857 = vcmp.gt.f32.partialorder %v3807, 0.0
    %vm3858 = vcmp.gt.f32.partialorder %v3227, 0.0
    %vm3859 = vcmp.gt.f32.partialorder %v3229, 0.0
    %vm3860 = vcmp.gt.f32.partialorder %v3810, 0.0
    %v3861 = vmin.f32 %v3153, 0.0
    %v3862 = vmin.f32 %v3155, 0.0
    %v3863 = vmin.f32 %v3751, 0.0
    %v3864 = vmin.f32 %v3157, 0.0
    %v3865 = vmin.f32 %v3159, 0.0
    %v3866 = vmin.f32 %v3754, 0.0
    %v3867 = vmin.f32 %v3163, 0.0
    %v3868 = vmin.f32 %v3165, 0.0
    %v3869 = vmin.f32 %v3759, 0.0
    %v3870 = vmin.f32 %v3167, 0.0
    %v3871 = vmin.f32 %v3169, 0.0
    %v3872 = vmin.f32 %v3762, 0.0
    %v3873 = vmin.f32 %v3173, 0.0
    %v3874 = vmin.f32 %v3175, 0.0
    %v3875 = vmin.f32 %v3767, 0.0
    %v3876 = vmin.f32 %v3177, 0.0
    %v3877 = vmin.f32 %v3179, 0.0
    %v3878 = vmin.f32 %v3770, 0.0
    %v3879 = vmin.f32 %v3183, 0.0
    %v3880 = vmin.f32 %v3185, 0.0
    %v3881 = vmin.f32 %v3775, 0.0
    %v3882 = vmin.f32 %v3187, 0.0
    %v3883 = vmin.f32 %v3189, 0.0
    %v3884 = vmin.f32 %v3778, 0.0
    %v3885 = vmin.f32 %v3193, 0.0
    %v3886 = vmin.f32 %v3195, 0.0
    %v3887 = vmin.f32 %v3783, 0.0
    %v3888 = vmin.f32 %v3197, 0.0
    %v3889 = vmin.f32 %v3199, 0.0
    %v3890 = vmin.f32 %v3786, 0.0
    %v3891 = vmin.f32 %v3203, 0.0
    %v3892 = vmin.f32 %v3205, 0.0
    %v3893 = vmin.f32 %v3791, 0.0
    %v3894 = vmin.f32 %v3207, 0.0
    %v3895 = vmin.f32 %v3209, 0.0
    %v3896 = vmin.f32 %v3794, 0.0
    %v3897 = vmin.f32 %v3213, 0.0
    %v3898 = vmin.f32 %v3215, 0.0
    %v3899 = vmin.f32 %v3799, 0.0
    %v3900 = vmin.f32 %v3217, 0.0
    %v3901 = vmin.f32 %v3219, 0.0
    %v3902 = vmin.f32 %v3802, 0.0
    %v3903 = vmin.f32 %v3223, 0.0
    %v3904 = vmin.f32 %v3225, 0.0
    %v3905 = vmin.f32 %v3807, 0.0
    %v3906 = vmin.f32 %v3227, 0.0
    %v3907 = vmin.f32 %v3229, 0.0
    %v3908 = vmin.f32 %v3810, 0.0
    %v3909 = vmul.f32 %v3861, 1.442695
    %v3910 = vpow.pop %v3909
    %v3911 = vmul.f32 %v3862, 1.442695
    %v3912 = vpow.pop %v3911
    %v3913 = vmul.f32 %v3863, 1.442695
    %v3914 = vpow.pop %v3913
    %v3915 = vmul.f32 %v3864, 1.442695
    %v3916 = vpow.pop %v3915
    %v3917 = vmul.f32 %v3865, 1.442695
    %v3918 = vpow.pop %v3917
    %v3919 = vmul.f32 %v3866, 1.442695
    %v3920 = vpow.pop %v3919
    %v3921 = vmul.f32 %v3867, 1.442695
    %v3922 = vpow.pop %v3921
    %v3923 = vmul.f32 %v3868, 1.442695
    %v3924 = vpow.pop %v3923
    %v3925 = vmul.f32 %v3869, 1.442695
    %v3926 = vpow.pop %v3925
    %v3927 = vmul.f32 %v3870, 1.442695
    %v3928 = vpow.pop %v3927
    %v3929 = vmul.f32 %v3871, 1.442695
    %v3930 = vpow.pop %v3929
    %v3931 = vmul.f32 %v3872, 1.442695
    %v3932 = vpow.pop %v3931
    %v3933 = vmul.f32 %v3873, 1.442695
    %v3934 = vpow.pop %v3933
    %v3935 = vmul.f32 %v3874, 1.442695
    %v3936 = vpow.pop %v3935
    %v3937 = vmul.f32 %v3875, 1.442695
    %v3938 = vpow.pop %v3937
    %v3939 = vmul.f32 %v3876, 1.442695
    %v3940 = vpow.pop %v3939
    %v3941 = vmul.f32 %v3877, 1.442695
    %v3942 = vpow.pop %v3941
    %v3943 = vmul.f32 %v3878, 1.442695
    %v3944 = vpow.pop %v3943
    %v3945 = vmul.f32 %v3879, 1.442695
    %v3946 = vpow.pop %v3945
    %v3947 = vmul.f32 %v3880, 1.442695
    %v3948 = vpow.pop %v3947
    %v3949 = vmul.f32 %v3881, 1.442695
    %v3950 = vpow.pop %v3949
    %v3951 = vmul.f32 %v3882, 1.442695
    %v3952 = vpow.pop %v3951
    %v3953 = vmul.f32 %v3883, 1.442695
    %v3954 = vpow.pop %v3953
    %v3955 = vmul.f32 %v3884, 1.442695
    %v3956 = vpow.pop %v3955
    %v3957 = vmul.f32 %v3885, 1.442695
    %v3958 = vpow.pop %v3957
    %v3959 = vmul.f32 %v3886, 1.442695
    %v3960 = vpow.pop %v3959
    %v3961 = vmul.f32 %v3887, 1.442695
    %v3962 = vpow.pop %v3961
    %v3963 = vmul.f32 %v3888, 1.442695
    %v3964 = vpow.pop %v3963
    %v3965 = vmul.f32 %v3889, 1.442695
    %v3966 = vpow.pop %v3965
    %v3967 = vmul.f32 %v3890, 1.442695
    %v3968 = vpow.pop %v3967
    %v3969 = vmul.f32 %v3891, 1.442695
    %v3970 = vpow.pop %v3969
    %v3971 = vmul.f32 %v3892, 1.442695
    %v3972 = vpow.pop %v3971
    %v3973 = vmul.f32 %v3893, 1.442695
    %v3974 = vpow.pop %v3973
    %v3975 = vmul.f32 %v3894, 1.442695
    %v3976 = vpow.pop %v3975
    %v3977 = vmul.f32 %v3895, 1.442695
    %v3978 = vpow.pop %v3977
    %v3979 = vmul.f32 %v3896, 1.442695
    %v3980 = vpow.pop %v3979
    %v3981 = vmul.f32 %v3897, 1.442695
    %v3982 = vpow.pop %v3981
    %v3983 = vmul.f32 %v3898, 1.442695
    %v3984 = vpow.pop %v3983
    %v3985 = vmul.f32 %v3899, 1.442695
    %v3986 = vpow.pop %v3985
    %v3987 = vmul.f32 %v3900, 1.442695
    %v3988 = vpow.pop %v3987
    %v3989 = vmul.f32 %v3901, 1.442695
    %v3990 = vpow.pop %v3989
    %v3991 = vmul.f32 %v3902, 1.442695
    %v3992 = vpow.pop %v3991
    %v3993 = vmul.f32 %v3903, 1.442695
    %v3994 = vpow.pop %v3993
    %v3995 = vmul.f32 %v3904, 1.442695
    %v3996 = vpow.pop %v3995
    %v3997 = vmul.f32 %v3905, 1.442695
    %v3998 = vpow.pop %v3997
    %v3999 = vmul.f32 %v3906, 1.442695
    %v4000 = vpow.pop %v3999
    %v4001 = vmul.f32 %v3907, 1.442695
    %v4002 = vpow.pop %v4001
    %v4003 = vmul.f32 %v3908, 1.442695
    %v4004 = vpow.pop %v4003
    %v4005 = vsub.f32 %v3910, 1.0
    %v4006 = vsub.f32 %v3912, 1.0
    %v4007 = vsub.f32 %v3914, 1.0
    %v4008 = vsub.f32 %v3916, 1.0
    %v4009 = vsub.f32 %v3918, 1.0
    %v4010 = vsub.f32 %v3920, 1.0
    %v4011 = vsub.f32 %v3922, 1.0
    %v4012 = vsub.f32 %v3924, 1.0
    %v4013 = vsub.f32 %v3926, 1.0
    %v4014 = vsub.f32 %v3928, 1.0
    %v4015 = vsub.f32 %v3930, 1.0
    %v4016 = vsub.f32 %v3932, 1.0
    %v4017 = vsub.f32 %v3934, 1.0
    %v4018 = vsub.f32 %v3936, 1.0
    %v4019 = vsub.f32 %v3938, 1.0
    %v4020 = vsub.f32 %v3940, 1.0
    %v4021 = vsub.f32 %v3942, 1.0
    %v4022 = vsub.f32 %v3944, 1.0
    %v4023 = vsub.f32 %v3946, 1.0
    %v4024 = vsub.f32 %v3948, 1.0
    %v4025 = vsub.f32 %v3950, 1.0
    %v4026 = vsub.f32 %v3952, 1.0
    %v4027 = vsub.f32 %v3954, 1.0
    %v4028 = vsub.f32 %v3956, 1.0
    %v4029 = vsub.f32 %v3958, 1.0
    %v4030 = vsub.f32 %v3960, 1.0
    %v4031 = vsub.f32 %v3962, 1.0
    %v4032 = vsub.f32 %v3964, 1.0
    %v4033 = vsub.f32 %v3966, 1.0
    %v4034 = vsub.f32 %v3968, 1.0
    %v4035 = vsub.f32 %v3970, 1.0
    %v4036 = vsub.f32 %v3972, 1.0
    %v4037 = vsub.f32 %v3974, 1.0
    %v4038 = vsub.f32 %v3976, 1.0
    %v4039 = vsub.f32 %v3978, 1.0
    %v4040 = vsub.f32 %v3980, 1.0
    %v4041 = vsub.f32 %v3982, 1.0
    %v4042 = vsub.f32 %v3984, 1.0
    %v4043 = vsub.f32 %v3986, 1.0
    %v4044 = vsub.f32 %v3988, 1.0
    %v4045 = vsub.f32 %v3990, 1.0
    %v4046 = vsub.f32 %v3992, 1.0
    %v4047 = vsub.f32 %v3994, 1.0
    %v4048 = vsub.f32 %v3996, 1.0
    %v4049 = vsub.f32 %v3998, 1.0
    %v4050 = vsub.f32 %v4000, 1.0
    %v4051 = vsub.f32 %v4002, 1.0
    %v4052 = vsub.f32 %v4004, 1.0
    %v4053 = vsel %vm3813, %v3153, %v4005
    %v4054 = vsel %vm3814, %v3155, %v4006
    %v4055 = vsel %vm3815, %v3751, %v4007
    %v4056 = vsel %vm3816, %v3157, %v4008
    %v4057 = vsel %vm3817, %v3159, %v4009
    %v4058 = vsel %vm3818, %v3754, %v4010
    %v4059 = vsel %vm3819, %v3163, %v4011
    %v4060 = vsel %vm3820, %v3165, %v4012
    %v4061 = vsel %vm3821, %v3759, %v4013
    %v4062 = vsel %vm3822, %v3167, %v4014
    %v4063 = vsel %vm3823, %v3169, %v4015
    %v4064 = vsel %vm3824, %v3762, %v4016
    %v4065 = vsel %vm3825, %v3173, %v4017
    %v4066 = vsel %vm3826, %v3175, %v4018
    %v4067 = vsel %vm3827, %v3767, %v4019
    %v4068 = vsel %vm3828, %v3177, %v4020
    %v4069 = vsel %vm3829, %v3179, %v4021
    %v4070 = vsel %vm3830, %v3770, %v4022
    %v4071 = vsel %vm3831, %v3183, %v4023
    %v4072 = vsel %vm3832, %v3185, %v4024
    %v4073 = vsel %vm3833, %v3775, %v4025
    %v4074 = vsel %vm3834, %v3187, %v4026
    %v4075 = vsel %vm3835, %v3189, %v4027
    %v4076 = vsel %vm3836, %v3778, %v4028
    %v4077 = vsel %vm3837, %v3193, %v4029
    %v4078 = vsel %vm3838, %v3195, %v4030
    %v4079 = vsel %vm3839, %v3783, %v4031
    %v4080 = vsel %vm3840, %v3197, %v4032
    %v4081 = vsel %vm3841, %v3199, %v4033
    %v4082 = vsel %vm3842, %v3786, %v4034
    %v4083 = vsel %vm3843, %v3203, %v4035
    %v4084 = vsel %vm3844, %v3205, %v4036
    %v4085 = vsel %vm3845, %v3791, %v4037
    %v4086 = vsel %vm3846, %v3207, %v4038
    %v4087 = vsel %vm3847, %v3209, %v4039
    %v4088 = vsel %vm3848, %v3794, %v4040
    %v4089 = vsel %vm3849, %v3213, %v4041
    %v4090 = vsel %vm3850, %v3215, %v4042
    %v4091 = vsel %vm3851, %v3799, %v4043
    %v4092 = vsel %vm3852, %v3217, %v4044
    %v4093 = vsel %vm3853, %v3219, %v4045
    %v4094 = vsel %vm3854, %v3802, %v4046
    %v4095 = vsel %vm3855, %v3223, %v4047
    %v4096 = vsel %vm3856, %v3225, %v4048
    %v4097 = vsel %vm3857, %v3807, %v4049
    %v4098 = vsel %vm3858, %v3227, %v4050
    %v4099 = vsel %vm3859, %v3229, %v4051
    %v4100 = vsel %vm3860, %v3810, %v4052
    %v4101 = vpack.c.bf16 %v4056, %v4053
    %v4102 = vpack.c.bf16 %v4057, %v4054
    %v4103 = vpack.c.bf16 %v4062, %v4059
    %v4104 = vpack.c.bf16 %v4063, %v4060
    %v4105 = vpack.c.bf16 %v4068, %v4065
    %v4106 = vpack.c.bf16 %v4069, %v4066
    %v4107 = vpack.c.bf16 %v4074, %v4071
    %v4108 = vpack.c.bf16 %v4075, %v4072
    %v4109 = vpack.c.bf16 %v4080, %v4077
    %v4110 = vpack.c.bf16 %v4081, %v4078
    %v4111 = vpack.c.bf16 %v4086, %v4083
    %v4112 = vpack.c.bf16 %v4087, %v4084
    %v4113 = vpack.c.bf16 %v4092, %v4089
    %v4114 = vpack.c.bf16 %v4093, %v4090
    %v4115 = vpack.c.bf16 %v4098, %v4095
    %v4116 = vpack.c.bf16 %v4099, %v4096
    %v4117 = vpack.c.bf16 %v4058, %v4055
    %v4118 = vpack.c.bf16 %v4064, %v4061
    %v4119 = vpack.c.bf16 %v4070, %v4067
    %v4120 = vpack.c.bf16 %v4076, %v4073
    %v4121 = vpack.c.bf16 %v4082, %v4079
    %v4122 = vpack.c.bf16 %v4088, %v4085
    %v4123 = vpack.c.bf16 %v4094, %v4091
    %v4124 = vpack.c.bf16 %v4100, %v4097
    %v4125 = vld [vmem:[%s3] sm:$0xf]
    %v4126 = vld [vmem:[%s3 + $0x4] sm:$0xf]
    %v4127 = vld [vmem:[%s3 + $0x8] sm:$0xf]
    %v4128 = vld [vmem:[%s3 + $0xc] sm:$0xf]
    %v4129 = vld [vmem:[%s4] sm:$0xf]
    %v4130 = vld [vmem:[%s4 + $0x4] sm:$0xf]
    %v4131 = vld [vmem:[%s4 + $0x8] sm:$0xf]
    %v4132 = vld [vmem:[%s4 + $0xc] sm:$0xf]
    %v4137 = vunpack.c.l.b16 %v4129
    %v4138 = vunpack.c.l.b16 %v4130
    %v4139 = vunpack.c.l.b16 %v4131
    %v4140 = vunpack.c.l.b16 %v4132
    %v4141 = vpack.c.b16 %v4138, %v4137
    %v4142 = vpack.c.b16 %v4140, %v4139
    %4161 = vrot.lane.b32.xlu0 %v4102, 64
    %v4162 = vpop.permute.xlu0 %4161
    %4163 = vrot.lane.b32.xlu0 %v4117, 64
    %v4164 = vpop.permute.xlu0 %4163
    %4165 = vrot.lane.b32.xlu0 %v4104, 64
    %v4166 = vpop.permute.xlu0 %4165
    %4167 = vrot.lane.b32.xlu0 %v4118, 64
    %v4168 = vpop.permute.xlu0 %4167
    %4169 = vrot.lane.b32.xlu0 %v4106, 64
    %v4170 = vpop.permute.xlu0 %4169
    %4171 = vrot.lane.b32.xlu0 %v4119, 64
    %v4172 = vpop.permute.xlu0 %4171
    %4173 = vrot.lane.b32.xlu0 %v4108, 64
    %v4174 = vpop.permute.xlu0 %4173
    %4175 = vrot.lane.b32.xlu0 %v4120, 64
    %v4176 = vpop.permute.xlu0 %4175
    %4177 = vrot.lane.b32.xlu0 %v4110, 64
    %v4178 = vpop.permute.xlu0 %4177
    %4179 = vrot.lane.b32.xlu0 %v4121, 64
    %v4180 = vpop.permute.xlu0 %4179
    %4181 = vrot.lane.b32.xlu0 %v4112, 64
    %v4182 = vpop.permute.xlu0 %4181
    %4183 = vrot.lane.b32.xlu0 %v4122, 64
    %v4184 = vpop.permute.xlu0 %4183
    %4185 = vrot.lane.b32.xlu0 %v4114, 64
    %v4186 = vpop.permute.xlu0 %4185
    %4187 = vrot.lane.b32.xlu0 %v4123, 64
    %v4188 = vpop.permute.xlu0 %4187
    %4189 = vrot.lane.b32.xlu0 %v4116, 64
    %v4190 = vpop.permute.xlu0 %4189
    %4191 = vrot.lane.b32.xlu0 %v4124, 64
    %v4192 = vpop.permute.xlu0 %4191
    %vm4193 = vcmask 523264
    %v4194 = vsel %vm4193, %v4162, %v4164
    %v4195 = vsel %vm4193, %v4166, %v4168
    %v4196 = vsel %vm4193, %v4170, %v4172
    %v4197 = vsel %vm4193, %v4174, %v4176
    %v4198 = vsel %vm4193, %v4178, %v4180
    %v4199 = vsel %vm4193, %v4182, %v4184
    %v4200 = vsel %vm4193, %v4186, %v4188
    %v4201 = vsel %vm4193, %v4190, %v4192
    %4218 = vmatprep.subr.bf16.mxu0 %v4164
    %4219 = vmatpush1.bf16.msra.mxu0 %v4194
    %4220 = vmatprep.subr.bf16.mxu0 %v4168
    %4221 = vmatpush1.bf16.msra.mxu0 %v4195
    %4222 = vmatprep.subr.bf16.mxu0 %v4172
    %4223 = vmatpush1.bf16.msra.mxu0 %v4196
    %4224 = vmatprep.subr.bf16.mxu0 %v4176
    %4225 = vmatpush1.bf16.msra.mxu0 %v4197
    %4226 = vmatprep.subr.bf16.mxu0 %v4180
    %4227 = vmatpush1.bf16.msra.mxu0 %v4198
    %4228 = vmatprep.subr.bf16.mxu0 %v4184
    %4229 = vmatpush1.bf16.msra.mxu0 %v4199
    %4230 = vmatprep.subr.bf16.mxu0 %v4188
    %4231 = vmatpush1.bf16.msra.mxu0 %v4200
    %4232 = vmatprep.subr.bf16.mxu0 %v4192
    %4233 = vmatpush1.bf16.msra.mxu0 %v4201
    %4234 = vmatprep.subr.bf16.mxu0 0
    %4235 = vmatpush1.bf16.msra.mxu0 0
    %4236 = vmatprep.subr.bf16.mxu0 0
    %4237 = vmatpush1.bf16.msra.mxu0 0
    %4238 = vmatprep.subr.bf16.mxu0 0
    %4239 = vmatpush1.bf16.msra.mxu0 0
    %4240 = vmatprep.subr.bf16.mxu0 0
    %4241 = vmatpush1.bf16.msra.mxu0 0
    %4242 = vmatprep.subr.bf16.mxu0 0
    %4243 = vmatpush1.bf16.msra.mxu0 0
    %4244 = vmatprep.subr.bf16.mxu0 0
    %4245 = vmatpush1.bf16.msra.mxu0 0
    %4246 = vmatprep.subr.bf16.mxu0 0
    %4247 = vmatpush1.bf16.msra.mxu0 0
    %4248 = vmatprep.subr.bf16.mxu0 0
    %4249 = vmatpush1.bf16.msra.mxu0 0
    %4250 = vmatprep.mubr.bf16.mxu0 0
    %4251 = vmatmul.mubr.bf16.gmra.mrb[0].mxu0 %v4141
    %v4252 = vpop.f32.mrb[0].mxu0
    %v4253 = vadd.f32 0.0, %v4252
    %v4254 = vpop.f32.mrb[0].mxu0
    %v4255 = vadd.f32 0.0, %v4254
    %v4256 = vpop.f32.mrb[0].mxu0
    %v4257 = vadd.f32 0.0, %v4256
    %v4258 = vpop.f32.mrb[0].mxu0
    %v4259 = vadd.f32 0.0, %v4258
    %4260 = vmatprep.mubr.bf16.mxu0 0
    %4261 = vmatmul.mubr.bf16.gmra.mrb[0].mxu0 %v4142
    %v4262 = vpop.f32.mrb[0].mxu0
    %v4263 = vadd.f32 0.0, %v4262
    %v4264 = vpop.f32.mrb[0].mxu0
    %v4265 = vadd.f32 0.0, %v4264
    %v4266 = vpop.f32.mrb[0].mxu0
    %v4267 = vadd.f32 0.0, %v4266
    %v4268 = vpop.f32.mrb[0].mxu0
    %v4269 = vadd.f32 0.0, %v4268
    %4270 = vdwg.mxu0
    %v4275 = vunpack.c.l.b16 %v4125
    %v4276 = vunpack.c.l.b16 %v4126
    %v4277 = vunpack.c.l.b16 %v4127
    %v4278 = vunpack.c.l.b16 %v4128
    %v4279 = vpack.c.b16 %v4276, %v4275
    %v4280 = vpack.c.b16 %v4278, %v4277
    %4283 = vmatprep.subr.bf16.mxu0 %v4102
    %4284 = vmatpush1.bf16.msra.mxu0 %v4101
    %4285 = vmatprep.subr.bf16.mxu0 %v4104
    %4286 = vmatpush1.bf16.msra.mxu0 %v4103
    %4287 = vmatprep.subr.bf16.mxu0 %v4106
    %4288 = vmatpush1.bf16.msra.mxu0 %v4105
    %4289 = vmatprep.subr.bf16.mxu0 %v4108
    %4290 = vmatpush1.bf16.msra.mxu0 %v4107
    %4291 = vmatprep.subr.bf16.mxu0 %v4110
    %4292 = vmatpush1.bf16.msra.mxu0 %v4109
    %4293 = vmatprep.subr.bf16.mxu0 %v4112
    %4294 = vmatpush1.bf16.msra.mxu0 %v4111
    %4295 = vmatprep.subr.bf16.mxu0 %v4114
    %4296 = vmatpush1.bf16.msra.mxu0 %v4113
    %4297 = vmatprep.subr.bf16.mxu0 %v4116
    %4298 = vmatpush1.bf16.msra.mxu0 %v4115
    %4299 = vmatprep.subr.bf16.mxu0 0
    %4300 = vmatpush1.bf16.msra.mxu0 0
    %4301 = vmatprep.subr.bf16.mxu0 0
    %4302 = vmatpush1.bf16.msra.mxu0 0
    %4303 = vmatprep.subr.bf16.mxu0 0
    %4304 = vmatpush1.bf16.msra.mxu0 0
    %4305 = vmatprep.subr.bf16.mxu0 0
    %4306 = vmatpush1.bf16.msra.mxu0 0
    %4307 = vmatprep.subr.bf16.mxu0 0
    %4308 = vmatpush1.bf16.msra.mxu0 0
    %4309 = vmatprep.subr.bf16.mxu0 0
    %4310 = vmatpush1.bf16.msra.mxu0 0
    %4311 = vmatprep.subr.bf16.mxu0 0
    %4312 = vmatpush1.bf16.msra.mxu0 0
    %4313 = vmatprep.subr.bf16.mxu0 0
    %4314 = vmatpush1.bf16.msra.mxu0 0
    %4315 = vmatprep.mubr.bf16.mxu0 0
    %4316 = vmatmul.mubr.bf16.gmra.mrb[0].mxu0 %v4279
    %v4317 = vpop.f32.mrb[0].mxu0
    %v4318 = vadd.f32 %v4253, %v4317
    %v4319 = vpop.f32.mrb[0].mxu0
    %v4320 = vadd.f32 %v4255, %v4319
    %v4321 = vpop.f32.mrb[0].mxu0
    %v4322 = vadd.f32 %v4257, %v4321
    %v4323 = vpop.f32.mrb[0].mxu0
    %v4324 = vadd.f32 %v4259, %v4323
    %4325 = vmatprep.mubr.bf16.mxu0 0
    %4326 = vmatmul.mubr.bf16.gmra.mrb[0].mxu0 %v4280
    %v4327 = vpop.f32.mrb[0].mxu0
    %v4328 = vadd.f32 %v4263, %v4327
    %v4329 = vpop.f32.mrb[0].mxu0
    %v4330 = vadd.f32 %v4265, %v4329
    %v4331 = vpop.f32.mrb[0].mxu0
    %v4332 = vadd.f32 %v4267, %v4331
    %v4333 = vpop.f32.mrb[0].mxu0
    %v4334 = vadd.f32 %v4269, %v4333
    %4335 = vdwg.mxu0
    %v4336 = vld [vmem:[%s5] sm:$0xff]
    %v4337 = vld [vmem:[%s5 + $0x8] sm:$0xff]
    %v4338 = vld [vmem:[%s5 + $0x10] sm:$0xff]
    %v4339 = vld [vmem:[%s5 + $0x18] sm:$0xff]
    %4341 = vset.pattern.permute.xlu0 0
    %4342 = vperm.xlu0 %4341, %v4336
    %v4343 = vpop.permute.xlu0 %4342
    %4346 = vset.pattern.permute.xlu0 0
    %4347 = vperm.xlu0 %4346, %v4337
    %v4348 = vpop.permute.xlu0 %4347
    %4351 = vset.pattern.permute.xlu0 0
    %4352 = vperm.xlu0 %4351, %v4338
    %v4353 = vpop.permute.xlu0 %4352
    %4356 = vset.pattern.permute.xlu0 0
    %4357 = vperm.xlu0 %4356, %v4339
    %v4358 = vpop.permute.xlu0 %4357
    %v4360 = vadd.f32 %v4318, %v4343
    %v4361 = vadd.f32 %v4320, %v4343
    %v4362 = vadd.f32 %v4322, %v4348
    %v4363 = vadd.f32 %v4324, %v4348
    %v4364 = vadd.f32 %v4328, %v4353
    %v4365 = vadd.f32 %v4330, %v4353
    %v4366 = vadd.f32 %v4332, %v4358
    %v4367 = vadd.f32 %v4334, %v4358
    %v4368 = vpack.c.bf16 %v4362, %v4360
    %v4369 = vpack.c.bf16 %v4363, %v4361
    %v4370 = vpack.c.bf16 %v4366, %v4364
    %v4371 = vpack.c.bf16 %v4367, %v4365
    %v4372 = vld [vmem:[%s6] sm:$0xf]
    %v4373 = vld [vmem:[%s6 + $0x4] sm:$0xf]
    %v4374 = vld [vmem:[%s6 + $0x8] sm:$0xf]
    %v4375 = vld [vmem:[%s6 + $0xc] sm:$0xf]
    %v4376 = vld [vmem:[%s6 + $0x10] sm:$0xf]
    %v4377 = vld [vmem:[%s6 + $0x14] sm:$0xf]
    %v4378 = vld [vmem:[%s6 + $0x18] sm:$0xf]
    %v4379 = vld [vmem:[%s6 + $0x1c] sm:$0xf]
    %v4380 = vld [vmem:[%s6 + $0x20] sm:$0xf]
    %v4381 = vld [vmem:[%s6 + $0x24] sm:$0xf]
    %v4382 = vld [vmem:[%s6 + $0x28] sm:$0xf]
    %v4383 = vld [vmem:[%s6 + $0x2c] sm:$0xf]
    %v4384 = vld [vmem:[%s6 + $0x30] sm:$0xf]
    %v4385 = vld [vmem:[%s6 + $0x34] sm:$0xf]
    %v4386 = vld [vmem:[%s6 + $0x38] sm:$0xf]
    %v4387 = vld [vmem:[%s6 + $0x3c] sm:$0xf]
    %v4388 = vld [vmem:[%s6 + $0x40] sm:$0xf]
    %v4389 = vld [vmem:[%s6 + $0x44] sm:$0xf]
    %v4390 = vld [vmem:[%s6 + $0x48] sm:$0xf]
    %v4391 = vld [vmem:[%s6 + $0x4c] sm:$0xf]
    %v4392 = vld [vmem:[%s6 + $0x50] sm:$0xf]
    %v4393 = vld [vmem:[%s6 + $0x54] sm:$0xf]
    %v4394 = vld [vmem:[%s6 + $0x58] sm:$0xf]
    %v4395 = vld [vmem:[%s6 + $0x5c] sm:$0xf]
    %v4420 = vunpack.c.l.b16 %v4372
    %v4421 = vunpack.c.l.b16 %v4373
    %v4422 = vunpack.c.l.b16 %v4374
    %v4423 = vunpack.c.l.b16 %v4375
    %v4424 = vunpack.c.l.b16 %v4376
    %v4425 = vunpack.c.l.b16 %v4377
    %v4426 = vunpack.c.l.b16 %v4378
    %v4427 = vunpack.c.l.b16 %v4379
    %v4428 = vunpack.c.l.b16 %v4380
    %v4429 = vunpack.c.l.b16 %v4381
    %v4430 = vunpack.c.l.b16 %v4382
    %v4431 = vunpack.c.l.b16 %v4383
    %v4432 = vunpack.c.l.b16 %v4384
    %v4433 = vunpack.c.l.b16 %v4385
    %v4434 = vunpack.c.l.b16 %v4386
    %v4435 = vunpack.c.l.b16 %v4387
    %v4436 = vunpack.c.l.b16 %v4388
    %v4437 = vunpack.c.l.b16 %v4389
    %v4438 = vunpack.c.l.b16 %v4390
    %v4439 = vunpack.c.l.b16 %v4391
    %v4440 = vunpack.c.l.b16 %v4392
    %v4441 = vunpack.c.l.b16 %v4393
    %v4442 = vunpack.c.l.b16 %v4394
    %v4443 = vunpack.c.l.b16 %v4395
    %v4444 = vpack.c.b16 %v4421, %v4420
    %v4445 = vpack.c.b16 %v4423, %v4422
    %v4446 = vpack.c.b16 %v4425, %v4424
    %v4447 = vpack.c.b16 %v4427, %v4426
    %v4448 = vpack.c.b16 %v4429, %v4428
    %v4449 = vpack.c.b16 %v4431, %v4430
    %v4450 = vpack.c.b16 %v4433, %v4432
    %v4451 = vpack.c.b16 %v4435, %v4434
    %v4452 = vpack.c.b16 %v4437, %v4436
    %v4453 = vpack.c.b16 %v4439, %v4438
    %v4454 = vpack.c.b16 %v4441, %v4440
    %v4455 = vpack.c.b16 %v4443, %v4442
    %vm4468 = vcmask 523264
    %v4470 = vsel %vm4468, %v4369, 0
    %v4473 = vsel %vm4468, %v4371, 0
    %4475 = vmatprep.subr.bf16.mxu0 0
    %4476 = vmatpush1.bf16.msra.mxu0 %v4444
    %4477 = vmatprep.subr.bf16.mxu0 0
    %4478 = vmatpush1.bf16.msra.mxu0 %v4445
    %4479 = vmatprep.subr.bf16.mxu0 0
    %4480 = vmatpush1.bf16.msra.mxu0 %v4446
    %4481 = vmatprep.subr.bf16.mxu0 0
    %4482 = vmatpush1.bf16.msra.mxu0 %v4447
    %4483 = vmatprep.subr.bf16.mxu0 0
    %4484 = vmatpush1.bf16.msra.mxu0 %v4448
    %4485 = vmatprep.subr.bf16.mxu0 0
    %4486 = vmatpush1.bf16.msra.mxu0 %v4449
    %4487 = vmatprep.subr.bf16.mxu0 0
    %4488 = vmatpush1.bf16.msra.mxu0 %v4450
    %4489 = vmatprep.subr.bf16.mxu0 0
    %4490 = vmatpush1.bf16.msra.mxu0 %v4451
    %4491 = vmatprep.subr.bf16.mxu0 0
    %4492 = vmatpush1.bf16.msra.mxu0 %v4452
    %4493 = vmatprep.subr.bf16.mxu0 0
    %4494 = vmatpush1.bf16.msra.mxu0 %v4453
    %4495 = vmatprep.subr.bf16.mxu0 0
    %4496 = vmatpush1.bf16.msra.mxu0 %v4454
    %4497 = vmatprep.subr.bf16.mxu0 0
    %4498 = vmatpush1.bf16.msra.mxu0 %v4455
    %4499 = vmatprep.subr.bf16.mxu0 0
    %4500 = vmatpush1.bf16.msra.mxu0 0
    %4501 = vmatprep.subr.bf16.mxu0 0
    %4502 = vmatpush1.bf16.msra.mxu0 0
    %4503 = vmatprep.subr.bf16.mxu0 0
    %4504 = vmatpush1.bf16.msra.mxu0 0
    %4505 = vmatprep.subr.bf16.mxu0 0
    %4506 = vmatpush1.bf16.msra.mxu0 0
    %4507 = vmatprep.mubr.bf16.mxu0 %v4470
    %4508 = vmatmul.mubr.bf16.gmra.mrb[0].mxu0 %v4368
    %v4509 = vpop.f32.mrb[0].mxu0
    %v4510 = vadd.f32 0.0, %v4509
    %v4511 = vpop.f32.mrb[0].mxu0
    %v4512 = vpop.f32.mrb[0].mxu0
    %v4513 = vadd.f32 0.0, %v4512
    %v4514 = vpop.f32.mrb[0].mxu0
    %4515 = vmatprep.mubr.bf16.mxu0 %v4473
    %4516 = vmatmul.mubr.bf16.gmra.mrb[0].mxu0 %v4370
    %v4517 = vpop.f32.mrb[0].mxu0
    %v4518 = vadd.f32 0.0, %v4517
    %v4519 = vpop.f32.mrb[0].mxu0
    %v4520 = vpop.f32.mrb[0].mxu0
    %v4521 = vadd.f32 0.0, %v4520
    %v4522 = vpop.f32.mrb[0].mxu0
    %4523 = vdwg.mxu0
    %vm4524 = vcmp.gt.f32.partialorder %v4510, 0.0
    %vm4525 = vcmp.gt.f32.partialorder %v4513, 0.0
    %vm4526 = vcmp.gt.f32.partialorder %v4518, 0.0
    %vm4527 = vcmp.gt.f32.partialorder %v4521, 0.0
    %v4528 = vmin.f32 %v4510, 0.0
    %v4529 = vmin.f32 %v4513, 0.0
    %v4530 = vmin.f32 %v4518, 0.0
    %v4531 = vmin.f32 %v4521, 0.0
    %v4532 = vmul.f32 %v4528, 1.442695
    %v4533 = vpow.pop %v4532
    %v4534 = vmul.f32 %v4529, 1.442695
    %v4535 = vpow.pop %v4534
    %v4536 = vmul.f32 %v4530, 1.442695
    %v4537 = vpow.pop %v4536
    %v4538 = vmul.f32 %v4531, 1.442695
    %v4539 = vpow.pop %v4538
    %v4540 = vsub.f32 %v4533, 1.0
    %v4541 = vsub.f32 %v4535, 1.0
    %v4542 = vsub.f32 %v4537, 1.0
    %v4543 = vsub.f32 %v4539, 1.0
    %v4544 = vsel %vm4524, %v4510, %v4540
    %v4545 = vsel %vm4525, %v4513, %v4541
    %v4546 = vsel %vm4526, %v4518, %v4542
    %v4547 = vsel %vm4527, %v4521, %v4543
    %v4548 = vld [vmem:[%s7] sm:$0xff]
    %v4549 = vld [vmem:[%s7 + $0x8] sm:$0xff]
    %v4550 = vld [vmem:[%s7 + $0x10] sm:$0xff]
    %v4551 = vld [vmem:[%s7 + $0x18] sm:$0xff]
    %v4552 = vmul.f32 %v4544, %v4548
    %v4553 = vmul.f32 %v4545, %v4549
    %v4554 = vmul.f32 %v4546, %v4550
    %v4555 = vmul.f32 %v4547, %v4551
    %vm4556 = vcmask 97280
    %v4557 = vsel %vm4556, %v4552, 0.0
    %4558 = vadd.xlane.f32.xlu0 %v4557
    %v4559 = vpop.xlane.xlu0 %4558
    %v4560 = vsel %vm4556, %v4553, 0.0
    %4561 = vadd.xlane.f32.xlu0 %v4560
    %v4562 = vpop.xlane.xlu0 %4561
    %v4563 = vsel %vm4556, %v4554, 0.0
    %4564 = vadd.xlane.f32.xlu0 %v4563
    %v4565 = vpop.xlane.xlu0 %4564
    %v4566 = vsel %vm4556, %v4555, 0.0
    %4567 = vadd.xlane.f32.xlu0 %v4566
    %v4568 = vpop.xlane.xlu0 %4567
    %v4569 = vld [vmem:[%s8] sm:$0xff]
    %v4570 = vld [vmem:[%s8 + $0x8] sm:$0xff]
    %v4571 = vld [vmem:[%s8 + $0x10] sm:$0xff]
    %v4572 = vld [vmem:[%s8 + $0x18] sm:$0xff]
    %v4573 = vmul.f32 %v4544, %v4569
    %v4574 = vmul.f32 %v4545, %v4570
    %v4575 = vmul.f32 %v4546, %v4571
    %v4576 = vmul.f32 %v4547, %v4572
    %v4577 = vsel %vm4556, %v4573, 0.0
    %4578 = vadd.xlane.f32.xlu0 %v4577
    %v4579 = vpop.xlane.xlu0 %4578
    %v4580 = vsel %vm4556, %v4574, 0.0
    %4581 = vadd.xlane.f32.xlu0 %v4580
    %v4582 = vpop.xlane.xlu0 %4581
    %v4583 = vsel %vm4556, %v4575, 0.0
    %4584 = vadd.xlane.f32.xlu0 %v4583
    %v4585 = vpop.xlane.xlu0 %4584
    %v4586 = vsel %vm4556, %v4576, 0.0
    %4587 = vadd.xlane.f32.xlu0 %v4586
    %v4588 = vpop.xlane.xlu0 %4587
    %v4589 = vld [vmem:[%s9] sm:$0x3]
    %vm4590 = vcmask 261120
    %v4592 = vsel %vm4590, %v4589, 0
    %4594 = vmatprep.subr.mxu0 0.0
    %4595 = vmatpush1.msra.mxu0 %v4559
    %4596 = vmatprep.subr.mxu0 0.0
    %4597 = vmatpush1.msra.mxu0 %v4562
    %4598 = vmatprep.subr.mxu0 0.0
    %4599 = vmatpush1.msra.mxu0 %v4565
    %4600 = vmatprep.subr.mxu0 0.0
    %4601 = vmatpush1.msra.mxu0 %v4568
    %4602 = vmatprep.subr.mxu0 0.0
    %4603 = vmatpush1.msra.mxu0 0.0
    %4604 = vmatprep.subr.mxu0 0.0
    %4605 = vmatpush1.msra.mxu0 0.0
    %4606 = vmatprep.subr.mxu0 0.0
    %4607 = vmatpush1.msra.mxu0 0.0
    %4608 = vmatprep.subr.mxu0 0.0
    %4609 = vmatpush1.msra.mxu0 0.0
    %4610 = vmatprep.subr.mxu0 0.0
    %4611 = vmatpush1.msra.mxu0 0.0
    %4612 = vmatprep.subr.mxu0 0.0
    %4613 = vmatpush1.msra.mxu0 0.0
    %4614 = vmatprep.subr.mxu0 0.0
    %4615 = vmatpush1.msra.mxu0 0.0
    %4616 = vmatprep.subr.mxu0 0.0
    %4617 = vmatpush1.msra.mxu0 0.0
    %4618 = vmatprep.subr.mxu0 0.0
    %4619 = vmatpush1.msra.mxu0 0.0
    %4620 = vmatprep.subr.mxu0 0.0
    %4621 = vmatpush1.msra.mxu0 0.0
    %4622 = vmatprep.subr.mxu0 0.0
    %4623 = vmatpush1.msra.mxu0 0.0
    %4624 = vmatprep.subr.mxu0 0.0
    %4625 = vmatpush1.msra.mxu0 0.0
    %4626 = vmatprep.subr.mxu0 0.0
    %4627 = vmatpush1.msra.mxu0 0.0
    %4628 = vmatprep.subr.mxu0 0.0
    %4629 = vmatpush1.msra.mxu0 0.0
    %4630 = vmatprep.subr.mxu0 0.0
    %4631 = vmatpush1.msra.mxu0 0.0
    %4632 = vmatprep.subr.mxu0 0.0
    %4633 = vmatpush1.msra.mxu0 0.0
    %4634 = vmatprep.subr.mxu0 0.0
    %4635 = vmatpush1.msra.mxu0 0.0
    %4636 = vmatprep.subr.mxu0 0.0
    %4637 = vmatpush1.msra.mxu0 0.0
    %4638 = vmatprep.subr.mxu0 0.0
    %4639 = vmatpush1.msra.mxu0 0.0
    %4640 = vmatprep.subr.mxu0 0.0
    %4641 = vmatpush1.msra.mxu0 0.0
    %4642 = vmatprep.subr.mxu0 0.0
    %4643 = vmatpush1.msra.mxu0 0.0
    %4644 = vmatprep.subr.mxu0 0.0
    %4645 = vmatpush1.msra.mxu0 0.0
    %4646 = vmatprep.subr.mxu0 0.0
    %4647 = vmatpush1.msra.mxu0 0.0
    %4648 = vmatprep.subr.mxu0 0.0
    %4649 = vmatpush1.msra.mxu0 0.0
    %4650 = vmatprep.subr.mxu0 0.0
    %4651 = vmatpush1.msra.mxu0 0.0
    %4652 = vmatprep.subr.mxu0 0.0
    %4653 = vmatpush1.msra.mxu0 0.0
    %4654 = vmatprep.subr.mxu0 0.0
    %4655 = vmatpush1.msra.mxu0 0.0
    %4656 = vmatprep.subr.mxu0 0.0
    %4657 = vmatpush1.msra.mxu0 0.0
    %4658 = vmatprep.mubr.f32.mxu0 0.0
    %4659 = vmatmul.mubr.f32.gmra.mrb[0].mxu0 %v4592
    %v4660 = vpop.f32.mrb[0].mxu0
    %v4661 = vadd.f32 0.0, %v4660
    %v4662 = vpop.f32.mrb[0].mxu0
    %4663 = vdwg.mxu0
    %4664 = vmatprep.subr.mxu0 0.0
    %4665 = vmatpush1.msra.mxu0 %v4579
    %4666 = vmatprep.subr.mxu0 0.0
    %4667 = vmatpush1.msra.mxu0 %v4582
    %4668 = vmatprep.subr.mxu0 0.0
    %4669 = vmatpush1.msra.mxu0 %v4585
    %4670 = vmatprep.subr.mxu0 0.0
    %4671 = vmatpush1.msra.mxu0 %v4588
    %4672 = vmatprep.subr.mxu0 0.0
    %4673 = vmatpush1.msra.mxu0 0.0
    %4674 = vmatprep.subr.mxu0 0.0
    %4675 = vmatpush1.msra.mxu0 0.0
    %4676 = vmatprep.subr.mxu0 0.0
    %4677 = vmatpush1.msra.mxu0 0.0
    %4678 = vmatprep.subr.mxu0 0.0
    %4679 = vmatpush1.msra.mxu0 0.0
    %4680 = vmatprep.subr.mxu0 0.0
    %4681 = vmatpush1.msra.mxu0 0.0
    %4682 = vmatprep.subr.mxu0 0.0
    %4683 = vmatpush1.msra.mxu0 0.0
    %4684 = vmatprep.subr.mxu0 0.0
    %4685 = vmatpush1.msra.mxu0 0.0
    %4686 = vmatprep.subr.mxu0 0.0
    %4687 = vmatpush1.msra.mxu0 0.0
    %4688 = vmatprep.subr.mxu0 0.0
    %4689 = vmatpush1.msra.mxu0 0.0
    %4690 = vmatprep.subr.mxu0 0.0
    %4691 = vmatpush1.msra.mxu0 0.0
    %4692 = vmatprep.subr.mxu0 0.0
    %4693 = vmatpush1.msra.mxu0 0.0
    %4694 = vmatprep.subr.mxu0 0.0
    %4695 = vmatpush1.msra.mxu0 0.0
    %4696 = vmatprep.subr.mxu0 0.0
    %4697 = vmatpush1.msra.mxu0 0.0
    %4698 = vmatprep.subr.mxu0 0.0
    %4699 = vmatpush1.msra.mxu0 0.0
    %4700 = vmatprep.subr.mxu0 0.0
    %4701 = vmatpush1.msra.mxu0 0.0
    %4702 = vmatprep.subr.mxu0 0.0
    %4703 = vmatpush1.msra.mxu0 0.0
    %4704 = vmatprep.subr.mxu0 0.0
    %4705 = vmatpush1.msra.mxu0 0.0
    %4706 = vmatprep.subr.mxu0 0.0
    %4707 = vmatpush1.msra.mxu0 0.0
    %4708 = vmatprep.subr.mxu0 0.0
    %4709 = vmatpush1.msra.mxu0 0.0
    %4710 = vmatprep.subr.mxu0 0.0
    %4711 = vmatpush1.msra.mxu0 0.0
    %4712 = vmatprep.subr.mxu0 0.0
    %4713 = vmatpush1.msra.mxu0 0.0
    %4714 = vmatprep.subr.mxu0 0.0
    %4715 = vmatpush1.msra.mxu0 0.0
    %4716 = vmatprep.subr.mxu0 0.0
    %4717 = vmatpush1.msra.mxu0 0.0
    %4718 = vmatprep.subr.mxu0 0.0
    %4719 = vmatpush1.msra.mxu0 0.0
    %4720 = vmatprep.subr.mxu0 0.0
    %4721 = vmatpush1.msra.mxu0 0.0
    %4722 = vmatprep.subr.mxu0 0.0
    %4723 = vmatpush1.msra.mxu0 0.0
    %4724 = vmatprep.subr.mxu0 0.0
    %4725 = vmatpush1.msra.mxu0 0.0
    %4726 = vmatprep.subr.mxu0 0.0
    %4727 = vmatpush1.msra.mxu0 0.0
    %4728 = vmatprep.mubr.f32.mxu0 0.0
    %4729 = vmatmul.mubr.f32.gmra.mrb[0].mxu0 %v4592
    %v4730 = vpop.f32.mrb[0].mxu0
    %v4731 = vadd.f32 0.0, %v4730
    %v4732 = vpop.f32.mrb[0].mxu0
    %4733 = vdwg.mxu0
    %v4734 = vlaneseq
    %v4735 = vand.u32 %v4734, 127
    %vm4736 = vcmp.eq.s32.totalorder %v4735, 0
    %4738 = vset.pattern.permute.xlu0 0
    %4739 = vperm.xlu0 %4738, %v4661
    %v4740 = vpop.permute.xlu0 %4739
    %4743 = vset.pattern.permute.xlu0 0
    %4744 = vperm.xlu0 %4743, %v4731
    %v4745 = vpop.permute.xlu0 %4744
    %v4747 = vsel %vm4736, %v4740, %v4745
    %v4748 = vld [vmem:[%s10] sm:$0x1]
    %v4750 = vlaneseq
    %v4751 = vshrl.u32 %v4750, 7
    %v4752 = vsub.s32 0, %v4751
    %v4753 = vrot.slane %v4748, %v4752
    %v4755 = vadd.f32 %v4747, %v4753
    %vm4756 = vcmask 9216
    %4757 = vst.msk [vmem:[#allocation2] sm:$0x3] %vm4756, %v4755
    // Predicated region
    $region46: #{fbtsa_forward.1} parent=1 // pred_check
      _
    $region47: #{fbtsa_forward.1} parent=1 // pred_check_branch
      %4759 = sbr.rel (0) target = $region49
    $region48: #{fbtsa_forward.1} parent=1 // pred_region
      %s4761 = ssub.s32 32, 32
      %4762 = vsyncadd [#allocation3], %s4761
      %s4764 = sshll.u32 [#allocation2], 4
      %s4765 = int_to_ptr.vmem [resolvable:$true] %s4764
      %4767 = dma.vmem_to_hbm [thread:$0]  %s4765, 32, %s11, [#allocation3]
    $region49: #{fbtsa_forward.1} parent=1 // pred_fallthru
      _
    // Predicated region
    $region50: #{fbtsa_forward.1} parent=1 // pred_check
      _
    $region51: #{fbtsa_forward.1} parent=1 // pred_check_branch
      %4769 = sbr.rel (0) target = $region53
    $region52: #{fbtsa_forward.1} parent=1 // pred_region
      %4770 = dma.done [#allocation3], 32
    $region53: #{fbtsa_forward.1} parent=1 // pred_fallthru
      _
    %4771 = vsyncpa [#allocation3], 1

</llo_original>
